<compile_context>
chip_gen: v7x
topology: tpu7x:2x2x1
jax: 0.10.0
libtpu: 0.0.40
codegen_flags: <defaults>
</compile_context>

<pallas_src>
import jax
import jax.numpy as jnp
from jax import lax
from jax.experimental import pallas as pl
from jax.experimental.pallas import tpu as pltpu

LRELU_SLOPE = 0.2
BN_EPS = 1e-5
KSIZE = 4
LANE = 128
MAX_TILE_M = 512        # matmul-pass LHS tile cap
MAX_TILE_ELEM = 2048    # elementwise (BN pass 2) tile cap


def _round_up(x, m):
    return (x + m - 1) // m * m


# ----------------------- generation-aware VMEM sizing ----------------------- #
_VMEM_CAP = None


def _vmem_capacity():
    """Physical VMEM capacity in bytes (falls back to the v7x 64 MiB worst case)."""
    global _VMEM_CAP
    if _VMEM_CAP is None:
        cap = 64 << 20
        try:
            cap = int(getattr(pltpu.get_tpu_info(), "vmem_capacity_bytes", cap))
        except Exception:
            pass
        _VMEM_CAP = cap
    return _VMEM_CAP


def _vmem_budget():
    # Per-call double-buffered tile budget, leaving headroom below scoped limits.
    return (22 << 20) if _vmem_capacity() >= (128 << 20) else (13 << 20)


def _compiler_params(semantics, vmem_est):
    max_limit = (48 << 20) if _vmem_capacity() >= (128 << 20) else (30 << 20)
    vmem = min(max_limit, max(8 << 20, _round_up(vmem_est * 2, 1 << 20)))
    return pltpu.CompilerParams(dimension_semantics=semantics,
                                vmem_limit_bytes=int(vmem))


def _matmul_vmem_est(tile_m, k_p, cout_p, out_bytes, extra=0):
    return (2 * tile_m * k_p * 2        # double-buffered bf16 LHS tiles
            + 2 * k_p * cout_p * 2      # resident bf16 RHS (counted double-buffered)
            + 2 * tile_m * cout_p * out_bytes
            + extra)


def _pick_tile_m(m, k_p, cout_p, out_bytes, budget, max_tile=MAX_TILE_M):
    tile = max_tile
    while tile > 16:
        if _matmul_vmem_est(tile, k_p, cout_p, out_bytes) <= budget:
            break
        tile //= 2
    return max(16, min(tile, _round_up(m, 16)))


def _pad_rows(a, m_pad):
    m = a.shape[0]
    return a if m_pad == m else jnp.pad(a, ((0, m_pad - m), (0, 0)))


# ----------------------------- Pallas kernels ------------------------------ #
def _conv_act_kernel(p_ref, w_ref, o_ref):
    y = jnp.dot(p_ref[...], w_ref[...], preferred_element_type=jnp.float32)
    o_ref[...] = jnp.where(y > 0, y, LRELU_SLOPE * y).astype(o_ref.dtype)


def _conv_stats_kernel(p_ref, w_ref, y_ref, psum_ref, psq_ref):
    # BN pass 1: matmul tile + PER-TILE partial channel sums (no resident accumulator,
    # no pl.when init) -> grid axis stays "parallel" / megacore-shardable.
    y = jnp.dot(p_ref[...], w_ref[...], preferred_element_type=jnp.float32)
    yb = y.astype(y_ref.dtype)
    y_ref[...] = yb
    # Stats from the bf16-rounded tensor (the one pass 2 normalizes): self-consistent
    # and the f32 MXU result can die right after the cast (v5e vst-slot pressure).
    yf = yb.astype(jnp.float32)
    psum_ref[...] = jnp.sum(yf, axis=0, keepdims=True).reshape(1, 1, -1)
    psq_ref[...] = jnp.sum(yf * yf, axis=0, keepdims=True).reshape(1, 1, -1)


def _bn_act_kernel(y_ref, scale_ref, shift_ref, o_ref):
    # BN pass 2: folded normalize+affine as one multiply-add, then LeakyReLU.
    y = y_ref[...].astype(jnp.float32) * scale_ref[...] + shift_ref[...]
    o_ref[...] = jnp.where(y > 0, y, LRELU_SLOPE * y).astype(o_ref.dtype)


def _final_dot_sigmoid_kernel(p_ref, w_ref, o_ref):
    # Final Cout=1 layer: VPU broadcast-multiply + lane reduction + sigmoid epilogue.
    y = jnp.sum(p_ref[...].astype(jnp.float32) * w_ref[...].astype(jnp.float32),
                axis=1, keepdims=True)
    o_ref[...] = jax.nn.sigmoid(y).astype(o_ref.dtype)


# ------------------------------- layer calls ------------------------------- #
def _conv_act_layer(patches, w_mat, *, out_dtype):
    m, k_p = patches.shape
    cout_p = w_mat.shape[1]
    out_bytes = jnp.dtype(out_dtype).itemsize
    budget = _vmem_budget()
    tile_m = _pick_tile_m(m, k_p, cout_p, out_bytes, budget)
    m_pad = _round_up(m, tile_m)
    patches = _pad_rows(patches, m_pad)

    cost = pl.CostEstimate(
        flops=2 * m_pad * k_p * cout_p, transcendentals=0,
        bytes_accessed=m_pad * k_p * 2 + k_p * cout_p * 2 + m_pad * cout_p * out_bytes)

    out = pl.pallas_call(
        _conv_act_kernel,
        out_shape=jax.ShapeDtypeStruct((m_pad, cout_p), out_dtype),
        grid=(m_pad // tile_m,),
        in_specs=[pl.BlockSpec((tile_m, k_p), lambda i: (i, 0)),
                  pl.BlockSpec((k_p, cout_p), lambda i: (0, 0))],
        out_specs=pl.BlockSpec((tile_m, cout_p), lambda i: (i, 0)),
        compiler_params=_compiler_params(
            ("parallel",), _matmul_vmem_est(tile_m, k_p, cout_p, out_bytes)),
        cost_estimate=cost,
    )(patches, w_mat)
    return out[:m]


def _conv_bn_act_layer(patches, w_mat, gamma_p, beta_p, *, out_dtype):
    m, k_p = patches.shape
    cout_p = w_mat.shape[1]
    out_bytes = jnp.dtype(out_dtype).itemsize
    budget = _vmem_budget()

    # Pass-1 (matmul) tile.
    tile1 = _pick_tile_m(m, k_p, cout_p, 2, budget)

    # Pass-2 (pure elementwise, HBM-bound) tile: picked independently, kept a
    # power-of-two multiple of tile1 so one M padding serves both grids.
    elem_bytes = 2 + out_bytes
    tile2 = tile1
    while (tile2 * 2 <= MAX_TILE_ELEM
           and tile2 < _round_up(m, 16)
           and 2 * (tile2 * 2) * cout_p * elem_bytes + 4 * cout_p * 4 <= budget):
        tile2 *= 2

    m_pad = _round_up(m, tile2)
    patches = _pad_rows(patches, m_pad)
    n_tiles1 = m_pad // tile1

    cost1 = pl.CostEstimate(
        flops=2 * m_pad * k_p * cout_p + 3 * m_pad * cout_p,
        transcendentals=0,
        bytes_accessed=(m_pad * k_p * 2 + k_p * cout_p * 2
                        + m_pad * cout_p * 2 + 2 * n_tiles1 * cout_p * 4))

    y, psum, psq = pl.pallas_call(
        _conv_stats_kernel,
        out_shape=(jax.ShapeDtypeStruct((m_pad, cout_p), jnp.bfloat16),
                   jax.ShapeDtypeStruct((n_tiles1, 1, cout_p), jnp.float32),
                   jax.ShapeDtypeStruct((n_tiles1, 1, cout_p), jnp.float32)),
        grid=(n_tiles1,),
        in_specs=[pl.BlockSpec((tile1, k_p), lambda i: (i, 0)),
                  pl.BlockSpec((k_p, cout_p), lambda i: (0, 0))],
        out_specs=(pl.BlockSpec((tile1, cout_p), lambda i: (i, 0)),
                   pl.BlockSpec((1, 1, cout_p), lambda i: (i, 0, 0)),
                   pl.BlockSpec((1, 1, cout_p), lambda i: (i, 0, 0))),
        compiler_params=_compiler_params(
            ("parallel",), _matmul_vmem_est(tile1, k_p, cout_p, 2, extra=16 * cout_p)),
        cost_estimate=cost1,
    )(patches, w_mat)

    # Tiny glue: reduce partial sums, fold mean/var/gamma/beta into scale & shift.
    # Zero-padded rows/channels contribute 0, so dividing by the real M keeps
    # BatchNorm's training-mode (biased) batch statistics exact.
    inv_m = 1.0 / float(m)
    csum = jnp.sum(psum[:, 0, :], axis=0, keepdims=True)
    csq = jnp.sum(psq[:, 0, :], axis=0, keepdims=True)
    mean = csum * inv_m
    var = jnp.maximum(csq * inv_m - mean * mean, 0.0)
    scale = gamma_p * lax.rsqrt(var + BN_EPS)
    shift = beta_p - mean * scale

    cost2 = pl.CostEstimate(
        flops=4 * m_pad * cout_p, transcendentals=0,
        bytes_accessed=m_pad * cout_p * 2 + 2 * cout_p * 4 + m_pad * cout_p * out_bytes)
    est2 = 2 * tile2 * cout_p * elem_bytes + 4 * cout_p * 4

    out = pl.pallas_call(
        _bn_act_kernel,
        out_shape=jax.ShapeDtypeStruct((m_pad, cout_p), out_dtype),
        grid=(m_pad // tile2,),
        in_specs=[pl.BlockSpec((tile2, cout_p), lambda i: (i, 0)),
                  pl.BlockSpec((1, cout_p), lambda i: (0, 0)),
                  pl.BlockSpec((1, cout_p), lambda i: (0, 0))],
        out_specs=pl.BlockSpec((tile2, cout_p), lambda i: (i, 0)),
        compiler_params=_compiler_params(("parallel",), est2),
        cost_estimate=cost2,
    )(y, scale, shift)
    return out[:m]


def _final_layer(patches, w_vec):
    """Cout=1 conv + sigmoid as a VPU multiply-reduce against the (1, K) weight."""
    m, k_p = patches.shape
    budget = _vmem_budget()
    tile_m = 256
    while tile_m > 8 and 2 * tile_m * k_p * 2 + 2 * tile_m * 4 > budget:
        tile_m //= 2
    tile_m = min(tile_m, _round_up(m, 8))
    m_pad = _round_up(m, tile_m)
    patches = _pad_rows(patches, m_pad)

    cost = pl.CostEstimate(
        flops=2 * m_pad * k_p, transcendentals=m_pad,
        bytes_accessed=m_pad * k_p * 2 + k_p * 2 + m_pad * 4)
    est = 2 * tile_m * k_p * 2 + 2 * k_p * 2 + 2 * tile_m * 4

    out = pl.pallas_call(
        _final_dot_sigmoid_kernel,
        out_shape=jax.ShapeDtypeStruct((m_pad, 1), jnp.float32),
        grid=(m_pad // tile_m,),
        in_specs=[pl.BlockSpec((tile_m, k_p), lambda i: (i, 0)),
                  pl.BlockSpec((1, k_p), lambda i: (0, 0))],
        out_specs=pl.BlockSpec((tile_m, 1), lambda i: (i, 0)),
        compiler_params=_compiler_params(("parallel",), est),
        cost_estimate=cost,
    )(patches, w_vec)
    return out[:m]


# ------------------------------- JAX glue ---------------------------------- #
def _im2col(x_nhwc, k, s, p):
    """Extract conv patches in x's dtype. Last-axis order is (kh, kw, cin)."""
    x = jnp.pad(x_nhwc, ((0, 0), (p, p), (p, p), (0, 0)))
    n, hp, wp, c = x.shape
    ho = (hp - k) // s + 1
    wo = (wp - k) // s + 1
    pieces = []
    for kh in range(k):
        for kw in range(k):
            pieces.append(x[:, kh:kh + s * ho:s, kw:kw + s * wo:s, :])
    patches = jnp.concatenate(pieces, axis=-1)  # (N, Ho, Wo, k*k*C)
    return patches.reshape(n * ho * wo, k * k * c), (n, ho, wo)


# (stride, pad, has_bn, final_sigmoid) for the 5 conv layers of the module.
_LAYER_CFG = [
    (2, 1, False, False),
    (2, 1, True, False),
    (2, 1, True, False),
    (2, 1, True, False),
    (1, 0, False, True),
]


def domain_classifier_forward(x_nchw, params):
    x = jnp.transpose(x_nchw, (0, 2, 3, 1)).astype(jnp.bfloat16)  # NCHW -> NHWC, bf16
    for (s, p, has_bn, final), prm in zip(_LAYER_CFG, params):
        w = prm["w"]                              # torch layout (Cout, Cin, 4, 4)
        cout = w.shape[0]

        patches, (n, ho, wo) = _im2col(x, KSIZE, s, p)
        k = patches.shape[1]
        k_p = _round_up(k, LANE)
        if k_p != k:
            patches = jnp.pad(patches, ((0, 0), (0, k_p - k)))

        # Match patch ordering (kh, kw, cin).
        w_mat = jnp.transpose(w, (2, 3, 1, 0)).reshape(k, cout)

        if final:
            # Cout == 1: no 128-wide padding / MXU waste; VPU multiply-reduce kernel.
            w_vec = jnp.pad(w_mat.T, ((0, 0), (0, k_p - k))).astype(jnp.bfloat16)
            y = _final_layer(patches, w_vec)                       # (M, 1) f32
            x = y.reshape(n, ho, wo, 1)
        else:
            cout_p = _round_up(cout, LANE)
            w_pad = jnp.pad(w_mat, ((0, k_p - k), (0, cout_p - cout))).astype(jnp.bfloat16)
            if has_bn:
                gamma = jnp.pad(prm["gamma"], ((0, 0), (0, cout_p - cout)))
                beta = jnp.pad(prm["beta"], ((0, 0), (0, cout_p - cout)))
                y = _conv_bn_act_layer(patches, w_pad, gamma, beta,
                                       out_dtype=jnp.bfloat16)
            else:
                y = _conv_act_layer(patches, w_pad, out_dtype=jnp.bfloat16)
            x = y[:, :cout].reshape(n, ho, wo, cout)
    return jnp.transpose(x, (0, 3, 1, 2)).astype(jnp.float32)      # NHWC -> NCHW


def init_params(key, n_channels):
    chans = [
        (n_channels, n_channels),
        (n_channels, 2 * n_channels),
        (2 * n_channels, 4 * n_channels),
        (4 * n_channels, 8 * n_channels),
        (8 * n_channels, 1),
    ]
    params = []
    for i, (cin, cout) in enumerate(chans):
        key, sub = jax.random.split(key)
        w = 0.05 * jax.random.normal(sub, (cout, cin, KSIZE, KSIZE), jnp.float32)
        prm = {"w": w}
        if _LAYER_CFG[i][2]:  # BatchNorm layers: torch default gamma=1, beta=0
            prm["gamma"] = jnp.ones((1, cout), jnp.float32)
            prm["beta"] = jnp.zeros((1, cout), jnp.float32)
        params.append(prm)
    return params


# ----------------------- pure-JAX reference (check) ------------------------ #
def _reference_forward(x_nchw, params):
    x = jnp.transpose(x_nchw, (0, 2, 3, 1))
    for (s, p, has_bn, final), prm in zip(_LAYER_CFG, params):
        w_hwio = jnp.transpose(prm["w"], (2, 3, 1, 0))
        y = lax.conv_general_dilated(
            x, w_hwio, (s, s), [(p, p), (p, p)],
            dimension_numbers=("NHWC", "HWIO", "NHWC"))
        if has_bn:
            mean = jnp.mean(y, axis=(0, 1, 2), keepdims=True)
            var = jnp.mean((y - mean) ** 2, axis=(0, 1, 2), keepdims=True)
            y = (y - mean) * lax.rsqrt(var + BN_EPS)
            y = y * prm["gamma"].reshape(1, 1, 1, -1) + prm["beta"].reshape(1, 1, 1, -1)
        y = jax.nn.sigmoid(y) if final else jnp.where(y > 0, y, LRELU_SLOPE * y)
        x = y
    return jnp.transpose(x, (0, 3, 1, 2))


if __name__ == "__main__":
    key = jax.random.PRNGKey(0)
    n_channels = 8           # small stand-in for the default 64
    batch, spatial = 2, 64   # 64x64 -> final 1x1 output, as in a DCGAN discriminator

    kx, kp = jax.random.split(key)
    x = jax.random.normal(kx, (batch, n_channels, spatial, spatial), jnp.float32)
    params = init_params(kp, n_channels)

    fwd = jax.jit(domain_classifier_forward)
    prob = jax.block_until_ready(fwd(x, params))
    assert prob.shape == (batch, 1, 1, 1), prob.shape

    ref = jax.block_until_ready(_reference_forward(x, params))
    # bf16 MXU operands + bf16 intermediate activations => ~1% relative noise vs
    # the f32 reference; tolerance set accordingly.
    assert jnp.allclose(prob, ref, rtol=3e-2, atol=3e-2), (
        float(jnp.max(jnp.abs(prob - ref))))

    print("KERNEL_OK")
</pallas_src>

<mosaic_0001>
module attributes {stable_mosaic.version = 11 : i64} {
  func.func @_conv_act_kernel(%arg0: i32, %arg1: memref<512x128xbf16, #tpu.memory_space<vmem>>, %arg2: memref<128x128xbf16, #tpu.memory_space<vmem>>, %arg3: memref<512x128xbf16, #tpu.memory_space<vmem>>) attributes {dimension_semantics = [#tpu.dimension_semantics<parallel>], iteration_bounds = array<i64: 4>, scalar_prefetch = 0 : i64, scratch_operands = 0 : i64, tpu.core_type = #tpu.core_type<tc>, window_params = [{transform_indices = @transform_0, window_bounds = array<i64: 512, 128>}, {pipeline_mode = #tpu.pipeline_mode<synchronous>, transform_indices = @transform_1, window_bounds = array<i64: 128, 128>}, {transform_indices = @transform_2, window_bounds = array<i64: 512, 128>}]} {
    %c0 = arith.constant 0 : index
    %c0_0 = arith.constant 0 : index
    %0 = vector.load %arg1[%c0, %c0_0] : memref<512x128xbf16, #tpu.memory_space<vmem>>, vector<512x128xbf16>
    %c0_1 = arith.constant 0 : index
    %c0_2 = arith.constant 0 : index
    %1 = vector.load %arg2[%c0_1, %c0_2] : memref<128x128xbf16, #tpu.memory_space<vmem>>, vector<128x128xbf16>
    %cst = arith.constant dense<0.000000e+00> : vector<512x128xf32>
    %2 = tpu.matmul %0, %1, %cst {dimension_numbers = #tpu.dot_dimension_numbers<[1], [0], [0], [1], [0, 0, 1, 1], [], []>} : vector<512x128xbf16>, vector<128x128xbf16>, vector<512x128xf32> -> vector<512x128xf32>
    %cst_3 = arith.constant 0.000000e+00 : f32
    %3 = vector.broadcast %cst_3 : f32 to vector<512x128xf32>
    %4 = arith.cmpf ogt, %2, %3 : vector<512x128xf32>
    %cst_4 = arith.constant 2.000000e-01 : f32
    %5 = vector.broadcast %cst_4 : f32 to vector<512x128xf32>
    %6 = arith.mulf %5, %2 : vector<512x128xf32>
    %7 = arith.select %4, %2, %6 : vector<512x128xi1>, vector<512x128xf32>
    %8 = arith.truncf %7 : vector<512x128xf32> to vector<512x128xbf16>
    %c0_5 = arith.constant 0 : index
    %c0_6 = arith.constant 0 : index
    %9 = vector.load %arg3[%c0_5, %c0_6] : memref<512x128xbf16, #tpu.memory_space<vmem>>, vector<512x128xbf16>
    tpu.vector_store %arg3[%c0_5, %c0_6], %8 {strides = array<i32>} : memref<512x128xbf16, #tpu.memory_space<vmem>>, vector<512x128xbf16>,
    return
  }
  func.func @transform_0(%arg0: i32) -> (i32, i32) {
    %c0_i32 = arith.constant 0 : i32
    %c0_i32_0 = arith.constant 0 : i32
    return %arg0, %c0_i32 : i32, i32
  }
  func.func @transform_1(%arg0: i32) -> (i32, i32) {
    %c0_i32 = arith.constant 0 : i32
    %c0_i32_0 = arith.constant 0 : i32
    %c0_i32_1 = arith.constant 0 : i32
    return %c0_i32, %c0_i32_0 : i32, i32
  }
  func.func @transform_2(%arg0: i32) -> (i32, i32) {
    %c0_i32 = arith.constant 0 : i32
    %c0_i32_0 = arith.constant 0 : i32
    return %arg0, %c0_i32 : i32, i32
  }
}

module attributes {stable_mosaic.version = 11 : i64} {
  func.func @_bn_act_kernel(%arg0: i32, %arg1: memref<512x128xbf16, #tpu.memory_space<vmem>>, %arg2: memref<1x128xf32, #tpu.memory_space<vmem>>, %arg3: memref<1x128xf32, #tpu.memory_space<vmem>>, %arg4: memref<512x128xbf16, #tpu.memory_space<vmem>>) attributes {dimension_semantics = [#tpu.dimension_semantics<parallel>], iteration_bounds = array<i64: 1>, scalar_prefetch = 0 : i64, scratch_operands = 0 : i64, tpu.core_type = #tpu.core_type<tc>, window_params = [{transform_indices = @transform_0, window_bounds = array<i64: 512, 128>}, {pipeline_mode = #tpu.pipeline_mode<synchronous>, transform_indices = @transform_1, window_bounds = array<i64: 1, 128>}, {pipeline_mode = #tpu.pipeline_mode<synchronous>, transform_indices = @transform_2, window_bounds = array<i64: 1, 128>}, {transform_indices = @transform_3, window_bounds = array<i64: 512, 128>}]} {
    %c0 = arith.constant 0 : index
    %c0_0 = arith.constant 0 : index
    %0 = vector.load %arg1[%c0, %c0_0] : memref<512x128xbf16, #tpu.memory_space<vmem>>, vector<512x128xbf16>
    %1 = arith.extf %0 : vector<512x128xbf16> to vector<512x128xf32>
    %c0_1 = arith.constant 0 : index
    %c0_2 = arith.constant 0 : index
    %2 = vector.load %arg2[%c0_1, %c0_2] : memref<1x128xf32, #tpu.memory_space<vmem>>, vector<1x128xf32>
    %3 = vector.broadcast %2 : vector<1x128xf32> to vector<512x128xf32>
    %4 = arith.mulf %1, %3 : vector<512x128xf32>
    %c0_3 = arith.constant 0 : index
    %c0_4 = arith.constant 0 : index
    %5 = vector.load %arg3[%c0_3, %c0_4] : memref<1x128xf32, #tpu.memory_space<vmem>>, vector<1x128xf32>
    %6 = vector.broadcast %5 : vector<1x128xf32> to vector<512x128xf32>
    %7 = arith.addf %4, %6 : vector<512x128xf32>
    %cst = arith.constant 0.000000e+00 : f32
    %8 = vector.broadcast %cst : f32 to vector<512x128xf32>
    %9 = arith.cmpf ogt, %7, %8 : vector<512x128xf32>
    %cst_5 = arith.constant 2.000000e-01 : f32
    %10 = vector.broadcast %cst_5 : f32 to vector<512x128xf32>
    %11 = arith.mulf %10, %7 : vector<512x128xf32>
    %12 = arith.select %9, %7, %11 : vector<512x128xi1>, vector<512x128xf32>
    %13 = arith.truncf %12 : vector<512x128xf32> to vector<512x128xbf16>
    %c0_6 = arith.constant 0 : index
    %c0_7 = arith.constant 0 : index
    %14 = vector.load %arg4[%c0_6, %c0_7] : memref<512x128xbf16, #tpu.memory_space<vmem>>, vector<512x128xbf16>
    tpu.vector_store %arg4[%c0_6, %c0_7], %13 {strides = array<i32>} : memref<512x128xbf16, #tpu.memory_space<vmem>>, vector<512x128xbf16>,
    return
  }
  func.func @transform_0(%arg0: i32) -> (i32, i32) {
    %c0_i32 = arith.constant 0 : i32
    %c0_i32_0 = arith.constant 0 : i32
    return %arg0, %c0_i32 : i32, i32
  }
  func.func @transform_1(%arg0: i32) -> (i32, i32) {
    %c0_i32 = arith.constant 0 : i32
    %c0_i32_0 = arith.constant 0 : i32
    %c0_i32_1 = arith.constant 0 : i32
    return %c0_i32, %c0_i32_0 : i32, i32
  }
  func.func @transform_2(%arg0: i32) -> (i32, i32) {
    %c0_i32 = arith.constant 0 : i32
    %c0_i32_0 = arith.constant 0 : i32
    %c0_i32_1 = arith.constant 0 : i32
    return %c0_i32, %c0_i32_0 : i32, i32
  }
  func.func @transform_3(%arg0: i32) -> (i32, i32) {
    %c0_i32 = arith.constant 0 : i32
    %c0_i32_0 = arith.constant 0 : i32
    return %arg0, %c0_i32 : i32, i32
  }
}

module attributes {stable_mosaic.version = 11 : i64} {
  func.func @_conv_stats_kernel(%arg0: i32, %arg1: memref<512x128xbf16, #tpu.memory_space<vmem>>, %arg2: memref<128x128xbf16, #tpu.memory_space<vmem>>, %arg3: memref<512x128xbf16, #tpu.memory_space<vmem>>, %arg4: memref<1x1x128xf32, #tpu.memory_space<vmem>>, %arg5: memref<1x1x128xf32, #tpu.memory_space<vmem>>) attributes {dimension_semantics = [#tpu.dimension_semantics<parallel>], iteration_bounds = array<i64: 1>, scalar_prefetch = 0 : i64, scratch_operands = 0 : i64, tpu.core_type = #tpu.core_type<tc>, window_params = [{transform_indices = @transform_0, window_bounds = array<i64: 512, 128>}, {pipeline_mode = #tpu.pipeline_mode<synchronous>, transform_indices = @transform_1, window_bounds = array<i64: 128, 128>}, {transform_indices = @transform_2, window_bounds = array<i64: 512, 128>}, {transform_indices = @transform_3, window_bounds = array<i64: 1, 1, 128>}, {transform_indices = @transform_4, window_bounds = array<i64: 1, 1, 128>}]} {
    %c0 = arith.constant 0 : index
    %c0_0 = arith.constant 0 : index
    %0 = vector.load %arg1[%c0, %c0_0] : memref<512x128xbf16, #tpu.memory_space<vmem>>, vector<512x128xbf16>
    %c0_1 = arith.constant 0 : index
    %c0_2 = arith.constant 0 : index
    %1 = vector.load %arg2[%c0_1, %c0_2] : memref<128x128xbf16, #tpu.memory_space<vmem>>, vector<128x128xbf16>
    %cst = arith.constant dense<0.000000e+00> : vector<512x128xf32>
    %2 = tpu.matmul %0, %1, %cst {dimension_numbers = #tpu.dot_dimension_numbers<[1], [0], [0], [1], [0, 0, 1, 1], [], []>} : vector<512x128xbf16>, vector<128x128xbf16>, vector<512x128xf32> -> vector<512x128xf32>
    %3 = arith.truncf %2 : vector<512x128xf32> to vector<512x128xbf16>
    %c0_3 = arith.constant 0 : index
    %c0_4 = arith.constant 0 : index
    %4 = vector.load %arg3[%c0_3, %c0_4] : memref<512x128xbf16, #tpu.memory_space<vmem>>, vector<512x128xbf16>
    tpu.vector_store %arg3[%c0_3, %c0_4], %3 {strides = array<i32>} : memref<512x128xbf16, #tpu.memory_space<vmem>>, vector<512x128xbf16>,
    %5 = arith.extf %3 : vector<512x128xbf16> to vector<512x128xf32>
    %cst_5 = arith.constant dense<0.000000e+00> : vector<128xf32>
    %6 = vector.multi_reduction <add>, %5, %cst_5 [0] : vector<512x128xf32> to vector<128xf32>
    %7 = vector.shape_cast %6 : vector<128xf32> to vector<1x128xf32>
    %8 = vector.shape_cast %7 : vector<1x128xf32> to vector<1x1x128xf32>
    %c0_6 = arith.constant 0 : index
    %c0_7 = arith.constant 0 : index
    %c0_8 = arith.constant 0 : index
    %9 = vector.load %arg4[%c0_6, %c0_7, %c0_8] : memref<1x1x128xf32, #tpu.memory_space<vmem>>, vector<1x1x128xf32>
    tpu.vector_store %arg4[%c0_6, %c0_7, %c0_8], %8 {strides = array<i32>} : memref<1x1x128xf32, #tpu.memory_space<vmem>>, vector<1x1x128xf32>,
    %10 = arith.mulf %5, %5 : vector<512x128xf32>
    %cst_9 = arith.constant dense<0.000000e+00> : vector<128xf32>
    %11 = vector.multi_reduction <add>, %10, %cst_9 [0] : vector<512x128xf32> to vector<128xf32>
    %12 = vector.shape_cast %11 : vector<128xf32> to vector<1x128xf32>
    %13 = vector.shape_cast %12 : vector<1x128xf32> to vector<1x1x128xf32>
    %c0_10 = arith.constant 0 : index
    %c0_11 = arith.constant 0 : index
    %c0_12 = arith.constant 0 : index
    %14 = vector.load %arg5[%c0_10, %c0_11, %c0_12] : memref<1x1x128xf32, #tpu.memory_space<vmem>>, vector<1x1x128xf32>
    tpu.vector_store %arg5[%c0_10, %c0_11, %c0_12], %13 {strides = array<i32>} : memref<1x1x128xf32, #tpu.memory_space<vmem>>, vector<1x1x128xf32>,
    return
  }
  func.func @transform_0(%arg0: i32) -> (i32, i32) {
    %c0_i32 = arith.constant 0 : i32
    %c0_i32_0 = arith.constant 0 : i32
    return %arg0, %c0_i32 : i32, i32
  }
  func.func @transform_1(%arg0: i32) -> (i32, i32) {
    %c0_i32 = arith.constant 0 : i32
    %c0_i32_0 = arith.constant 0 : i32
    %c0_i32_1 = arith.constant 0 : i32
    return %c0_i32, %c0_i32_0 : i32, i32
  }
  func.func @transform_2(%arg0: i32) -> (i32, i32) {
    %c0_i32 = arith.constant 0 : i32
    %c0_i32_0 = arith.constant 0 : i32
    return %arg0, %c0_i32 : i32, i32
  }
  func.func @transform_3(%arg0: i32) -> (i32, i32, i32) {
    %c0_i32 = arith.constant 0 : i32
    %c0_i32_0 = arith.constant 0 : i32
    %c0_i32_1 = arith.constant 0 : i32
    return %arg0, %c0_i32, %c0_i32_0 : i32, i32, i32
  }
  func.func @transform_4(%arg0: i32) -> (i32, i32, i32) {
    %c0_i32 = arith.constant 0 : i32
    %c0_i32_0 = arith.constant 0 : i32
    %c0_i32_1 = arith.constant 0 : i32
    return %arg0, %c0_i32, %c0_i32_0 : i32, i32, i32
  }
}

module attributes {stable_mosaic.version = 11 : i64} {
  func.func @_bn_act_kernel(%arg0: i32, %arg1: memref<128x128xbf16, #tpu.memory_space<vmem>>, %arg2: memref<1x128xf32, #tpu.memory_space<vmem>>, %arg3: memref<1x128xf32, #tpu.memory_space<vmem>>, %arg4: memref<128x128xbf16, #tpu.memory_space<vmem>>) attributes {dimension_semantics = [#tpu.dimension_semantics<parallel>], iteration_bounds = array<i64: 1>, scalar_prefetch = 0 : i64, scratch_operands = 0 : i64, tpu.core_type = #tpu.core_type<tc>, window_params = [{transform_indices = @transform_0, window_bounds = array<i64: 128, 128>}, {pipeline_mode = #tpu.pipeline_mode<synchronous>, transform_indices = @transform_1, window_bounds = array<i64: 1, 128>}, {pipeline_mode = #tpu.pipeline_mode<synchronous>, transform_indices = @transform_2, window_bounds = array<i64: 1, 128>}, {transform_indices = @transform_3, window_bounds = array<i64: 128, 128>}]} {
    %c0 = arith.constant 0 : index
    %c0_0 = arith.constant 0 : index
    %0 = vector.load %arg1[%c0, %c0_0] : memref<128x128xbf16, #tpu.memory_space<vmem>>, vector<128x128xbf16>
    %1 = arith.extf %0 : vector<128x128xbf16> to vector<128x128xf32>
    %c0_1 = arith.constant 0 : index
    %c0_2 = arith.constant 0 : index
    %2 = vector.load %arg2[%c0_1, %c0_2] : memref<1x128xf32, #tpu.memory_space<vmem>>, vector<1x128xf32>
    %3 = vector.broadcast %2 : vector<1x128xf32> to vector<128x128xf32>
    %4 = arith.mulf %1, %3 : vector<128x128xf32>
    %c0_3 = arith.constant 0 : index
    %c0_4 = arith.constant 0 : index
    %5 = vector.load %arg3[%c0_3, %c0_4] : memref<1x128xf32, #tpu.memory_space<vmem>>, vector<1x128xf32>
    %6 = vector.broadcast %5 : vector<1x128xf32> to vector<128x128xf32>
    %7 = arith.addf %4, %6 : vector<128x128xf32>
    %cst = arith.constant 0.000000e+00 : f32
    %8 = vector.broadcast %cst : f32 to vector<128x128xf32>
    %9 = arith.cmpf ogt, %7, %8 : vector<128x128xf32>
    %cst_5 = arith.constant 2.000000e-01 : f32
    %10 = vector.broadcast %cst_5 : f32 to vector<128x128xf32>
    %11 = arith.mulf %10, %7 : vector<128x128xf32>
    %12 = arith.select %9, %7, %11 : vector<128x128xi1>, vector<128x128xf32>
    %13 = arith.truncf %12 : vector<128x128xf32> to vector<128x128xbf16>
    %c0_6 = arith.constant 0 : index
    %c0_7 = arith.constant 0 : index
    %14 = vector.load %arg4[%c0_6, %c0_7] : memref<128x128xbf16, #tpu.memory_space<vmem>>, vector<128x128xbf16>
    tpu.vector_store %arg4[%c0_6, %c0_7], %13 {strides = array<i32>} : memref<128x128xbf16, #tpu.memory_space<vmem>>, vector<128x128xbf16>,
    return
  }
  func.func @transform_0(%arg0: i32) -> (i32, i32) {
    %c0_i32 = arith.constant 0 : i32
    %c0_i32_0 = arith.constant 0 : i32
    return %arg0, %c0_i32 : i32, i32
  }
  func.func @transform_1(%arg0: i32) -> (i32, i32) {
    %c0_i32 = arith.constant 0 : i32
    %c0_i32_0 = arith.constant 0 : i32
    %c0_i32_1 = arith.constant 0 : i32
    return %c0_i32, %c0_i32_0 : i32, i32
  }
  func.func @transform_2(%arg0: i32) -> (i32, i32) {
    %c0_i32 = arith.constant 0 : i32
    %c0_i32_0 = arith.constant 0 : i32
    %c0_i32_1 = arith.constant 0 : i32
    return %c0_i32, %c0_i32_0 : i32, i32
  }
  func.func @transform_3(%arg0: i32) -> (i32, i32) {
    %c0_i32 = arith.constant 0 : i32
    %c0_i32_0 = arith.constant 0 : i32
    return %arg0, %c0_i32 : i32, i32
  }
}

module attributes {stable_mosaic.version = 11 : i64} {
  func.func @_conv_stats_kernel(%arg0: i32, %arg1: memref<128x256xbf16, #tpu.memory_space<vmem>>, %arg2: memref<256x128xbf16, #tpu.memory_space<vmem>>, %arg3: memref<128x128xbf16, #tpu.memory_space<vmem>>, %arg4: memref<1x1x128xf32, #tpu.memory_space<vmem>>, %arg5: memref<1x1x128xf32, #tpu.memory_space<vmem>>) attributes {dimension_semantics = [#tpu.dimension_semantics<parallel>], iteration_bounds = array<i64: 1>, scalar_prefetch = 0 : i64, scratch_operands = 0 : i64, tpu.core_type = #tpu.core_type<tc>, window_params = [{transform_indices = @transform_0, window_bounds = array<i64: 128, 256>}, {pipeline_mode = #tpu.pipeline_mode<synchronous>, transform_indices = @transform_1, window_bounds = array<i64: 256, 128>}, {transform_indices = @transform_2, window_bounds = array<i64: 128, 128>}, {transform_indices = @transform_3, window_bounds = array<i64: 1, 1, 128>}, {transform_indices = @transform_4, window_bounds = array<i64: 1, 1, 128>}]} {
    %c0 = arith.constant 0 : index
    %c0_0 = arith.constant 0 : index
    %0 = vector.load %arg1[%c0, %c0_0] : memref<128x256xbf16, #tpu.memory_space<vmem>>, vector<128x256xbf16>
    %c0_1 = arith.constant 0 : index
    %c0_2 = arith.constant 0 : index
    %1 = vector.load %arg2[%c0_1, %c0_2] : memref<256x128xbf16, #tpu.memory_space<vmem>>, vector<256x128xbf16>
    %cst = arith.constant dense<0.000000e+00> : vector<128x128xf32>
    %2 = tpu.matmul %0, %1, %cst {dimension_numbers = #tpu.dot_dimension_numbers<[1], [0], [0], [1], [0, 0, 1, 1], [], []>} : vector<128x256xbf16>, vector<256x128xbf16>, vector<128x128xf32> -> vector<128x128xf32>
    %3 = arith.truncf %2 : vector<128x128xf32> to vector<128x128xbf16>
    %c0_3 = arith.constant 0 : index
    %c0_4 = arith.constant 0 : index
    %4 = vector.load %arg3[%c0_3, %c0_4] : memref<128x128xbf16, #tpu.memory_space<vmem>>, vector<128x128xbf16>
    tpu.vector_store %arg3[%c0_3, %c0_4], %3 {strides = array<i32>} : memref<128x128xbf16, #tpu.memory_space<vmem>>, vector<128x128xbf16>,
    %5 = arith.extf %3 : vector<128x128xbf16> to vector<128x128xf32>
    %cst_5 = arith.constant dense<0.000000e+00> : vector<128xf32>
    %6 = vector.multi_reduction <add>, %5, %cst_5 [0] : vector<128x128xf32> to vector<128xf32>
    %7 = vector.shape_cast %6 : vector<128xf32> to vector<1x128xf32>
    %8 = vector.shape_cast %7 : vector<1x128xf32> to vector<1x1x128xf32>
    %c0_6 = arith.constant 0 : index
    %c0_7 = arith.constant 0 : index
    %c0_8 = arith.constant 0 : index
    %9 = vector.load %arg4[%c0_6, %c0_7, %c0_8] : memref<1x1x128xf32, #tpu.memory_space<vmem>>, vector<1x1x128xf32>
    tpu.vector_store %arg4[%c0_6, %c0_7, %c0_8], %8 {strides = array<i32>} : memref<1x1x128xf32, #tpu.memory_space<vmem>>, vector<1x1x128xf32>,
    %10 = arith.mulf %5, %5 : vector<128x128xf32>
    %cst_9 = arith.constant dense<0.000000e+00> : vector<128xf32>
    %11 = vector.multi_reduction <add>, %10, %cst_9 [0] : vector<128x128xf32> to vector<128xf32>
    %12 = vector.shape_cast %11 : vector<128xf32> to vector<1x128xf32>
    %13 = vector.shape_cast %12 : vector<1x128xf32> to vector<1x1x128xf32>
    %c0_10 = arith.constant 0 : index
    %c0_11 = arith.constant 0 : index
    %c0_12 = arith.constant 0 : index
    %14 = vector.load %arg5[%c0_10, %c0_11, %c0_12] : memref<1x1x128xf32, #tpu.memory_space<vmem>>, vector<1x1x128xf32>
    tpu.vector_store %arg5[%c0_10, %c0_11, %c0_12], %13 {strides = array<i32>} : memref<1x1x128xf32, #tpu.memory_space<vmem>>, vector<1x1x128xf32>,
    return
  }
  func.func @transform_0(%arg0: i32) -> (i32, i32) {
    %c0_i32 = arith.constant 0 : i32
    %c0_i32_0 = arith.constant 0 : i32
    return %arg0, %c0_i32 : i32, i32
  }
  func.func @transform_1(%arg0: i32) -> (i32, i32) {
    %c0_i32 = arith.constant 0 : i32
    %c0_i32_0 = arith.constant 0 : i32
    %c0_i32_1 = arith.constant 0 : i32
    return %c0_i32, %c0_i32_0 : i32, i32
  }
  func.func @transform_2(%arg0: i32) -> (i32, i32) {
    %c0_i32 = arith.constant 0 : i32
    %c0_i32_0 = arith.constant 0 : i32
    return %arg0, %c0_i32 : i32, i32
  }
  func.func @transform_3(%arg0: i32) -> (i32, i32, i32) {
    %c0_i32 = arith.constant 0 : i32
    %c0_i32_0 = arith.constant 0 : i32
    %c0_i32_1 = arith.constant 0 : i32
    return %arg0, %c0_i32, %c0_i32_0 : i32, i32, i32
  }
  func.func @transform_4(%arg0: i32) -> (i32, i32, i32) {
    %c0_i32 = arith.constant 0 : i32
    %c0_i32_0 = arith.constant 0 : i32
    %c0_i32_1 = arith.constant 0 : i32
    return %arg0, %c0_i32, %c0_i32_0 : i32, i32, i32
  }
}

module attributes {stable_mosaic.version = 11 : i64} {
  func.func @_conv_stats_kernel(%arg0: i32, %arg1: memref<32x512xbf16, #tpu.memory_space<vmem>>, %arg2: memref<512x128xbf16, #tpu.memory_space<vmem>>, %arg3: memref<32x128xbf16, #tpu.memory_space<vmem>>, %arg4: memref<1x1x128xf32, #tpu.memory_space<vmem>>, %arg5: memref<1x1x128xf32, #tpu.memory_space<vmem>>) attributes {dimension_semantics = [#tpu.dimension_semantics<parallel>], iteration_bounds = array<i64: 1>, scalar_prefetch = 0 : i64, scratch_operands = 0 : i64, tpu.core_type = #tpu.core_type<tc>, window_params = [{transform_indices = @transform_0, window_bounds = array<i64: 32, 512>}, {pipeline_mode = #tpu.pipeline_mode<synchronous>, transform_indices = @transform_1, window_bounds = array<i64: 512, 128>}, {transform_indices = @transform_2, window_bounds = array<i64: 32, 128>}, {transform_indices = @transform_3, window_bounds = array<i64: 1, 1, 128>}, {transform_indices = @transform_4, window_bounds = array<i64: 1, 1, 128>}]} {
    %c0 = arith.constant 0 : index
    %c0_0 = arith.constant 0 : index
    %0 = vector.load %arg1[%c0, %c0_0] : memref<32x512xbf16, #tpu.memory_space<vmem>>, vector<32x512xbf16>
    %c0_1 = arith.constant 0 : index
    %c0_2 = arith.constant 0 : index
    %1 = vector.load %arg2[%c0_1, %c0_2] : memref<512x128xbf16, #tpu.memory_space<vmem>>, vector<512x128xbf16>
    %cst = arith.constant dense<0.000000e+00> : vector<32x128xf32>
    %2 = tpu.matmul %0, %1, %cst {dimension_numbers = #tpu.dot_dimension_numbers<[1], [0], [0], [1], [0, 0, 1, 1], [], []>} : vector<32x512xbf16>, vector<512x128xbf16>, vector<32x128xf32> -> vector<32x128xf32>
    %3 = arith.truncf %2 : vector<32x128xf32> to vector<32x128xbf16>
    %c0_3 = arith.constant 0 : index
    %c0_4 = arith.constant 0 : index
    %4 = vector.load %arg3[%c0_3, %c0_4] : memref<32x128xbf16, #tpu.memory_space<vmem>>, vector<32x128xbf16>
    tpu.vector_store %arg3[%c0_3, %c0_4], %3 {strides = array<i32>} : memref<32x128xbf16, #tpu.memory_space<vmem>>, vector<32x128xbf16>,
    %5 = arith.extf %3 : vector<32x128xbf16> to vector<32x128xf32>
    %cst_5 = arith.constant dense<0.000000e+00> : vector<128xf32>
    %6 = vector.multi_reduction <add>, %5, %cst_5 [0] : vector<32x128xf32> to vector<128xf32>
    %7 = vector.shape_cast %6 : vector<128xf32> to vector<1x128xf32>
    %8 = vector.shape_cast %7 : vector<1x128xf32> to vector<1x1x128xf32>
    %c0_6 = arith.constant 0 : index
    %c0_7 = arith.constant 0 : index
    %c0_8 = arith.constant 0 : index
    %9 = vector.load %arg4[%c0_6, %c0_7, %c0_8] : memref<1x1x128xf32, #tpu.memory_space<vmem>>, vector<1x1x128xf32>
    tpu.vector_store %arg4[%c0_6, %c0_7, %c0_8], %8 {strides = array<i32>} : memref<1x1x128xf32, #tpu.memory_space<vmem>>, vector<1x1x128xf32>,
    %10 = arith.mulf %5, %5 : vector<32x128xf32>
    %cst_9 = arith.constant dense<0.000000e+00> : vector<128xf32>
    %11 = vector.multi_reduction <add>, %10, %cst_9 [0] : vector<32x128xf32> to vector<128xf32>
    %12 = vector.shape_cast %11 : vector<128xf32> to vector<1x128xf32>
    %13 = vector.shape_cast %12 : vector<1x128xf32> to vector<1x1x128xf32>
    %c0_10 = arith.constant 0 : index
    %c0_11 = arith.constant 0 : index
    %c0_12 = arith.constant 0 : index
    %14 = vector.load %arg5[%c0_10, %c0_11, %c0_12] : memref<1x1x128xf32, #tpu.memory_space<vmem>>, vector<1x1x128xf32>
    tpu.vector_store %arg5[%c0_10, %c0_11, %c0_12], %13 {strides = array<i32>} : memref<1x1x128xf32, #tpu.memory_space<vmem>>, vector<1x1x128xf32>,
    return
  }
  func.func @transform_0(%arg0: i32) -> (i32, i32) {
    %c0_i32 = arith.constant 0 : i32
    %c0_i32_0 = arith.constant 0 : i32
    return %arg0, %c0_i32 : i32, i32
  }
  func.func @transform_1(%arg0: i32) -> (i32, i32) {
    %c0_i32 = arith.constant 0 : i32
    %c0_i32_0 = arith.constant 0 : i32
    %c0_i32_1 = arith.constant 0 : i32
    return %c0_i32, %c0_i32_0 : i32, i32
  }
  func.func @transform_2(%arg0: i32) -> (i32, i32) {
    %c0_i32 = arith.constant 0 : i32
    %c0_i32_0 = arith.constant 0 : i32
    return %arg0, %c0_i32 : i32, i32
  }
  func.func @transform_3(%arg0: i32) -> (i32, i32, i32) {
    %c0_i32 = arith.constant 0 : i32
    %c0_i32_0 = arith.constant 0 : i32
    %c0_i32_1 = arith.constant 0 : i32
    return %arg0, %c0_i32, %c0_i32_0 : i32, i32, i32
  }
  func.func @transform_4(%arg0: i32) -> (i32, i32, i32) {
    %c0_i32 = arith.constant 0 : i32
    %c0_i32_0 = arith.constant 0 : i32
    %c0_i32_1 = arith.constant 0 : i32
    return %arg0, %c0_i32, %c0_i32_0 : i32, i32, i32
  }
}

module attributes {stable_mosaic.version = 11 : i64} {
  func.func @_bn_act_kernel(%arg0: i32, %arg1: memref<32x128xbf16, #tpu.memory_space<vmem>>, %arg2: memref<1x128xf32, #tpu.memory_space<vmem>>, %arg3: memref<1x128xf32, #tpu.memory_space<vmem>>, %arg4: memref<32x128xbf16, #tpu.memory_space<vmem>>) attributes {dimension_semantics = [#tpu.dimension_semantics<parallel>], iteration_bounds = array<i64: 1>, scalar_prefetch = 0 : i64, scratch_operands = 0 : i64, tpu.core_type = #tpu.core_type<tc>, window_params = [{transform_indices = @transform_0, window_bounds = array<i64: 32, 128>}, {pipeline_mode = #tpu.pipeline_mode<synchronous>, transform_indices = @transform_1, window_bounds = array<i64: 1, 128>}, {pipeline_mode = #tpu.pipeline_mode<synchronous>, transform_indices = @transform_2, window_bounds = array<i64: 1, 128>}, {transform_indices = @transform_3, window_bounds = array<i64: 32, 128>}]} {
    %c0 = arith.constant 0 : index
    %c0_0 = arith.constant 0 : index
    %0 = vector.load %arg1[%c0, %c0_0] : memref<32x128xbf16, #tpu.memory_space<vmem>>, vector<32x128xbf16>
    %1 = arith.extf %0 : vector<32x128xbf16> to vector<32x128xf32>
    %c0_1 = arith.constant 0 : index
    %c0_2 = arith.constant 0 : index
    %2 = vector.load %arg2[%c0_1, %c0_2] : memref<1x128xf32, #tpu.memory_space<vmem>>, vector<1x128xf32>
    %3 = vector.broadcast %2 : vector<1x128xf32> to vector<32x128xf32>
    %4 = arith.mulf %1, %3 : vector<32x128xf32>
    %c0_3 = arith.constant 0 : index
    %c0_4 = arith.constant 0 : index
    %5 = vector.load %arg3[%c0_3, %c0_4] : memref<1x128xf32, #tpu.memory_space<vmem>>, vector<1x128xf32>
    %6 = vector.broadcast %5 : vector<1x128xf32> to vector<32x128xf32>
    %7 = arith.addf %4, %6 : vector<32x128xf32>
    %cst = arith.constant 0.000000e+00 : f32
    %8 = vector.broadcast %cst : f32 to vector<32x128xf32>
    %9 = arith.cmpf ogt, %7, %8 : vector<32x128xf32>
    %cst_5 = arith.constant 2.000000e-01 : f32
    %10 = vector.broadcast %cst_5 : f32 to vector<32x128xf32>
    %11 = arith.mulf %10, %7 : vector<32x128xf32>
    %12 = arith.select %9, %7, %11 : vector<32x128xi1>, vector<32x128xf32>
    %13 = arith.truncf %12 : vector<32x128xf32> to vector<32x128xbf16>
    %c0_6 = arith.constant 0 : index
    %c0_7 = arith.constant 0 : index
    %14 = vector.load %arg4[%c0_6, %c0_7] : memref<32x128xbf16, #tpu.memory_space<vmem>>, vector<32x128xbf16>
    tpu.vector_store %arg4[%c0_6, %c0_7], %13 {strides = array<i32>} : memref<32x128xbf16, #tpu.memory_space<vmem>>, vector<32x128xbf16>,
    return
  }
  func.func @transform_0(%arg0: i32) -> (i32, i32) {
    %c0_i32 = arith.constant 0 : i32
    %c0_i32_0 = arith.constant 0 : i32
    return %arg0, %c0_i32 : i32, i32
  }
  func.func @transform_1(%arg0: i32) -> (i32, i32) {
    %c0_i32 = arith.constant 0 : i32
    %c0_i32_0 = arith.constant 0 : i32
    %c0_i32_1 = arith.constant 0 : i32
    return %c0_i32, %c0_i32_0 : i32, i32
  }
  func.func @transform_2(%arg0: i32) -> (i32, i32) {
    %c0_i32 = arith.constant 0 : i32
    %c0_i32_0 = arith.constant 0 : i32
    %c0_i32_1 = arith.constant 0 : i32
    return %c0_i32, %c0_i32_0 : i32, i32
  }
  func.func @transform_3(%arg0: i32) -> (i32, i32) {
    %c0_i32 = arith.constant 0 : i32
    %c0_i32_0 = arith.constant 0 : i32
    return %arg0, %c0_i32 : i32, i32
  }
}

module attributes {stable_mosaic.version = 11 : i64} {
  func.func @_final_dot_sigmoid_kernel(%arg0: i32, %arg1: memref<8x1024xbf16, #tpu.memory_space<vmem>>, %arg2: memref<1x1024xbf16, #tpu.memory_space<vmem>>, %arg3: memref<8x1xf32, #tpu.memory_space<vmem>>) attributes {dimension_semantics = [#tpu.dimension_semantics<parallel>], iteration_bounds = array<i64: 1>, scalar_prefetch = 0 : i64, scratch_operands = 0 : i64, tpu.core_type = #tpu.core_type<tc>, window_params = [{transform_indices = @transform_0, window_bounds = array<i64: 8, 1024>}, {pipeline_mode = #tpu.pipeline_mode<synchronous>, transform_indices = @transform_1, window_bounds = array<i64: 1, 1024>}, {transform_indices = @transform_2, window_bounds = array<i64: 8, 1>}]} {
    %c0 = arith.constant 0 : index
    %c0_0 = arith.constant 0 : index
    %0 = vector.load %arg1[%c0, %c0_0] : memref<8x1024xbf16, #tpu.memory_space<vmem>>, vector<8x1024xbf16>
    %1 = arith.extf %0 : vector<8x1024xbf16> to vector<8x1024xf32>
    %c0_1 = arith.constant 0 : index
    %c0_2 = arith.constant 0 : index
    %2 = vector.load %arg2[%c0_1, %c0_2] : memref<1x1024xbf16, #tpu.memory_space<vmem>>, vector<1x1024xbf16>
    %3 = arith.extf %2 : vector<1x1024xbf16> to vector<1x1024xf32>
    %4 = vector.broadcast %3 : vector<1x1024xf32> to vector<8x1024xf32>
    %5 = arith.mulf %1, %4 : vector<8x1024xf32>
    %cst = arith.constant dense<0.000000e+00> : vector<8xf32>
    %6 = vector.multi_reduction <add>, %5, %cst [1] : vector<8x1024xf32> to vector<8xf32>
    %7 = vector.shape_cast %6 : vector<8xf32> to vector<8x1xf32>
    %8 = arith.negf %7 : vector<8x1xf32>
    %9 = math.exp %8 : vector<8x1xf32>
    %cst_3 = arith.constant 1.000000e+00 : f32
    %10 = vector.broadcast %cst_3 : f32 to vector<8x1xf32>
    %11 = arith.addf %10, %9 : vector<8x1xf32>
    %12 = arith.divf %10, %11 : vector<8x1xf32>
    %c0_4 = arith.constant 0 : index
    %c0_5 = arith.constant 0 : index
    %13 = vector.load %arg3[%c0_4, %c0_5] : memref<8x1xf32, #tpu.memory_space<vmem>>, vector<8x1xf32>
    tpu.vector_store %arg3[%c0_4, %c0_5], %12 {strides = array<i32>} : memref<8x1xf32, #tpu.memory_space<vmem>>, vector<8x1xf32>,
    return
  }
  func.func @transform_0(%arg0: i32) -> (i32, i32) {
    %c0_i32 = arith.constant 0 : i32
    %c0_i32_0 = arith.constant 0 : i32
    return %arg0, %c0_i32 : i32, i32
  }
  func.func @transform_1(%arg0: i32) -> (i32, i32) {
    %c0_i32 = arith.constant 0 : i32
    %c0_i32_0 = arith.constant 0 : i32
    %c0_i32_1 = arith.constant 0 : i32
    return %c0_i32, %c0_i32_0 : i32, i32
  }
  func.func @transform_2(%arg0: i32) -> (i32, i32) {
    %c0_i32 = arith.constant 0 : i32
    %c0_i32_0 = arith.constant 0 : i32
    return %arg0, %c0_i32 : i32, i32
  }
}

</mosaic_0001>

<llo_original>
// kernel: domain_classifier_forward.8
$region0: #{domain_classifier_forward.8}
  #allocation0 [shape = 'u32[]', space=smem, size = 0x4, offset = 0x4, fixed_abs, tag = 'smem constant byte address 0x4 - core index']
  #allocation1 [shape = 'u32[144,128]{1,0:T(1,128)}', space=vmem, size = 0x12000, scoped, tag = 'internal scratch']
  %s0 = inlined_call_operand.vmem [shape: bf16[2048,128], index: 0, kind: input, shape index: {}]
  %s1 = inlined_call_operand.vmem [shape: bf16[128,128], index: 1, kind: input, shape index: {}]
  %s2 = inlined_call_operand.vmem [shape: bf16[2048,128], index: 2, kind: output, shape index: {}]
  %s3 = sld [smem:[#allocation0]]
  $region41: #{domain_classifier_forward.8} parent=0
    _
  %s5 = ssub.s32 1, %s3
  %s6 = scalar_select 0, %s5, %s3
  loop: start=0, step=1, limit=6
  $region2: #{domain_classifier_forward.8} parent=0 // loop_pre_header
    _
  $region3: #{domain_classifier_forward.8} parent=0 // loop_header
    %s8 = sphi 0, %s12
    %p9 = scmp.ge.s32.totalorder %s8, 6
    %s18 = sphi 0, %s20
    %s21 = sphi 0, %s18
    %s22 = sphi 0, %s21
    %s38 = sphi 0, %s22
    %s42 = sphi 0, %s42
    %s44 = sphi 0, %s42
    %s45 = sphi 0, %s44
    %s59 = sphi 0, %s45
    %s65 = sphi 0, %s67
    %s68 = sphi 0, %s65
    %s69 = sphi 0, %s68
    %s85 = sphi 0, %s69
  $region4: #{domain_classifier_forward.8} parent=0 // loop_header_branch
    %11 = sbr.rel (%p9) target = $region8
  $region5: #{domain_classifier_forward.8} parent=0 // loop_body
    %s13 = ssub.s32 %s8, 1
    %s14 = ssub.s32 %s8, 2
    %s15 = sadd.s32 %s8, 1
    %s16 = ssub.s32 %s8, %s15
    %p17 = scmp.eq.s32.totalorder %s16, 0
    %s19 = sadd.s32 %s18, 1
    %s20 = scalar_select %p17, %s18, %s19
    %p23 = pneg %p17
    %p24 = scmp.eq.s32.totalorder %s8, 3
    %p25 = por %p23, %p24
    %p26 = scmp.ne.s32.totalorder %s18, %s21
    %p27 = scmp.eq.s32.totalorder %s8, 0
    %p28 = por %p26, %p27
    %p29 = scmp.ne.s32.totalorder %s18, %s21
    %p30 = scmp.eq.s32.totalorder %s13, 3
    %p31 = por %p29, %p30
    %p32 = scmp.ne.s32.totalorder %s21, %s22
    %p33 = scmp.eq.s32.totalorder %s13, 0
    %p34 = por %p32, %p33
    %p35 = scmp.ne.s32.totalorder %s21, %s22
    %p36 = scmp.eq.s32.totalorder %s14, 3
    %p37 = por %p35, %p36
    %p39 = scmp.ne.s32.totalorder %s22, %s38
    %p40 = scmp.eq.s32.totalorder %s14, 0
    %p41 = por %p39, %p40
    %s43 = sadd.s32 %s42, 1
    %p46 = scmp.eq.s32.totalorder %s8, 3
    %p47 = scmp.ne.s32.totalorder %s42, %s44
    %p48 = scmp.eq.s32.totalorder %s8, 0
    %p49 = por %p47, %p48
    %p50 = scmp.ne.s32.totalorder %s42, %s44
    %p51 = scmp.eq.s32.totalorder %s13, 3
    %p52 = por %p50, %p51
    %p53 = scmp.ne.s32.totalorder %s44, %s45
    %p54 = scmp.eq.s32.totalorder %s13, 0
    %p55 = por %p53, %p54
    %p56 = scmp.ne.s32.totalorder %s44, %s45
    %p57 = scmp.eq.s32.totalorder %s14, 3
    %p58 = por %p56, %p57
    %p60 = scmp.ne.s32.totalorder %s45, %s59
    %p61 = scmp.eq.s32.totalorder %s14, 0
    %p62 = por %p60, %p61
    %s63 = ssub.s32 %s8, %s15
    %p64 = scmp.eq.s32.totalorder %s63, 0
    %s66 = sadd.s32 %s65, 1
    %s67 = scalar_select %p64, %s65, %s66
    %p70 = pneg %p64
    %p71 = scmp.eq.s32.totalorder %s8, 3
    %p72 = por %p70, %p71
    %p73 = scmp.ne.s32.totalorder %s65, %s68
    %p74 = scmp.eq.s32.totalorder %s8, 0
    %p75 = por %p73, %p74
    %p76 = scmp.ne.s32.totalorder %s65, %s68
    %p77 = scmp.eq.s32.totalorder %s13, 3
    %p78 = por %p76, %p77
    %p79 = scmp.ne.s32.totalorder %s68, %s69
    %p80 = scmp.eq.s32.totalorder %s13, 0
    %p81 = por %p79, %p80
    %p82 = scmp.ne.s32.totalorder %s68, %s69
    %p83 = scmp.eq.s32.totalorder %s14, 3
    %p84 = por %p82, %p83
    %p86 = scmp.ne.s32.totalorder %s69, %s85
    %p87 = scmp.eq.s32.totalorder %s14, 0
    %p88 = por %p86, %p87
    %p89 = scmp.le.s32.totalorder 1, %s8
    %p90 = scmp.lt.s32.totalorder %s8, 5
    %p91 = pnand %p89, %p90
    %p92 = pneg %p91
    // Predicated region
    $region9: #{domain_classifier_forward.8} parent=5 // pred_check
      _
    $region10: #{domain_classifier_forward.8} parent=5 // pred_check_branch
      %94 = sbr.rel (%p91) target = $region12
    $region11: #{domain_classifier_forward.8} parent=5 // pred_region
      %s95 = ssub.s32 %s8, 1
      // Predicated region
      $region13: #{domain_classifier_forward.8} parent=11 // pred_check
        %p96 = pneg %p55
      $region14: #{domain_classifier_forward.8} parent=11 // pred_check_branch
        %98 = sbr.rel (%p96) target = $region16
      $region15: #{domain_classifier_forward.8} parent=11 // pred_region
        _
      $region16: #{domain_classifier_forward.8} parent=11 // pred_fallthru
        _
    $region12: #{domain_classifier_forward.8} parent=5 // pred_fallthru
      _
    %p99 = scmp.lt.s32.totalorder %s8, 4
    // Predicated region
    $region17: #{domain_classifier_forward.8} parent=5 // pred_check
      %p100 = pneg %p99
    $region18: #{domain_classifier_forward.8} parent=5 // pred_check_branch
      %102 = sbr.rel (%p100) target = $region20
    $region19: #{domain_classifier_forward.8} parent=5 // pred_region
      // Predicated region
      $region21: #{domain_classifier_forward.8} parent=19 // pred_check
        %p103 = pneg %p28
      $region22: #{domain_classifier_forward.8} parent=19 // pred_check_branch
        %105 = sbr.rel (%p103) target = $region24
      $region23: #{domain_classifier_forward.8} parent=19 // pred_region
        %s106 = smul.u32 64, %s8
        %p107 = scmp.lt.s32.totalorder %s106, 255
        %s108 = scalar_select %p107, %s106, 255
        %s109 = smul.addr %s108, 4
        %s110 = scalar_lea.vmem %s0, %s109
        %s111 = smul.u32 64, %s8
      $region24: #{domain_classifier_forward.8} parent=19 // pred_fallthru
        _
    $region20: #{domain_classifier_forward.8} parent=5 // pred_fallthru
      _
    %p112 = scmp.le.s32.totalorder 1, %s8
    %p113 = scmp.lt.s32.totalorder %s8, 5
    %p114 = pnand %p112, %p113
    %p115 = pneg %p114
    // Predicated region
    $region25: #{domain_classifier_forward.8} parent=5 // pred_check
      _
    $region26: #{domain_classifier_forward.8} parent=5 // pred_check_branch
      %117 = sbr.rel (%p114) target = $region28
    $region27: #{domain_classifier_forward.8} parent=5 // pred_region
      %s118 = ssub.s32 %s8, 1
      %s119 = smul.u32 64, %s13
      %p120 = scmp.lt.s32.totalorder %s119, 255
      %s121 = scalar_select %p120, %s119, 255
      %s122 = smul.addr %s121, 4
      %s123 = scalar_lea.vmem %s0, %s122
      %p124 = pneg %p34
      %p125 = pneg %p31
      %p126 = pneg %p55
      %p127 = pneg %p52
      %p128 = pneg %p81
      %p129 = pneg %p78
      %s130 = smul.u32 64, %s13
      %p131 = scmp.lt.s32.totalorder %s130, 255
      %s132 = scalar_select %p131, %s130, 255
      %s133 = smul.addr %s132, 4
      %s134 = scalar_lea.vmem %s2, %s133
      %s135 = smul.u32 64, %s13
      %p136 = scmp.lt.s32.totalorder %s135, 255
      %s137 = scalar_select %p136, %s135, 255
      %s138 = smul.addr %s137, 4
      %s139 = scalar_lea.vmem %s0, %s138
      %s140 = smul.u32 64, %s13
      %s141 = smul.u32 64, %s13
      %p142 = scmp.lt.s32.totalorder %s141, 255
      %s143 = scalar_select %p142, %s141, 255
      %s144 = smul.addr %s143, 4
      %s145 = scalar_lea.vmem %s2, %s144
      %s146 = smul.u32 64, %s13
      %v148 = vld [vmem:[%s139] sm:$0xf]
      %v149 = vld [vmem:[%s139 + $0x4] sm:$0xf]
      %v150 = vld [vmem:[%s139 + $0x8] sm:$0xf]
      %v151 = vld [vmem:[%s139 + $0xc] sm:$0xf]
      %v152 = vld [vmem:[%s139 + $0x10] sm:$0xf]
      %v153 = vld [vmem:[%s139 + $0x14] sm:$0xf]
      %v154 = vld [vmem:[%s139 + $0x18] sm:$0xf]
      %v155 = vld [vmem:[%s139 + $0x1c] sm:$0xf]
      %v156 = vld [vmem:[%s139 + $0x20] sm:$0xf]
      %v157 = vld [vmem:[%s139 + $0x24] sm:$0xf]
      %v158 = vld [vmem:[%s139 + $0x28] sm:$0xf]
      %v159 = vld [vmem:[%s139 + $0x2c] sm:$0xf]
      %v160 = vld [vmem:[%s139 + $0x30] sm:$0xf]
      %v161 = vld [vmem:[%s139 + $0x34] sm:$0xf]
      %v162 = vld [vmem:[%s139 + $0x38] sm:$0xf]
      %v163 = vld [vmem:[%s139 + $0x3c] sm:$0xf]
      %v164 = vld [vmem:[%s139 + $0x40] sm:$0xf]
      %v165 = vld [vmem:[%s139 + $0x44] sm:$0xf]
      %v166 = vld [vmem:[%s139 + $0x48] sm:$0xf]
      %v167 = vld [vmem:[%s139 + $0x4c] sm:$0xf]
      %v168 = vld [vmem:[%s139 + $0x50] sm:$0xf]
      %v169 = vld [vmem:[%s139 + $0x54] sm:$0xf]
      %v170 = vld [vmem:[%s139 + $0x58] sm:$0xf]
      %v171 = vld [vmem:[%s139 + $0x5c] sm:$0xf]
      %v172 = vld [vmem:[%s139 + $0x60] sm:$0xf]
      %v173 = vld [vmem:[%s139 + $0x64] sm:$0xf]
      %v174 = vld [vmem:[%s139 + $0x68] sm:$0xf]
      %v175 = vld [vmem:[%s139 + $0x6c] sm:$0xf]
      %v176 = vld [vmem:[%s139 + $0x70] sm:$0xf]
      %v177 = vld [vmem:[%s139 + $0x74] sm:$0xf]
      %v178 = vld [vmem:[%s139 + $0x78] sm:$0xf]
      %v179 = vld [vmem:[%s139 + $0x7c] sm:$0xf]
      %v180 = vld [vmem:[%s139 + $0x80] sm:$0xf]
      %v181 = vld [vmem:[%s139 + $0x84] sm:$0xf]
      %v182 = vld [vmem:[%s139 + $0x88] sm:$0xf]
      %v183 = vld [vmem:[%s139 + $0x8c] sm:$0xf]
      %v184 = vld [vmem:[%s139 + $0x90] sm:$0xf]
      %v185 = vld [vmem:[%s139 + $0x94] sm:$0xf]
      %v186 = vld [vmem:[%s139 + $0x98] sm:$0xf]
      %v187 = vld [vmem:[%s139 + $0x9c] sm:$0xf]
      %v188 = vld [vmem:[%s139 + $0xa0] sm:$0xf]
      %v189 = vld [vmem:[%s139 + $0xa4] sm:$0xf]
      %v190 = vld [vmem:[%s139 + $0xa8] sm:$0xf]
      %v191 = vld [vmem:[%s139 + $0xac] sm:$0xf]
      %v192 = vld [vmem:[%s139 + $0xb0] sm:$0xf]
      %v193 = vld [vmem:[%s139 + $0xb4] sm:$0xf]
      %v194 = vld [vmem:[%s139 + $0xb8] sm:$0xf]
      %v195 = vld [vmem:[%s139 + $0xbc] sm:$0xf]
      %v196 = vld [vmem:[%s139 + $0xc0] sm:$0xf]
      %v197 = vld [vmem:[%s139 + $0xc4] sm:$0xf]
      %v198 = vld [vmem:[%s139 + $0xc8] sm:$0xf]
      %v199 = vld [vmem:[%s139 + $0xcc] sm:$0xf]
      %v200 = vld [vmem:[%s139 + $0xd0] sm:$0xf]
      %v201 = vld [vmem:[%s139 + $0xd4] sm:$0xf]
      %v202 = vld [vmem:[%s139 + $0xd8] sm:$0xf]
      %v203 = vld [vmem:[%s139 + $0xdc] sm:$0xf]
      %v204 = vld [vmem:[%s139 + $0xe0] sm:$0xf]
      %v205 = vld [vmem:[%s139 + $0xe4] sm:$0xf]
      %v206 = vld [vmem:[%s139 + $0xe8] sm:$0xf]
      %v207 = vld [vmem:[%s139 + $0xec] sm:$0xf]
      %v208 = vld [vmem:[%s139 + $0xf0] sm:$0xf]
      %v209 = vld [vmem:[%s139 + $0xf4] sm:$0xf]
      %v210 = vld [vmem:[%s139 + $0xf8] sm:$0xf]
      %v211 = vld [vmem:[%s139 + $0xfc] sm:$0xf]
      %v212 = vld [vmem:[%s1] sm:$0xf]
      %v213 = vld [vmem:[%s1 + $0x4] sm:$0xf]
      %v214 = vld [vmem:[%s1 + $0x8] sm:$0xf]
      %v215 = vld [vmem:[%s1 + $0xc] sm:$0xf]
      %v216 = vld [vmem:[%s1 + $0x10] sm:$0xf]
      %v217 = vld [vmem:[%s1 + $0x14] sm:$0xf]
      %v218 = vld [vmem:[%s1 + $0x18] sm:$0xf]
      %v219 = vld [vmem:[%s1 + $0x1c] sm:$0xf]
      %v220 = vld [vmem:[%s1 + $0x20] sm:$0xf]
      %v221 = vld [vmem:[%s1 + $0x24] sm:$0xf]
      %v222 = vld [vmem:[%s1 + $0x28] sm:$0xf]
      %v223 = vld [vmem:[%s1 + $0x2c] sm:$0xf]
      %v224 = vld [vmem:[%s1 + $0x30] sm:$0xf]
      %v225 = vld [vmem:[%s1 + $0x34] sm:$0xf]
      %v226 = vld [vmem:[%s1 + $0x38] sm:$0xf]
      %v227 = vld [vmem:[%s1 + $0x3c] sm:$0xf]
      %v292 = vunpack.c.l.b16 %v148
      %v293 = vunpack.c.l.b16 %v149
      %v294 = vunpack.c.l.b16 %v150
      %v295 = vunpack.c.l.b16 %v151
      %v296 = vunpack.c.l.b16 %v152
      %v297 = vunpack.c.l.b16 %v153
      %v298 = vunpack.c.l.b16 %v154
      %v299 = vunpack.c.l.b16 %v155
      %v300 = vunpack.c.l.b16 %v156
      %v301 = vunpack.c.l.b16 %v157
      %v302 = vunpack.c.l.b16 %v158
      %v303 = vunpack.c.l.b16 %v159
      %v304 = vunpack.c.l.b16 %v160
      %v305 = vunpack.c.l.b16 %v161
      %v306 = vunpack.c.l.b16 %v162
      %v307 = vunpack.c.l.b16 %v163
      %v308 = vunpack.c.l.b16 %v164
      %v309 = vunpack.c.l.b16 %v165
      %v310 = vunpack.c.l.b16 %v166
      %v311 = vunpack.c.l.b16 %v167
      %v312 = vunpack.c.l.b16 %v168
      %v313 = vunpack.c.l.b16 %v169
      %v314 = vunpack.c.l.b16 %v170
      %v315 = vunpack.c.l.b16 %v171
      %v316 = vunpack.c.l.b16 %v172
      %v317 = vunpack.c.l.b16 %v173
      %v318 = vunpack.c.l.b16 %v174
      %v319 = vunpack.c.l.b16 %v175
      %v320 = vunpack.c.l.b16 %v176
      %v321 = vunpack.c.l.b16 %v177
      %v322 = vunpack.c.l.b16 %v178
      %v323 = vunpack.c.l.b16 %v179
      %v324 = vunpack.c.l.b16 %v180
      %v325 = vunpack.c.l.b16 %v181
      %v326 = vunpack.c.l.b16 %v182
      %v327 = vunpack.c.l.b16 %v183
      %v328 = vunpack.c.l.b16 %v184
      %v329 = vunpack.c.l.b16 %v185
      %v330 = vunpack.c.l.b16 %v186
      %v331 = vunpack.c.l.b16 %v187
      %v332 = vunpack.c.l.b16 %v188
      %v333 = vunpack.c.l.b16 %v189
      %v334 = vunpack.c.l.b16 %v190
      %v335 = vunpack.c.l.b16 %v191
      %v336 = vunpack.c.l.b16 %v192
      %v337 = vunpack.c.l.b16 %v193
      %v338 = vunpack.c.l.b16 %v194
      %v339 = vunpack.c.l.b16 %v195
      %v340 = vunpack.c.l.b16 %v196
      %v341 = vunpack.c.l.b16 %v197
      %v342 = vunpack.c.l.b16 %v198
      %v343 = vunpack.c.l.b16 %v199
      %v344 = vunpack.c.l.b16 %v200
      %v345 = vunpack.c.l.b16 %v201
      %v346 = vunpack.c.l.b16 %v202
      %v347 = vunpack.c.l.b16 %v203
      %v348 = vunpack.c.l.b16 %v204
      %v349 = vunpack.c.l.b16 %v205
      %v350 = vunpack.c.l.b16 %v206
      %v351 = vunpack.c.l.b16 %v207
      %v352 = vunpack.c.l.b16 %v208
      %v353 = vunpack.c.l.b16 %v209
      %v354 = vunpack.c.l.b16 %v210
      %v355 = vunpack.c.l.b16 %v211
      %v356 = vpack.c.b16 %v293, %v292
      %v357 = vpack.c.b16 %v295, %v294
      %v358 = vpack.c.b16 %v297, %v296
      %v359 = vpack.c.b16 %v299, %v298
      %v360 = vpack.c.b16 %v301, %v300
      %v361 = vpack.c.b16 %v303, %v302
      %v362 = vpack.c.b16 %v305, %v304
      %v363 = vpack.c.b16 %v307, %v306
      %v364 = vpack.c.b16 %v309, %v308
      %v365 = vpack.c.b16 %v311, %v310
      %v366 = vpack.c.b16 %v313, %v312
      %v367 = vpack.c.b16 %v315, %v314
      %v368 = vpack.c.b16 %v317, %v316
      %v369 = vpack.c.b16 %v319, %v318
      %v370 = vpack.c.b16 %v321, %v320
      %v371 = vpack.c.b16 %v323, %v322
      %v372 = vpack.c.b16 %v325, %v324
      %v373 = vpack.c.b16 %v327, %v326
      %v374 = vpack.c.b16 %v329, %v328
      %v375 = vpack.c.b16 %v331, %v330
      %v376 = vpack.c.b16 %v333, %v332
      %v377 = vpack.c.b16 %v335, %v334
      %v378 = vpack.c.b16 %v337, %v336
      %v379 = vpack.c.b16 %v339, %v338
      %v380 = vpack.c.b16 %v341, %v340
      %v381 = vpack.c.b16 %v343, %v342
      %v382 = vpack.c.b16 %v345, %v344
      %v383 = vpack.c.b16 %v347, %v346
      %v384 = vpack.c.b16 %v349, %v348
      %v385 = vpack.c.b16 %v351, %v350
      %v386 = vpack.c.b16 %v353, %v352
      %v387 = vpack.c.b16 %v355, %v354
      %v436 = vunpack.c.l.b16 %v212
      %v437 = vunpack.c.l.b16 %v213
      %v438 = vunpack.c.l.b16 %v214
      %v439 = vunpack.c.l.b16 %v215
      %v440 = vunpack.c.l.b16 %v216
      %v441 = vunpack.c.l.b16 %v217
      %v442 = vunpack.c.l.b16 %v218
      %v443 = vunpack.c.l.b16 %v219
      %v444 = vunpack.c.l.b16 %v220
      %v445 = vunpack.c.l.b16 %v221
      %v446 = vunpack.c.l.b16 %v222
      %v447 = vunpack.c.l.b16 %v223
      %v448 = vunpack.c.l.b16 %v224
      %v449 = vunpack.c.l.b16 %v225
      %v450 = vunpack.c.l.b16 %v226
      %v451 = vunpack.c.l.b16 %v227
      %v452 = vpack.c.b16 %v437, %v436
      %v453 = vpack.c.b16 %v439, %v438
      %v454 = vpack.c.b16 %v441, %v440
      %v455 = vpack.c.b16 %v443, %v442
      %v456 = vpack.c.b16 %v445, %v444
      %v457 = vpack.c.b16 %v447, %v446
      %v458 = vpack.c.b16 %v449, %v448
      %v459 = vpack.c.b16 %v451, %v450
      %468 = vmatprep.subr.bf16.mxu0 0
      %469 = vmatpush1.bf16.msra.mxu0 %v452
      %470 = vmatprep.subr.bf16.mxu0 0
      %471 = vmatpush1.bf16.msra.mxu0 %v453
      %472 = vmatprep.subr.bf16.mxu0 0
      %473 = vmatpush1.bf16.msra.mxu0 %v454
      %474 = vmatprep.subr.bf16.mxu0 0
      %475 = vmatpush1.bf16.msra.mxu0 %v455
      %476 = vmatprep.subr.bf16.mxu0 0
      %477 = vmatpush1.bf16.msra.mxu0 %v456
      %478 = vmatprep.subr.bf16.mxu0 0
      %479 = vmatpush1.bf16.msra.mxu0 %v457
      %480 = vmatprep.subr.bf16.mxu0 0
      %481 = vmatpush1.bf16.msra.mxu0 %v458
      %482 = vmatprep.subr.bf16.mxu0 0
      %483 = vmatpush1.bf16.msra.mxu0 %v459
      %484 = vmatprep.subr.bf16.mxu0 0
      %485 = vmatpush1.bf16.msra.mxu0 0
      %486 = vmatprep.subr.bf16.mxu0 0
      %487 = vmatpush1.bf16.msra.mxu0 0
      %488 = vmatprep.subr.bf16.mxu0 0
      %489 = vmatpush1.bf16.msra.mxu0 0
      %490 = vmatprep.subr.bf16.mxu0 0
      %491 = vmatpush1.bf16.msra.mxu0 0
      %492 = vmatprep.subr.bf16.mxu0 0
      %493 = vmatpush1.bf16.msra.mxu0 0
      %494 = vmatprep.subr.bf16.mxu0 0
      %495 = vmatpush1.bf16.msra.mxu0 0
      %496 = vmatprep.subr.bf16.mxu0 0
      %497 = vmatpush1.bf16.msra.mxu0 0
      %498 = vmatprep.subr.bf16.mxu0 0
      %499 = vmatpush1.bf16.msra.mxu0 0
      %500 = vmatprep.mubr.bf16.mxu0 0
      %501 = vmatmul.mubr.bf16.gmra.mrb[0].mxu0 %v356
      %v502 = vpop.f32.mrb[0].mxu0
      %v503 = vadd.f32 0.0, %v502
      %v504 = vpop.f32.mrb[0].mxu0
      %v505 = vpop.f32.mrb[0].mxu0
      %v506 = vadd.f32 0.0, %v505
      %v507 = vpop.f32.mrb[0].mxu0
      %508 = vmatprep.mubr.bf16.mxu0 0
      %509 = vmatmul.mubr.bf16.gmra.mrb[0].mxu0 %v357
      %v510 = vpop.f32.mrb[0].mxu0
      %v511 = vadd.f32 0.0, %v510
      %v512 = vpop.f32.mrb[0].mxu0
      %v513 = vpop.f32.mrb[0].mxu0
      %v514 = vadd.f32 0.0, %v513
      %v515 = vpop.f32.mrb[0].mxu0
      %516 = vmatprep.mubr.bf16.mxu0 0
      %517 = vmatmul.mubr.bf16.gmra.mrb[0].mxu0 %v358
      %v518 = vpop.f32.mrb[0].mxu0
      %v519 = vadd.f32 0.0, %v518
      %v520 = vpop.f32.mrb[0].mxu0
      %v521 = vpop.f32.mrb[0].mxu0
      %v522 = vadd.f32 0.0, %v521
      %v523 = vpop.f32.mrb[0].mxu0
      %524 = vmatprep.mubr.bf16.mxu0 0
      %525 = vmatmul.mubr.bf16.gmra.mrb[0].mxu0 %v359
      %v526 = vpop.f32.mrb[0].mxu0
      %v527 = vadd.f32 0.0, %v526
      %v528 = vpop.f32.mrb[0].mxu0
      %v529 = vpop.f32.mrb[0].mxu0
      %v530 = vadd.f32 0.0, %v529
      %v531 = vpop.f32.mrb[0].mxu0
      %532 = vmatprep.mubr.bf16.mxu0 0
      %533 = vmatmul.mubr.bf16.gmra.mrb[0].mxu0 %v360
      %v534 = vpop.f32.mrb[0].mxu0
      %v535 = vadd.f32 0.0, %v534
      %v536 = vpop.f32.mrb[0].mxu0
      %v537 = vpop.f32.mrb[0].mxu0
      %v538 = vadd.f32 0.0, %v537
      %v539 = vpop.f32.mrb[0].mxu0
      %540 = vmatprep.mubr.bf16.mxu0 0
      %541 = vmatmul.mubr.bf16.gmra.mrb[0].mxu0 %v361
      %v542 = vpop.f32.mrb[0].mxu0
      %v543 = vadd.f32 0.0, %v542
      %v544 = vpop.f32.mrb[0].mxu0
      %v545 = vpop.f32.mrb[0].mxu0
      %v546 = vadd.f32 0.0, %v545
      %v547 = vpop.f32.mrb[0].mxu0
      %548 = vmatprep.mubr.bf16.mxu0 0
      %549 = vmatmul.mubr.bf16.gmra.mrb[0].mxu0 %v362
      %v550 = vpop.f32.mrb[0].mxu0
      %v551 = vadd.f32 0.0, %v550
      %v552 = vpop.f32.mrb[0].mxu0
      %v553 = vpop.f32.mrb[0].mxu0
      %v554 = vadd.f32 0.0, %v553
      %v555 = vpop.f32.mrb[0].mxu0
      %556 = vmatprep.mubr.bf16.mxu0 0
      %557 = vmatmul.mubr.bf16.gmra.mrb[0].mxu0 %v363
      %v558 = vpop.f32.mrb[0].mxu0
      %v559 = vadd.f32 0.0, %v558
      %v560 = vpop.f32.mrb[0].mxu0
      %v561 = vpop.f32.mrb[0].mxu0
      %v562 = vadd.f32 0.0, %v561
      %v563 = vpop.f32.mrb[0].mxu0
      %564 = vmatprep.mubr.bf16.mxu0 0
      %565 = vmatmul.mubr.bf16.gmra.mrb[0].mxu0 %v364
      %v566 = vpop.f32.mrb[0].mxu0
      %v567 = vadd.f32 0.0, %v566
      %v568 = vpop.f32.mrb[0].mxu0
      %v569 = vpop.f32.mrb[0].mxu0
      %v570 = vadd.f32 0.0, %v569
      %v571 = vpop.f32.mrb[0].mxu0
      %572 = vmatprep.mubr.bf16.mxu0 0
      %573 = vmatmul.mubr.bf16.gmra.mrb[0].mxu0 %v365
      %v574 = vpop.f32.mrb[0].mxu0
      %v575 = vadd.f32 0.0, %v574
      %v576 = vpop.f32.mrb[0].mxu0
      %v577 = vpop.f32.mrb[0].mxu0
      %v578 = vadd.f32 0.0, %v577
      %v579 = vpop.f32.mrb[0].mxu0
      %580 = vmatprep.mubr.bf16.mxu0 0
      %581 = vmatmul.mubr.bf16.gmra.mrb[0].mxu0 %v366
      %v582 = vpop.f32.mrb[0].mxu0
      %v583 = vadd.f32 0.0, %v582
      %v584 = vpop.f32.mrb[0].mxu0
      %v585 = vpop.f32.mrb[0].mxu0
      %v586 = vadd.f32 0.0, %v585
      %v587 = vpop.f32.mrb[0].mxu0
      %588 = vmatprep.mubr.bf16.mxu0 0
      %589 = vmatmul.mubr.bf16.gmra.mrb[0].mxu0 %v367
      %v590 = vpop.f32.mrb[0].mxu0
      %v591 = vadd.f32 0.0, %v590
      %v592 = vpop.f32.mrb[0].mxu0
      %v593 = vpop.f32.mrb[0].mxu0
      %v594 = vadd.f32 0.0, %v593
      %v595 = vpop.f32.mrb[0].mxu0
      %596 = vmatprep.mubr.bf16.mxu0 0
      %597 = vmatmul.mubr.bf16.gmra.mrb[0].mxu0 %v368
      %v598 = vpop.f32.mrb[0].mxu0
      %v599 = vadd.f32 0.0, %v598
      %v600 = vpop.f32.mrb[0].mxu0
      %v601 = vpop.f32.mrb[0].mxu0
      %v602 = vadd.f32 0.0, %v601
      %v603 = vpop.f32.mrb[0].mxu0
      %604 = vmatprep.mubr.bf16.mxu0 0
      %605 = vmatmul.mubr.bf16.gmra.mrb[0].mxu0 %v369
      %v606 = vpop.f32.mrb[0].mxu0
      %v607 = vadd.f32 0.0, %v606
      %v608 = vpop.f32.mrb[0].mxu0
      %v609 = vpop.f32.mrb[0].mxu0
      %v610 = vadd.f32 0.0, %v609
      %v611 = vpop.f32.mrb[0].mxu0
      %612 = vmatprep.mubr.bf16.mxu0 0
      %613 = vmatmul.mubr.bf16.gmra.mrb[0].mxu0 %v370
      %v614 = vpop.f32.mrb[0].mxu0
      %v615 = vadd.f32 0.0, %v614
      %v616 = vpop.f32.mrb[0].mxu0
      %v617 = vpop.f32.mrb[0].mxu0
      %v618 = vadd.f32 0.0, %v617
      %v619 = vpop.f32.mrb[0].mxu0
      %620 = vmatprep.mubr.bf16.mxu0 0
      %621 = vmatmul.mubr.bf16.gmra.mrb[0].mxu0 %v371
      %v622 = vpop.f32.mrb[0].mxu0
      %v623 = vadd.f32 0.0, %v622
      %v624 = vpop.f32.mrb[0].mxu0
      %v625 = vpop.f32.mrb[0].mxu0
      %v626 = vadd.f32 0.0, %v625
      %v627 = vpop.f32.mrb[0].mxu0
      %628 = vmatprep.mubr.bf16.mxu0 0
      %629 = vmatmul.mubr.bf16.gmra.mrb[0].mxu0 %v372
      %v630 = vpop.f32.mrb[0].mxu0
      %v631 = vadd.f32 0.0, %v630
      %v632 = vpop.f32.mrb[0].mxu0
      %v633 = vpop.f32.mrb[0].mxu0
      %v634 = vadd.f32 0.0, %v633
      %v635 = vpop.f32.mrb[0].mxu0
      %636 = vmatprep.mubr.bf16.mxu0 0
      %637 = vmatmul.mubr.bf16.gmra.mrb[0].mxu0 %v373
      %v638 = vpop.f32.mrb[0].mxu0
      %v639 = vadd.f32 0.0, %v638
      %v640 = vpop.f32.mrb[0].mxu0
      %v641 = vpop.f32.mrb[0].mxu0
      %v642 = vadd.f32 0.0, %v641
      %v643 = vpop.f32.mrb[0].mxu0
      %644 = vmatprep.mubr.bf16.mxu0 0
      %645 = vmatmul.mubr.bf16.gmra.mrb[0].mxu0 %v374
      %v646 = vpop.f32.mrb[0].mxu0
      %v647 = vadd.f32 0.0, %v646
      %v648 = vpop.f32.mrb[0].mxu0
      %v649 = vpop.f32.mrb[0].mxu0
      %v650 = vadd.f32 0.0, %v649
      %v651 = vpop.f32.mrb[0].mxu0
      %652 = vmatprep.mubr.bf16.mxu0 0
      %653 = vmatmul.mubr.bf16.gmra.mrb[0].mxu0 %v375
      %v654 = vpop.f32.mrb[0].mxu0
      %v655 = vadd.f32 0.0, %v654
      %v656 = vpop.f32.mrb[0].mxu0
      %v657 = vpop.f32.mrb[0].mxu0
      %v658 = vadd.f32 0.0, %v657
      %v659 = vpop.f32.mrb[0].mxu0
      %660 = vmatprep.mubr.bf16.mxu0 0
      %661 = vmatmul.mubr.bf16.gmra.mrb[0].mxu0 %v376
      %v662 = vpop.f32.mrb[0].mxu0
      %v663 = vadd.f32 0.0, %v662
      %v664 = vpop.f32.mrb[0].mxu0
      %v665 = vpop.f32.mrb[0].mxu0
      %v666 = vadd.f32 0.0, %v665
      %v667 = vpop.f32.mrb[0].mxu0
      %668 = vmatprep.mubr.bf16.mxu0 0
      %669 = vmatmul.mubr.bf16.gmra.mrb[0].mxu0 %v377
      %v670 = vpop.f32.mrb[0].mxu0
      %v671 = vadd.f32 0.0, %v670
      %v672 = vpop.f32.mrb[0].mxu0
      %v673 = vpop.f32.mrb[0].mxu0
      %v674 = vadd.f32 0.0, %v673
      %v675 = vpop.f32.mrb[0].mxu0
      %676 = vmatprep.mubr.bf16.mxu0 0
      %677 = vmatmul.mubr.bf16.gmra.mrb[0].mxu0 %v378
      %v678 = vpop.f32.mrb[0].mxu0
      %v679 = vadd.f32 0.0, %v678
      %v680 = vpop.f32.mrb[0].mxu0
      %v681 = vpop.f32.mrb[0].mxu0
      %v682 = vadd.f32 0.0, %v681
      %v683 = vpop.f32.mrb[0].mxu0
      %684 = vmatprep.mubr.bf16.mxu0 0
      %685 = vmatmul.mubr.bf16.gmra.mrb[0].mxu0 %v379
      %v686 = vpop.f32.mrb[0].mxu0
      %v687 = vadd.f32 0.0, %v686
      %v688 = vpop.f32.mrb[0].mxu0
      %v689 = vpop.f32.mrb[0].mxu0
      %v690 = vadd.f32 0.0, %v689
      %v691 = vpop.f32.mrb[0].mxu0
      %692 = vmatprep.mubr.bf16.mxu0 0
      %693 = vmatmul.mubr.bf16.gmra.mrb[0].mxu0 %v380
      %v694 = vpop.f32.mrb[0].mxu0
      %v695 = vadd.f32 0.0, %v694
      %v696 = vpop.f32.mrb[0].mxu0
      %v697 = vpop.f32.mrb[0].mxu0
      %v698 = vadd.f32 0.0, %v697
      %v699 = vpop.f32.mrb[0].mxu0
      %700 = vmatprep.mubr.bf16.mxu0 0
      %701 = vmatmul.mubr.bf16.gmra.mrb[0].mxu0 %v381
      %v702 = vpop.f32.mrb[0].mxu0
      %v703 = vadd.f32 0.0, %v702
      %v704 = vpop.f32.mrb[0].mxu0
      %v705 = vpop.f32.mrb[0].mxu0
      %v706 = vadd.f32 0.0, %v705
      %v707 = vpop.f32.mrb[0].mxu0
      %708 = vmatprep.mubr.bf16.mxu0 0
      %709 = vmatmul.mubr.bf16.gmra.mrb[0].mxu0 %v382
      %v710 = vpop.f32.mrb[0].mxu0
      %v711 = vadd.f32 0.0, %v710
      %v712 = vpop.f32.mrb[0].mxu0
      %v713 = vpop.f32.mrb[0].mxu0
      %v714 = vadd.f32 0.0, %v713
      %v715 = vpop.f32.mrb[0].mxu0
      %716 = vmatprep.mubr.bf16.mxu0 0
      %717 = vmatmul.mubr.bf16.gmra.mrb[0].mxu0 %v383
      %v718 = vpop.f32.mrb[0].mxu0
      %v719 = vadd.f32 0.0, %v718
      %v720 = vpop.f32.mrb[0].mxu0
      %v721 = vpop.f32.mrb[0].mxu0
      %v722 = vadd.f32 0.0, %v721
      %v723 = vpop.f32.mrb[0].mxu0
      %724 = vmatprep.mubr.bf16.mxu0 0
      %725 = vmatmul.mubr.bf16.gmra.mrb[0].mxu0 %v384
      %v726 = vpop.f32.mrb[0].mxu0
      %v727 = vadd.f32 0.0, %v726
      %v728 = vpop.f32.mrb[0].mxu0
      %v729 = vpop.f32.mrb[0].mxu0
      %v730 = vadd.f32 0.0, %v729
      %v731 = vpop.f32.mrb[0].mxu0
      %732 = vmatprep.mubr.bf16.mxu0 0
      %733 = vmatmul.mubr.bf16.gmra.mrb[0].mxu0 %v385
      %v734 = vpop.f32.mrb[0].mxu0
      %v735 = vadd.f32 0.0, %v734
      %v736 = vpop.f32.mrb[0].mxu0
      %v737 = vpop.f32.mrb[0].mxu0
      %v738 = vadd.f32 0.0, %v737
      %v739 = vpop.f32.mrb[0].mxu0
      %740 = vmatprep.mubr.bf16.mxu0 0
      %741 = vmatmul.mubr.bf16.gmra.mrb[0].mxu0 %v386
      %v742 = vpop.f32.mrb[0].mxu0
      %v743 = vadd.f32 0.0, %v742
      %v744 = vpop.f32.mrb[0].mxu0
      %v745 = vpop.f32.mrb[0].mxu0
      %v746 = vadd.f32 0.0, %v745
      %v747 = vpop.f32.mrb[0].mxu0
      %748 = vmatprep.mubr.bf16.mxu0 0
      %749 = vmatmul.mubr.bf16.gmra.mrb[0].mxu0 %v387
      %v750 = vpop.f32.mrb[0].mxu0
      %v751 = vadd.f32 0.0, %v750
      %v752 = vpop.f32.mrb[0].mxu0
      %v753 = vpop.f32.mrb[0].mxu0
      %v754 = vadd.f32 0.0, %v753
      %v755 = vpop.f32.mrb[0].mxu0
      %756 = vdwg.mxu0
      %vm757 = vcmp.gt.f32.partialorder %v503, 0.0
      %vm758 = vcmp.gt.f32.partialorder %v506, 0.0
      %vm759 = vcmp.gt.f32.partialorder %v511, 0.0
      %vm760 = vcmp.gt.f32.partialorder %v514, 0.0
      %vm761 = vcmp.gt.f32.partialorder %v519, 0.0
      %vm762 = vcmp.gt.f32.partialorder %v522, 0.0
      %vm763 = vcmp.gt.f32.partialorder %v527, 0.0
      %vm764 = vcmp.gt.f32.partialorder %v530, 0.0
      %vm765 = vcmp.gt.f32.partialorder %v535, 0.0
      %vm766 = vcmp.gt.f32.partialorder %v538, 0.0
      %vm767 = vcmp.gt.f32.partialorder %v543, 0.0
      %vm768 = vcmp.gt.f32.partialorder %v546, 0.0
      %vm769 = vcmp.gt.f32.partialorder %v551, 0.0
      %vm770 = vcmp.gt.f32.partialorder %v554, 0.0
      %vm771 = vcmp.gt.f32.partialorder %v559, 0.0
      %vm772 = vcmp.gt.f32.partialorder %v562, 0.0
      %vm773 = vcmp.gt.f32.partialorder %v567, 0.0
      %vm774 = vcmp.gt.f32.partialorder %v570, 0.0
      %vm775 = vcmp.gt.f32.partialorder %v575, 0.0
      %vm776 = vcmp.gt.f32.partialorder %v578, 0.0
      %vm777 = vcmp.gt.f32.partialorder %v583, 0.0
      %vm778 = vcmp.gt.f32.partialorder %v586, 0.0
      %vm779 = vcmp.gt.f32.partialorder %v591, 0.0
      %vm780 = vcmp.gt.f32.partialorder %v594, 0.0
      %vm781 = vcmp.gt.f32.partialorder %v599, 0.0
      %vm782 = vcmp.gt.f32.partialorder %v602, 0.0
      %vm783 = vcmp.gt.f32.partialorder %v607, 0.0
      %vm784 = vcmp.gt.f32.partialorder %v610, 0.0
      %vm785 = vcmp.gt.f32.partialorder %v615, 0.0
      %vm786 = vcmp.gt.f32.partialorder %v618, 0.0
      %vm787 = vcmp.gt.f32.partialorder %v623, 0.0
      %vm788 = vcmp.gt.f32.partialorder %v626, 0.0
      %vm789 = vcmp.gt.f32.partialorder %v631, 0.0
      %vm790 = vcmp.gt.f32.partialorder %v634, 0.0
      %vm791 = vcmp.gt.f32.partialorder %v639, 0.0
      %vm792 = vcmp.gt.f32.partialorder %v642, 0.0
      %vm793 = vcmp.gt.f32.partialorder %v647, 0.0
      %vm794 = vcmp.gt.f32.partialorder %v650, 0.0
      %vm795 = vcmp.gt.f32.partialorder %v655, 0.0
      %vm796 = vcmp.gt.f32.partialorder %v658, 0.0
      %vm797 = vcmp.gt.f32.partialorder %v663, 0.0
      %vm798 = vcmp.gt.f32.partialorder %v666, 0.0
      %vm799 = vcmp.gt.f32.partialorder %v671, 0.0
      %vm800 = vcmp.gt.f32.partialorder %v674, 0.0
      %vm801 = vcmp.gt.f32.partialorder %v679, 0.0
      %vm802 = vcmp.gt.f32.partialorder %v682, 0.0
      %vm803 = vcmp.gt.f32.partialorder %v687, 0.0
      %vm804 = vcmp.gt.f32.partialorder %v690, 0.0
      %vm805 = vcmp.gt.f32.partialorder %v695, 0.0
      %vm806 = vcmp.gt.f32.partialorder %v698, 0.0
      %vm807 = vcmp.gt.f32.partialorder %v703, 0.0
      %vm808 = vcmp.gt.f32.partialorder %v706, 0.0
      %vm809 = vcmp.gt.f32.partialorder %v711, 0.0
      %vm810 = vcmp.gt.f32.partialorder %v714, 0.0
      %vm811 = vcmp.gt.f32.partialorder %v719, 0.0
      %vm812 = vcmp.gt.f32.partialorder %v722, 0.0
      %vm813 = vcmp.gt.f32.partialorder %v727, 0.0
      %vm814 = vcmp.gt.f32.partialorder %v730, 0.0
      %vm815 = vcmp.gt.f32.partialorder %v735, 0.0
      %vm816 = vcmp.gt.f32.partialorder %v738, 0.0
      %vm817 = vcmp.gt.f32.partialorder %v743, 0.0
      %vm818 = vcmp.gt.f32.partialorder %v746, 0.0
      %vm819 = vcmp.gt.f32.partialorder %v751, 0.0
      %vm820 = vcmp.gt.f32.partialorder %v754, 0.0
      %v821 = vmul.f32 %v503, 0.2
      %v822 = vmul.f32 %v506, 0.2
      %v823 = vmul.f32 %v511, 0.2
      %v824 = vmul.f32 %v514, 0.2
      %v825 = vmul.f32 %v519, 0.2
      %v826 = vmul.f32 %v522, 0.2
      %v827 = vmul.f32 %v527, 0.2
      %v828 = vmul.f32 %v530, 0.2
      %v829 = vmul.f32 %v535, 0.2
      %v830 = vmul.f32 %v538, 0.2
      %v831 = vmul.f32 %v543, 0.2
      %v832 = vmul.f32 %v546, 0.2
      %v833 = vmul.f32 %v551, 0.2
      %v834 = vmul.f32 %v554, 0.2
      %v835 = vmul.f32 %v559, 0.2
      %v836 = vmul.f32 %v562, 0.2
      %v837 = vmul.f32 %v567, 0.2
      %v838 = vmul.f32 %v570, 0.2
      %v839 = vmul.f32 %v575, 0.2
      %v840 = vmul.f32 %v578, 0.2
      %v841 = vmul.f32 %v583, 0.2
      %v842 = vmul.f32 %v586, 0.2
      %v843 = vmul.f32 %v591, 0.2
      %v844 = vmul.f32 %v594, 0.2
      %v845 = vmul.f32 %v599, 0.2
      %v846 = vmul.f32 %v602, 0.2
      %v847 = vmul.f32 %v607, 0.2
      %v848 = vmul.f32 %v610, 0.2
      %v849 = vmul.f32 %v615, 0.2
      %v850 = vmul.f32 %v618, 0.2
      %v851 = vmul.f32 %v623, 0.2
      %v852 = vmul.f32 %v626, 0.2
      %v853 = vmul.f32 %v631, 0.2
      %v854 = vmul.f32 %v634, 0.2
      %v855 = vmul.f32 %v639, 0.2
      %v856 = vmul.f32 %v642, 0.2
      %v857 = vmul.f32 %v647, 0.2
      %v858 = vmul.f32 %v650, 0.2
      %v859 = vmul.f32 %v655, 0.2
      %v860 = vmul.f32 %v658, 0.2
      %v861 = vmul.f32 %v663, 0.2
      %v862 = vmul.f32 %v666, 0.2
      %v863 = vmul.f32 %v671, 0.2
      %v864 = vmul.f32 %v674, 0.2
      %v865 = vmul.f32 %v679, 0.2
      %v866 = vmul.f32 %v682, 0.2
      %v867 = vmul.f32 %v687, 0.2
      %v868 = vmul.f32 %v690, 0.2
      %v869 = vmul.f32 %v695, 0.2
      %v870 = vmul.f32 %v698, 0.2
      %v871 = vmul.f32 %v703, 0.2
      %v872 = vmul.f32 %v706, 0.2
      %v873 = vmul.f32 %v711, 0.2
      %v874 = vmul.f32 %v714, 0.2
      %v875 = vmul.f32 %v719, 0.2
      %v876 = vmul.f32 %v722, 0.2
      %v877 = vmul.f32 %v727, 0.2
      %v878 = vmul.f32 %v730, 0.2
      %v879 = vmul.f32 %v735, 0.2
      %v880 = vmul.f32 %v738, 0.2
      %v881 = vmul.f32 %v743, 0.2
      %v882 = vmul.f32 %v746, 0.2
      %v883 = vmul.f32 %v751, 0.2
      %v884 = vmul.f32 %v754, 0.2
      %v885 = vsel %vm757, %v503, %v821
      %v886 = vsel %vm758, %v506, %v822
      %v887 = vsel %vm759, %v511, %v823
      %v888 = vsel %vm760, %v514, %v824
      %v889 = vsel %vm761, %v519, %v825
      %v890 = vsel %vm762, %v522, %v826
      %v891 = vsel %vm763, %v527, %v827
      %v892 = vsel %vm764, %v530, %v828
      %v893 = vsel %vm765, %v535, %v829
      %v894 = vsel %vm766, %v538, %v830
      %v895 = vsel %vm767, %v543, %v831
      %v896 = vsel %vm768, %v546, %v832
      %v897 = vsel %vm769, %v551, %v833
      %v898 = vsel %vm770, %v554, %v834
      %v899 = vsel %vm771, %v559, %v835
      %v900 = vsel %vm772, %v562, %v836
      %v901 = vsel %vm773, %v567, %v837
      %v902 = vsel %vm774, %v570, %v838
      %v903 = vsel %vm775, %v575, %v839
      %v904 = vsel %vm776, %v578, %v840
      %v905 = vsel %vm777, %v583, %v841
      %v906 = vsel %vm778, %v586, %v842
      %v907 = vsel %vm779, %v591, %v843
      %v908 = vsel %vm780, %v594, %v844
      %v909 = vsel %vm781, %v599, %v845
      %v910 = vsel %vm782, %v602, %v846
      %v911 = vsel %vm783, %v607, %v847
      %v912 = vsel %vm784, %v610, %v848
      %v913 = vsel %vm785, %v615, %v849
      %v914 = vsel %vm786, %v618, %v850
      %v915 = vsel %vm787, %v623, %v851
      %v916 = vsel %vm788, %v626, %v852
      %v917 = vsel %vm789, %v631, %v853
      %v918 = vsel %vm790, %v634, %v854
      %v919 = vsel %vm791, %v639, %v855
      %v920 = vsel %vm792, %v642, %v856
      %v921 = vsel %vm793, %v647, %v857
      %v922 = vsel %vm794, %v650, %v858
      %v923 = vsel %vm795, %v655, %v859
      %v924 = vsel %vm796, %v658, %v860
      %v925 = vsel %vm797, %v663, %v861
      %v926 = vsel %vm798, %v666, %v862
      %v927 = vsel %vm799, %v671, %v863
      %v928 = vsel %vm800, %v674, %v864
      %v929 = vsel %vm801, %v679, %v865
      %v930 = vsel %vm802, %v682, %v866
      %v931 = vsel %vm803, %v687, %v867
      %v932 = vsel %vm804, %v690, %v868
      %v933 = vsel %vm805, %v695, %v869
      %v934 = vsel %vm806, %v698, %v870
      %v935 = vsel %vm807, %v703, %v871
      %v936 = vsel %vm808, %v706, %v872
      %v937 = vsel %vm809, %v711, %v873
      %v938 = vsel %vm810, %v714, %v874
      %v939 = vsel %vm811, %v719, %v875
      %v940 = vsel %vm812, %v722, %v876
      %v941 = vsel %vm813, %v727, %v877
      %v942 = vsel %vm814, %v730, %v878
      %v943 = vsel %vm815, %v735, %v879
      %v944 = vsel %vm816, %v738, %v880
      %v945 = vsel %vm817, %v743, %v881
      %v946 = vsel %vm818, %v746, %v882
      %v947 = vsel %vm819, %v751, %v883
      %v948 = vsel %vm820, %v754, %v884
      %v949 = vpack.c.bf16 %v886, %v885
      %v950 = vpack.c.bf16 %v888, %v887
      %v951 = vpack.c.bf16 %v890, %v889
      %v952 = vpack.c.bf16 %v892, %v891
      %v953 = vpack.c.bf16 %v894, %v893
      %v954 = vpack.c.bf16 %v896, %v895
      %v955 = vpack.c.bf16 %v898, %v897
      %v956 = vpack.c.bf16 %v900, %v899
      %v957 = vpack.c.bf16 %v902, %v901
      %v958 = vpack.c.bf16 %v904, %v903
      %v959 = vpack.c.bf16 %v906, %v905
      %v960 = vpack.c.bf16 %v908, %v907
      %v961 = vpack.c.bf16 %v910, %v909
      %v962 = vpack.c.bf16 %v912, %v911
      %v963 = vpack.c.bf16 %v914, %v913
      %v964 = vpack.c.bf16 %v916, %v915
      %v965 = vpack.c.bf16 %v918, %v917
      %v966 = vpack.c.bf16 %v920, %v919
      %v967 = vpack.c.bf16 %v922, %v921
      %v968 = vpack.c.bf16 %v924, %v923
      %v969 = vpack.c.bf16 %v926, %v925
      %v970 = vpack.c.bf16 %v928, %v927
      %v971 = vpack.c.bf16 %v930, %v929
      %v972 = vpack.c.bf16 %v932, %v931
      %v973 = vpack.c.bf16 %v934, %v933
      %v974 = vpack.c.bf16 %v936, %v935
      %v975 = vpack.c.bf16 %v938, %v937
      %v976 = vpack.c.bf16 %v940, %v939
      %v977 = vpack.c.bf16 %v942, %v941
      %v978 = vpack.c.bf16 %v944, %v943
      %v979 = vpack.c.bf16 %v946, %v945
      %v980 = vpack.c.bf16 %v948, %v947
      %v1013 = vunpack.c.l.b16 %v949
      %v1014 = vunpack.c.h.b16 %v949
      %v1015 = vunpack.c.l.b16 %v950
      %v1016 = vunpack.c.h.b16 %v950
      %v1017 = vunpack.c.l.b16 %v951
      %v1018 = vunpack.c.h.b16 %v951
      %v1019 = vunpack.c.l.b16 %v952
      %v1020 = vunpack.c.h.b16 %v952
      %v1021 = vunpack.c.l.b16 %v953
      %v1022 = vunpack.c.h.b16 %v953
      %v1023 = vunpack.c.l.b16 %v954
      %v1024 = vunpack.c.h.b16 %v954
      %v1025 = vunpack.c.l.b16 %v955
      %v1026 = vunpack.c.h.b16 %v955
      %v1027 = vunpack.c.l.b16 %v956
      %v1028 = vunpack.c.h.b16 %v956
      %v1029 = vunpack.c.l.b16 %v957
      %v1030 = vunpack.c.h.b16 %v957
      %v1031 = vunpack.c.l.b16 %v958
      %v1032 = vunpack.c.h.b16 %v958
      %v1033 = vunpack.c.l.b16 %v959
      %v1034 = vunpack.c.h.b16 %v959
      %v1035 = vunpack.c.l.b16 %v960
      %v1036 = vunpack.c.h.b16 %v960
      %v1037 = vunpack.c.l.b16 %v961
      %v1038 = vunpack.c.h.b16 %v961
      %v1039 = vunpack.c.l.b16 %v962
      %v1040 = vunpack.c.h.b16 %v962
      %v1041 = vunpack.c.l.b16 %v963
      %v1042 = vunpack.c.h.b16 %v963
      %v1043 = vunpack.c.l.b16 %v964
      %v1044 = vunpack.c.h.b16 %v964
      %v1045 = vunpack.c.l.b16 %v965
      %v1046 = vunpack.c.h.b16 %v965
      %v1047 = vunpack.c.l.b16 %v966
      %v1048 = vunpack.c.h.b16 %v966
      %v1049 = vunpack.c.l.b16 %v967
      %v1050 = vunpack.c.h.b16 %v967
      %v1051 = vunpack.c.l.b16 %v968
      %v1052 = vunpack.c.h.b16 %v968
      %v1053 = vunpack.c.l.b16 %v969
      %v1054 = vunpack.c.h.b16 %v969
      %v1055 = vunpack.c.l.b16 %v970
      %v1056 = vunpack.c.h.b16 %v970
      %v1057 = vunpack.c.l.b16 %v971
      %v1058 = vunpack.c.h.b16 %v971
      %v1059 = vunpack.c.l.b16 %v972
      %v1060 = vunpack.c.h.b16 %v972
      %v1061 = vunpack.c.l.b16 %v973
      %v1062 = vunpack.c.h.b16 %v973
      %v1063 = vunpack.c.l.b16 %v974
      %v1064 = vunpack.c.h.b16 %v974
      %v1065 = vunpack.c.l.b16 %v975
      %v1066 = vunpack.c.h.b16 %v975
      %v1067 = vunpack.c.l.b16 %v976
      %v1068 = vunpack.c.h.b16 %v976
      %v1069 = vunpack.c.l.b16 %v977
      %v1070 = vunpack.c.h.b16 %v977
      %v1071 = vunpack.c.l.b16 %v978
      %v1072 = vunpack.c.h.b16 %v978
      %v1073 = vunpack.c.l.b16 %v979
      %v1074 = vunpack.c.h.b16 %v979
      %v1075 = vunpack.c.l.b16 %v980
      %v1076 = vunpack.c.h.b16 %v980
      %v1077 = vpack.c.b16 %v1013, %v1013
      %v1078 = vpack.c.b16 %v1014, %v1014
      %v1079 = vpack.c.b16 %v1015, %v1015
      %v1080 = vpack.c.b16 %v1016, %v1016
      %v1081 = vpack.c.b16 %v1017, %v1017
      %v1082 = vpack.c.b16 %v1018, %v1018
      %v1083 = vpack.c.b16 %v1019, %v1019
      %v1084 = vpack.c.b16 %v1020, %v1020
      %v1085 = vpack.c.b16 %v1021, %v1021
      %v1086 = vpack.c.b16 %v1022, %v1022
      %v1087 = vpack.c.b16 %v1023, %v1023
      %v1088 = vpack.c.b16 %v1024, %v1024
      %v1089 = vpack.c.b16 %v1025, %v1025
      %v1090 = vpack.c.b16 %v1026, %v1026
      %v1091 = vpack.c.b16 %v1027, %v1027
      %v1092 = vpack.c.b16 %v1028, %v1028
      %v1093 = vpack.c.b16 %v1029, %v1029
      %v1094 = vpack.c.b16 %v1030, %v1030
      %v1095 = vpack.c.b16 %v1031, %v1031
      %v1096 = vpack.c.b16 %v1032, %v1032
      %v1097 = vpack.c.b16 %v1033, %v1033
      %v1098 = vpack.c.b16 %v1034, %v1034
      %v1099 = vpack.c.b16 %v1035, %v1035
      %v1100 = vpack.c.b16 %v1036, %v1036
      %v1101 = vpack.c.b16 %v1037, %v1037
      %v1102 = vpack.c.b16 %v1038, %v1038
      %v1103 = vpack.c.b16 %v1039, %v1039
      %v1104 = vpack.c.b16 %v1040, %v1040
      %v1105 = vpack.c.b16 %v1041, %v1041
      %v1106 = vpack.c.b16 %v1042, %v1042
      %v1107 = vpack.c.b16 %v1043, %v1043
      %v1108 = vpack.c.b16 %v1044, %v1044
      %v1109 = vpack.c.b16 %v1045, %v1045
      %v1110 = vpack.c.b16 %v1046, %v1046
      %v1111 = vpack.c.b16 %v1047, %v1047
      %v1112 = vpack.c.b16 %v1048, %v1048
      %v1113 = vpack.c.b16 %v1049, %v1049
      %v1114 = vpack.c.b16 %v1050, %v1050
      %v1115 = vpack.c.b16 %v1051, %v1051
      %v1116 = vpack.c.b16 %v1052, %v1052
      %v1117 = vpack.c.b16 %v1053, %v1053
      %v1118 = vpack.c.b16 %v1054, %v1054
      %v1119 = vpack.c.b16 %v1055, %v1055
      %v1120 = vpack.c.b16 %v1056, %v1056
      %v1121 = vpack.c.b16 %v1057, %v1057
      %v1122 = vpack.c.b16 %v1058, %v1058
      %v1123 = vpack.c.b16 %v1059, %v1059
      %v1124 = vpack.c.b16 %v1060, %v1060
      %v1125 = vpack.c.b16 %v1061, %v1061
      %v1126 = vpack.c.b16 %v1062, %v1062
      %v1127 = vpack.c.b16 %v1063, %v1063
      %v1128 = vpack.c.b16 %v1064, %v1064
      %v1129 = vpack.c.b16 %v1065, %v1065
      %v1130 = vpack.c.b16 %v1066, %v1066
      %v1131 = vpack.c.b16 %v1067, %v1067
      %v1132 = vpack.c.b16 %v1068, %v1068
      %v1133 = vpack.c.b16 %v1069, %v1069
      %v1134 = vpack.c.b16 %v1070, %v1070
      %v1135 = vpack.c.b16 %v1071, %v1071
      %v1136 = vpack.c.b16 %v1072, %v1072
      %v1137 = vpack.c.b16 %v1073, %v1073
      %v1138 = vpack.c.b16 %v1074, %v1074
      %v1139 = vpack.c.b16 %v1075, %v1075
      %v1140 = vpack.c.b16 %v1076, %v1076
      %1205 = vst [vmem:[%s145] sm:$0xf] %v1077
      %1206 = vst [vmem:[%s145 + $0x4] sm:$0xf] %v1078
      %1207 = vst [vmem:[%s145 + $0x8] sm:$0xf] %v1079
      %1208 = vst [vmem:[%s145 + $0xc] sm:$0xf] %v1080
      %1209 = vst [vmem:[%s145 + $0x10] sm:$0xf] %v1081
      %1210 = vst [vmem:[%s145 + $0x14] sm:$0xf] %v1082
      %1211 = vst [vmem:[%s145 + $0x18] sm:$0xf] %v1083
      %1212 = vst [vmem:[%s145 + $0x1c] sm:$0xf] %v1084
      %1213 = vst [vmem:[%s145 + $0x20] sm:$0xf] %v1085
      %1214 = vst [vmem:[%s145 + $0x24] sm:$0xf] %v1086
      %1215 = vst [vmem:[%s145 + $0x28] sm:$0xf] %v1087
      %1216 = vst [vmem:[%s145 + $0x2c] sm:$0xf] %v1088
      %1217 = vst [vmem:[%s145 + $0x30] sm:$0xf] %v1089
      %1218 = vst [vmem:[%s145 + $0x34] sm:$0xf] %v1090
      %1219 = vst [vmem:[%s145 + $0x38] sm:$0xf] %v1091
      %1220 = vst [vmem:[%s145 + $0x3c] sm:$0xf] %v1092
      %1221 = vst [vmem:[%s145 + $0x40] sm:$0xf] %v1093
      %1222 = vst [vmem:[%s145 + $0x44] sm:$0xf] %v1094
      %1223 = vst [vmem:[%s145 + $0x48] sm:$0xf] %v1095
      %1224 = vst [vmem:[%s145 + $0x4c] sm:$0xf] %v1096
      %1225 = vst [vmem:[%s145 + $0x50] sm:$0xf] %v1097
      %1226 = vst [vmem:[%s145 + $0x54] sm:$0xf] %v1098
      %1227 = vst [vmem:[%s145 + $0x58] sm:$0xf] %v1099
      %1228 = vst [vmem:[%s145 + $0x5c] sm:$0xf] %v1100
      %1229 = vst [vmem:[%s145 + $0x60] sm:$0xf] %v1101
      %1230 = vst [vmem:[%s145 + $0x64] sm:$0xf] %v1102
      %1231 = vst [vmem:[%s145 + $0x68] sm:$0xf] %v1103
      %1232 = vst [vmem:[%s145 + $0x6c] sm:$0xf] %v1104
      %1233 = vst [vmem:[%s145 + $0x70] sm:$0xf] %v1105
      %1234 = vst [vmem:[%s145 + $0x74] sm:$0xf] %v1106
      %1235 = vst [vmem:[%s145 + $0x78] sm:$0xf] %v1107
      %1236 = vst [vmem:[%s145 + $0x7c] sm:$0xf] %v1108
      %1237 = vst [vmem:[%s145 + $0x80] sm:$0xf] %v1109
      %1238 = vst [vmem:[%s145 + $0x84] sm:$0xf] %v1110
      %1239 = vst [vmem:[%s145 + $0x88] sm:$0xf] %v1111
      %1240 = vst [vmem:[%s145 + $0x8c] sm:$0xf] %v1112
      %1241 = vst [vmem:[%s145 + $0x90] sm:$0xf] %v1113
      %1242 = vst [vmem:[%s145 + $0x94] sm:$0xf] %v1114
      %1243 = vst [vmem:[%s145 + $0x98] sm:$0xf] %v1115
      %1244 = vst [vmem:[%s145 + $0x9c] sm:$0xf] %v1116
      %1245 = vst [vmem:[%s145 + $0xa0] sm:$0xf] %v1117
      %1246 = vst [vmem:[%s145 + $0xa4] sm:$0xf] %v1118
      %1247 = vst [vmem:[%s145 + $0xa8] sm:$0xf] %v1119
      %1248 = vst [vmem:[%s145 + $0xac] sm:$0xf] %v1120
      %1249 = vst [vmem:[%s145 + $0xb0] sm:$0xf] %v1121
      %1250 = vst [vmem:[%s145 + $0xb4] sm:$0xf] %v1122
      %1251 = vst [vmem:[%s145 + $0xb8] sm:$0xf] %v1123
      %1252 = vst [vmem:[%s145 + $0xbc] sm:$0xf] %v1124
      %1253 = vst [vmem:[%s145 + $0xc0] sm:$0xf] %v1125
      %1254 = vst [vmem:[%s145 + $0xc4] sm:$0xf] %v1126
      %1255 = vst [vmem:[%s145 + $0xc8] sm:$0xf] %v1127
      %1256 = vst [vmem:[%s145 + $0xcc] sm:$0xf] %v1128
      %1257 = vst [vmem:[%s145 + $0xd0] sm:$0xf] %v1129
      %1258 = vst [vmem:[%s145 + $0xd4] sm:$0xf] %v1130
      %1259 = vst [vmem:[%s145 + $0xd8] sm:$0xf] %v1131
      %1260 = vst [vmem:[%s145 + $0xdc] sm:$0xf] %v1132
      %1261 = vst [vmem:[%s145 + $0xe0] sm:$0xf] %v1133
      %1262 = vst [vmem:[%s145 + $0xe4] sm:$0xf] %v1134
      %1263 = vst [vmem:[%s145 + $0xe8] sm:$0xf] %v1135
      %1264 = vst [vmem:[%s145 + $0xec] sm:$0xf] %v1136
      %1265 = vst [vmem:[%s145 + $0xf0] sm:$0xf] %v1137
      %1266 = vst [vmem:[%s145 + $0xf4] sm:$0xf] %v1138
      %1267 = vst [vmem:[%s145 + $0xf8] sm:$0xf] %v1139
      %1268 = vst [vmem:[%s145 + $0xfc] sm:$0xf] %v1140
      %s1269 = smul.u32 64, %s13
      %p1270 = scmp.lt.s32.totalorder %s1269, 255
      %s1271 = scalar_select %p1270, %s1269, 255
      %s1272 = smul.addr %s1271, 4
      %s1273 = scalar_lea.vmem %s2, %s1272
      // Predicated region
      $region29: #{domain_classifier_forward.8} parent=27 // pred_check
        %p1274 = pneg %p78
      $region30: #{domain_classifier_forward.8} parent=27 // pred_check_branch
        %1276 = sbr.rel (%p1274) target = $region32
      $region31: #{domain_classifier_forward.8} parent=27 // pred_region
        %s1277 = smul.u32 64, %s13
      $region32: #{domain_classifier_forward.8} parent=27 // pred_fallthru
        _
    $region28: #{domain_classifier_forward.8} parent=5 // pred_fallthru
      _
    %p1278 = scmp.le.s32.totalorder 2, %s8
    // Predicated region
    $region33: #{domain_classifier_forward.8} parent=5 // pred_check
      %p1279 = pneg %p1278
    $region34: #{domain_classifier_forward.8} parent=5 // pred_check_branch
      %1281 = sbr.rel (%p1279) target = $region36
    $region35: #{domain_classifier_forward.8} parent=5 // pred_region
      %s1282 = ssub.s32 %s8, 2
      // Predicated region
      $region37: #{domain_classifier_forward.8} parent=35 // pred_check
        %p1283 = pneg %p84
      $region38: #{domain_classifier_forward.8} parent=35 // pred_check_branch
        %1285 = sbr.rel (%p1283) target = $region40
      $region39: #{domain_classifier_forward.8} parent=35 // pred_region
        %s1286 = smul.u32 64, %s14
        %p1287 = scmp.lt.s32.totalorder %s1286, 255
        %s1288 = scalar_select %p1287, %s1286, 255
        %s1289 = smul.addr %s1288, 4
        %s1290 = scalar_lea.vmem %s2, %s1289
      $region40: #{domain_classifier_forward.8} parent=35 // pred_fallthru
        _
    $region36: #{domain_classifier_forward.8} parent=5 // pred_fallthru
      _
  $region6: #{domain_classifier_forward.8} parent=0 // loop_footer
    %s12 = sadd.s32 1, %s8
  $region7: #{domain_classifier_forward.8} parent=0 // loop_footer_branch
    %7 = sbr.rel target = $region3
  $region8: #{domain_classifier_forward.8} parent=0 // loop_exit
    _

// kernel: domain_classifier_forward.10
$region0: #{domain_classifier_forward.10}
  #allocation0 [shape = 'u32[]', space=smem, size = 0x4, offset = 0x4, fixed_abs, tag = 'smem constant byte address 0x4 - core index']
  #allocation1 [shape = 'u32[144,128]{1,0:T(1,128)}', space=vmem, size = 0x12000, scoped, tag = 'internal scratch']
  %s0 = inlined_call_operand.vmem [shape: bf16[512,128], index: 0, kind: input, shape index: {}]
  %s1 = inlined_call_operand.vmem [shape: f32[1,128], index: 1, kind: input, shape index: {}]
  %s2 = inlined_call_operand.vmem [shape: f32[1,128], index: 2, kind: input, shape index: {}]
  %s3 = inlined_call_operand.vmem [shape: bf16[512,128], index: 3, kind: output, shape index: {}]
  %s4 = sld [smem:[#allocation0]]
  $region22: #{domain_classifier_forward.10} parent=0
    _
  %s6 = ssub.s32 1, %s4
  %s7 = scalar_select 0, %s6, %s4
  // Predicated region
  $region2: #{domain_classifier_forward.10} parent=0 // pred_check
    _
  $region3: #{domain_classifier_forward.10} parent=0 // pred_check_branch
    %9 = sbr.rel (0) target = $region5
  $region4: #{domain_classifier_forward.10} parent=0 // pred_region
    _
  $region5: #{domain_classifier_forward.10} parent=0 // pred_fallthru
    _
  // Predicated region
  $region6: #{domain_classifier_forward.10} parent=0 // pred_check
    _
  $region7: #{domain_classifier_forward.10} parent=0 // pred_check_branch
    %11 = sbr.rel (0) target = $region9
  $region8: #{domain_classifier_forward.10} parent=0 // pred_region
    _
  $region9: #{domain_classifier_forward.10} parent=0 // pred_fallthru
    _
  // Predicated region
  $region10: #{domain_classifier_forward.10} parent=0 // pred_check
    _
  $region11: #{domain_classifier_forward.10} parent=0 // pred_check_branch
    %13 = sbr.rel (0) target = $region13
  $region12: #{domain_classifier_forward.10} parent=0 // pred_region
    _
  $region13: #{domain_classifier_forward.10} parent=0 // pred_fallthru
    _
  %v14 = vld [vmem:[%s0] sm:$0xf]
  %v15 = vld [vmem:[%s0 + $0x4] sm:$0xf]
  %v16 = vld [vmem:[%s0 + $0x8] sm:$0xf]
  %v17 = vld [vmem:[%s0 + $0xc] sm:$0xf]
  %v18 = vld [vmem:[%s0 + $0x10] sm:$0xf]
  %v19 = vld [vmem:[%s0 + $0x14] sm:$0xf]
  %v20 = vld [vmem:[%s0 + $0x18] sm:$0xf]
  %v21 = vld [vmem:[%s0 + $0x1c] sm:$0xf]
  %v22 = vld [vmem:[%s0 + $0x20] sm:$0xf]
  %v23 = vld [vmem:[%s0 + $0x24] sm:$0xf]
  %v24 = vld [vmem:[%s0 + $0x28] sm:$0xf]
  %v25 = vld [vmem:[%s0 + $0x2c] sm:$0xf]
  %v26 = vld [vmem:[%s0 + $0x30] sm:$0xf]
  %v27 = vld [vmem:[%s0 + $0x34] sm:$0xf]
  %v28 = vld [vmem:[%s0 + $0x38] sm:$0xf]
  %v29 = vld [vmem:[%s0 + $0x3c] sm:$0xf]
  %v30 = vld [vmem:[%s0 + $0x40] sm:$0xf]
  %v31 = vld [vmem:[%s0 + $0x44] sm:$0xf]
  %v32 = vld [vmem:[%s0 + $0x48] sm:$0xf]
  %v33 = vld [vmem:[%s0 + $0x4c] sm:$0xf]
  %v34 = vld [vmem:[%s0 + $0x50] sm:$0xf]
  %v35 = vld [vmem:[%s0 + $0x54] sm:$0xf]
  %v36 = vld [vmem:[%s0 + $0x58] sm:$0xf]
  %v37 = vld [vmem:[%s0 + $0x5c] sm:$0xf]
  %v38 = vld [vmem:[%s0 + $0x60] sm:$0xf]
  %v39 = vld [vmem:[%s0 + $0x64] sm:$0xf]
  %v40 = vld [vmem:[%s0 + $0x68] sm:$0xf]
  %v41 = vld [vmem:[%s0 + $0x6c] sm:$0xf]
  %v42 = vld [vmem:[%s0 + $0x70] sm:$0xf]
  %v43 = vld [vmem:[%s0 + $0x74] sm:$0xf]
  %v44 = vld [vmem:[%s0 + $0x78] sm:$0xf]
  %v45 = vld [vmem:[%s0 + $0x7c] sm:$0xf]
  %v46 = vld [vmem:[%s0 + $0x80] sm:$0xf]
  %v47 = vld [vmem:[%s0 + $0x84] sm:$0xf]
  %v48 = vld [vmem:[%s0 + $0x88] sm:$0xf]
  %v49 = vld [vmem:[%s0 + $0x8c] sm:$0xf]
  %v50 = vld [vmem:[%s0 + $0x90] sm:$0xf]
  %v51 = vld [vmem:[%s0 + $0x94] sm:$0xf]
  %v52 = vld [vmem:[%s0 + $0x98] sm:$0xf]
  %v53 = vld [vmem:[%s0 + $0x9c] sm:$0xf]
  %v54 = vld [vmem:[%s0 + $0xa0] sm:$0xf]
  %v55 = vld [vmem:[%s0 + $0xa4] sm:$0xf]
  %v56 = vld [vmem:[%s0 + $0xa8] sm:$0xf]
  %v57 = vld [vmem:[%s0 + $0xac] sm:$0xf]
  %v58 = vld [vmem:[%s0 + $0xb0] sm:$0xf]
  %v59 = vld [vmem:[%s0 + $0xb4] sm:$0xf]
  %v60 = vld [vmem:[%s0 + $0xb8] sm:$0xf]
  %v61 = vld [vmem:[%s0 + $0xbc] sm:$0xf]
  %v62 = vld [vmem:[%s0 + $0xc0] sm:$0xf]
  %v63 = vld [vmem:[%s0 + $0xc4] sm:$0xf]
  %v64 = vld [vmem:[%s0 + $0xc8] sm:$0xf]
  %v65 = vld [vmem:[%s0 + $0xcc] sm:$0xf]
  %v66 = vld [vmem:[%s0 + $0xd0] sm:$0xf]
  %v67 = vld [vmem:[%s0 + $0xd4] sm:$0xf]
  %v68 = vld [vmem:[%s0 + $0xd8] sm:$0xf]
  %v69 = vld [vmem:[%s0 + $0xdc] sm:$0xf]
  %v70 = vld [vmem:[%s0 + $0xe0] sm:$0xf]
  %v71 = vld [vmem:[%s0 + $0xe4] sm:$0xf]
  %v72 = vld [vmem:[%s0 + $0xe8] sm:$0xf]
  %v73 = vld [vmem:[%s0 + $0xec] sm:$0xf]
  %v74 = vld [vmem:[%s0 + $0xf0] sm:$0xf]
  %v75 = vld [vmem:[%s0 + $0xf4] sm:$0xf]
  %v76 = vld [vmem:[%s0 + $0xf8] sm:$0xf]
  %v77 = vld [vmem:[%s0 + $0xfc] sm:$0xf]
  %v78 = vunpack.c.l.bf16 %v14
  %v79 = vunpack.c.l.bf16 %v15
  %v80 = vunpack.c.l.bf16 %v16
  %v81 = vunpack.c.l.bf16 %v17
  %v82 = vunpack.c.l.bf16 %v18
  %v83 = vunpack.c.l.bf16 %v19
  %v84 = vunpack.c.l.bf16 %v20
  %v85 = vunpack.c.l.bf16 %v21
  %v86 = vunpack.c.l.bf16 %v22
  %v87 = vunpack.c.l.bf16 %v23
  %v88 = vunpack.c.l.bf16 %v24
  %v89 = vunpack.c.l.bf16 %v25
  %v90 = vunpack.c.l.bf16 %v26
  %v91 = vunpack.c.l.bf16 %v27
  %v92 = vunpack.c.l.bf16 %v28
  %v93 = vunpack.c.l.bf16 %v29
  %v94 = vunpack.c.l.bf16 %v30
  %v95 = vunpack.c.l.bf16 %v31
  %v96 = vunpack.c.l.bf16 %v32
  %v97 = vunpack.c.l.bf16 %v33
  %v98 = vunpack.c.l.bf16 %v34
  %v99 = vunpack.c.l.bf16 %v35
  %v100 = vunpack.c.l.bf16 %v36
  %v101 = vunpack.c.l.bf16 %v37
  %v102 = vunpack.c.l.bf16 %v38
  %v103 = vunpack.c.l.bf16 %v39
  %v104 = vunpack.c.l.bf16 %v40
  %v105 = vunpack.c.l.bf16 %v41
  %v106 = vunpack.c.l.bf16 %v42
  %v107 = vunpack.c.l.bf16 %v43
  %v108 = vunpack.c.l.bf16 %v44
  %v109 = vunpack.c.l.bf16 %v45
  %v110 = vunpack.c.l.bf16 %v46
  %v111 = vunpack.c.l.bf16 %v47
  %v112 = vunpack.c.l.bf16 %v48
  %v113 = vunpack.c.l.bf16 %v49
  %v114 = vunpack.c.l.bf16 %v50
  %v115 = vunpack.c.l.bf16 %v51
  %v116 = vunpack.c.l.bf16 %v52
  %v117 = vunpack.c.l.bf16 %v53
  %v118 = vunpack.c.l.bf16 %v54
  %v119 = vunpack.c.l.bf16 %v55
  %v120 = vunpack.c.l.bf16 %v56
  %v121 = vunpack.c.l.bf16 %v57
  %v122 = vunpack.c.l.bf16 %v58
  %v123 = vunpack.c.l.bf16 %v59
  %v124 = vunpack.c.l.bf16 %v60
  %v125 = vunpack.c.l.bf16 %v61
  %v126 = vunpack.c.l.bf16 %v62
  %v127 = vunpack.c.l.bf16 %v63
  %v128 = vunpack.c.l.bf16 %v64
  %v129 = vunpack.c.l.bf16 %v65
  %v130 = vunpack.c.l.bf16 %v66
  %v131 = vunpack.c.l.bf16 %v67
  %v132 = vunpack.c.l.bf16 %v68
  %v133 = vunpack.c.l.bf16 %v69
  %v134 = vunpack.c.l.bf16 %v70
  %v135 = vunpack.c.l.bf16 %v71
  %v136 = vunpack.c.l.bf16 %v72
  %v137 = vunpack.c.l.bf16 %v73
  %v138 = vunpack.c.l.bf16 %v74
  %v139 = vunpack.c.l.bf16 %v75
  %v140 = vunpack.c.l.bf16 %v76
  %v141 = vunpack.c.l.bf16 %v77
  %v142 = vld [vmem:[%s1] sm:$0x1]
  %v144 = vlaneseq
  %v145 = vshrl.u32 %v144, 7
  %v146 = vsub.s32 0, %v145
  %v147 = vrot.slane %v142, %v146
  %v149 = vmul.f32 %v78, %v147
  %v150 = vmul.f32 %v79, %v147
  %v151 = vmul.f32 %v80, %v147
  %v152 = vmul.f32 %v81, %v147
  %v153 = vmul.f32 %v82, %v147
  %v154 = vmul.f32 %v83, %v147
  %v155 = vmul.f32 %v84, %v147
  %v156 = vmul.f32 %v85, %v147
  %v157 = vmul.f32 %v86, %v147
  %v158 = vmul.f32 %v87, %v147
  %v159 = vmul.f32 %v88, %v147
  %v160 = vmul.f32 %v89, %v147
  %v161 = vmul.f32 %v90, %v147
  %v162 = vmul.f32 %v91, %v147
  %v163 = vmul.f32 %v92, %v147
  %v164 = vmul.f32 %v93, %v147
  %v165 = vmul.f32 %v94, %v147
  %v166 = vmul.f32 %v95, %v147
  %v167 = vmul.f32 %v96, %v147
  %v168 = vmul.f32 %v97, %v147
  %v169 = vmul.f32 %v98, %v147
  %v170 = vmul.f32 %v99, %v147
  %v171 = vmul.f32 %v100, %v147
  %v172 = vmul.f32 %v101, %v147
  %v173 = vmul.f32 %v102, %v147
  %v174 = vmul.f32 %v103, %v147
  %v175 = vmul.f32 %v104, %v147
  %v176 = vmul.f32 %v105, %v147
  %v177 = vmul.f32 %v106, %v147
  %v178 = vmul.f32 %v107, %v147
  %v179 = vmul.f32 %v108, %v147
  %v180 = vmul.f32 %v109, %v147
  %v181 = vmul.f32 %v110, %v147
  %v182 = vmul.f32 %v111, %v147
  %v183 = vmul.f32 %v112, %v147
  %v184 = vmul.f32 %v113, %v147
  %v185 = vmul.f32 %v114, %v147
  %v186 = vmul.f32 %v115, %v147
  %v187 = vmul.f32 %v116, %v147
  %v188 = vmul.f32 %v117, %v147
  %v189 = vmul.f32 %v118, %v147
  %v190 = vmul.f32 %v119, %v147
  %v191 = vmul.f32 %v120, %v147
  %v192 = vmul.f32 %v121, %v147
  %v193 = vmul.f32 %v122, %v147
  %v194 = vmul.f32 %v123, %v147
  %v195 = vmul.f32 %v124, %v147
  %v196 = vmul.f32 %v125, %v147
  %v197 = vmul.f32 %v126, %v147
  %v198 = vmul.f32 %v127, %v147
  %v199 = vmul.f32 %v128, %v147
  %v200 = vmul.f32 %v129, %v147
  %v201 = vmul.f32 %v130, %v147
  %v202 = vmul.f32 %v131, %v147
  %v203 = vmul.f32 %v132, %v147
  %v204 = vmul.f32 %v133, %v147
  %v205 = vmul.f32 %v134, %v147
  %v206 = vmul.f32 %v135, %v147
  %v207 = vmul.f32 %v136, %v147
  %v208 = vmul.f32 %v137, %v147
  %v209 = vmul.f32 %v138, %v147
  %v210 = vmul.f32 %v139, %v147
  %v211 = vmul.f32 %v140, %v147
  %v212 = vmul.f32 %v141, %v147
  %v213 = vld [vmem:[%s2] sm:$0x1]
  %v215 = vlaneseq
  %v216 = vshrl.u32 %v215, 7
  %v217 = vsub.s32 0, %v216
  %v218 = vrot.slane %v213, %v217
  %v220 = vadd.f32 %v149, %v218
  %v221 = vadd.f32 %v150, %v218
  %v222 = vadd.f32 %v151, %v218
  %v223 = vadd.f32 %v152, %v218
  %v224 = vadd.f32 %v153, %v218
  %v225 = vadd.f32 %v154, %v218
  %v226 = vadd.f32 %v155, %v218
  %v227 = vadd.f32 %v156, %v218
  %v228 = vadd.f32 %v157, %v218
  %v229 = vadd.f32 %v158, %v218
  %v230 = vadd.f32 %v159, %v218
  %v231 = vadd.f32 %v160, %v218
  %v232 = vadd.f32 %v161, %v218
  %v233 = vadd.f32 %v162, %v218
  %v234 = vadd.f32 %v163, %v218
  %v235 = vadd.f32 %v164, %v218
  %v236 = vadd.f32 %v165, %v218
  %v237 = vadd.f32 %v166, %v218
  %v238 = vadd.f32 %v167, %v218
  %v239 = vadd.f32 %v168, %v218
  %v240 = vadd.f32 %v169, %v218
  %v241 = vadd.f32 %v170, %v218
  %v242 = vadd.f32 %v171, %v218
  %v243 = vadd.f32 %v172, %v218
  %v244 = vadd.f32 %v173, %v218
  %v245 = vadd.f32 %v174, %v218
  %v246 = vadd.f32 %v175, %v218
  %v247 = vadd.f32 %v176, %v218
  %v248 = vadd.f32 %v177, %v218
  %v249 = vadd.f32 %v178, %v218
  %v250 = vadd.f32 %v179, %v218
  %v251 = vadd.f32 %v180, %v218
  %v252 = vadd.f32 %v181, %v218
  %v253 = vadd.f32 %v182, %v218
  %v254 = vadd.f32 %v183, %v218
  %v255 = vadd.f32 %v184, %v218
  %v256 = vadd.f32 %v185, %v218
  %v257 = vadd.f32 %v186, %v218
  %v258 = vadd.f32 %v187, %v218
  %v259 = vadd.f32 %v188, %v218
  %v260 = vadd.f32 %v189, %v218
  %v261 = vadd.f32 %v190, %v218
  %v262 = vadd.f32 %v191, %v218
  %v263 = vadd.f32 %v192, %v218
  %v264 = vadd.f32 %v193, %v218
  %v265 = vadd.f32 %v194, %v218
  %v266 = vadd.f32 %v195, %v218
  %v267 = vadd.f32 %v196, %v218
  %v268 = vadd.f32 %v197, %v218
  %v269 = vadd.f32 %v198, %v218
  %v270 = vadd.f32 %v199, %v218
  %v271 = vadd.f32 %v200, %v218
  %v272 = vadd.f32 %v201, %v218
  %v273 = vadd.f32 %v202, %v218
  %v274 = vadd.f32 %v203, %v218
  %v275 = vadd.f32 %v204, %v218
  %v276 = vadd.f32 %v205, %v218
  %v277 = vadd.f32 %v206, %v218
  %v278 = vadd.f32 %v207, %v218
  %v279 = vadd.f32 %v208, %v218
  %v280 = vadd.f32 %v209, %v218
  %v281 = vadd.f32 %v210, %v218
  %v282 = vadd.f32 %v211, %v218
  %v283 = vadd.f32 %v212, %v218
  %vm284 = vcmp.gt.f32.partialorder %v220, 0.0
  %vm285 = vcmp.gt.f32.partialorder %v221, 0.0
  %vm286 = vcmp.gt.f32.partialorder %v222, 0.0
  %vm287 = vcmp.gt.f32.partialorder %v223, 0.0
  %vm288 = vcmp.gt.f32.partialorder %v224, 0.0
  %vm289 = vcmp.gt.f32.partialorder %v225, 0.0
  %vm290 = vcmp.gt.f32.partialorder %v226, 0.0
  %vm291 = vcmp.gt.f32.partialorder %v227, 0.0
  %vm292 = vcmp.gt.f32.partialorder %v228, 0.0
  %vm293 = vcmp.gt.f32.partialorder %v229, 0.0
  %vm294 = vcmp.gt.f32.partialorder %v230, 0.0
  %vm295 = vcmp.gt.f32.partialorder %v231, 0.0
  %vm296 = vcmp.gt.f32.partialorder %v232, 0.0
  %vm297 = vcmp.gt.f32.partialorder %v233, 0.0
  %vm298 = vcmp.gt.f32.partialorder %v234, 0.0
  %vm299 = vcmp.gt.f32.partialorder %v235, 0.0
  %vm300 = vcmp.gt.f32.partialorder %v236, 0.0
  %vm301 = vcmp.gt.f32.partialorder %v237, 0.0
  %vm302 = vcmp.gt.f32.partialorder %v238, 0.0
  %vm303 = vcmp.gt.f32.partialorder %v239, 0.0
  %vm304 = vcmp.gt.f32.partialorder %v240, 0.0
  %vm305 = vcmp.gt.f32.partialorder %v241, 0.0
  %vm306 = vcmp.gt.f32.partialorder %v242, 0.0
  %vm307 = vcmp.gt.f32.partialorder %v243, 0.0
  %vm308 = vcmp.gt.f32.partialorder %v244, 0.0
  %vm309 = vcmp.gt.f32.partialorder %v245, 0.0
  %vm310 = vcmp.gt.f32.partialorder %v246, 0.0
  %vm311 = vcmp.gt.f32.partialorder %v247, 0.0
  %vm312 = vcmp.gt.f32.partialorder %v248, 0.0
  %vm313 = vcmp.gt.f32.partialorder %v249, 0.0
  %vm314 = vcmp.gt.f32.partialorder %v250, 0.0
  %vm315 = vcmp.gt.f32.partialorder %v251, 0.0
  %vm316 = vcmp.gt.f32.partialorder %v252, 0.0
  %vm317 = vcmp.gt.f32.partialorder %v253, 0.0
  %vm318 = vcmp.gt.f32.partialorder %v254, 0.0
  %vm319 = vcmp.gt.f32.partialorder %v255, 0.0
  %vm320 = vcmp.gt.f32.partialorder %v256, 0.0
  %vm321 = vcmp.gt.f32.partialorder %v257, 0.0
  %vm322 = vcmp.gt.f32.partialorder %v258, 0.0
  %vm323 = vcmp.gt.f32.partialorder %v259, 0.0
  %vm324 = vcmp.gt.f32.partialorder %v260, 0.0
  %vm325 = vcmp.gt.f32.partialorder %v261, 0.0
  %vm326 = vcmp.gt.f32.partialorder %v262, 0.0
  %vm327 = vcmp.gt.f32.partialorder %v263, 0.0
  %vm328 = vcmp.gt.f32.partialorder %v264, 0.0
  %vm329 = vcmp.gt.f32.partialorder %v265, 0.0
  %vm330 = vcmp.gt.f32.partialorder %v266, 0.0
  %vm331 = vcmp.gt.f32.partialorder %v267, 0.0
  %vm332 = vcmp.gt.f32.partialorder %v268, 0.0
  %vm333 = vcmp.gt.f32.partialorder %v269, 0.0
  %vm334 = vcmp.gt.f32.partialorder %v270, 0.0
  %vm335 = vcmp.gt.f32.partialorder %v271, 0.0
  %vm336 = vcmp.gt.f32.partialorder %v272, 0.0
  %vm337 = vcmp.gt.f32.partialorder %v273, 0.0
  %vm338 = vcmp.gt.f32.partialorder %v274, 0.0
  %vm339 = vcmp.gt.f32.partialorder %v275, 0.0
  %vm340 = vcmp.gt.f32.partialorder %v276, 0.0
  %vm341 = vcmp.gt.f32.partialorder %v277, 0.0
  %vm342 = vcmp.gt.f32.partialorder %v278, 0.0
  %vm343 = vcmp.gt.f32.partialorder %v279, 0.0
  %vm344 = vcmp.gt.f32.partialorder %v280, 0.0
  %vm345 = vcmp.gt.f32.partialorder %v281, 0.0
  %vm346 = vcmp.gt.f32.partialorder %v282, 0.0
  %vm347 = vcmp.gt.f32.partialorder %v283, 0.0
  %v348 = vmul.f32 %v220, 0.2
  %v349 = vmul.f32 %v221, 0.2
  %v350 = vmul.f32 %v222, 0.2
  %v351 = vmul.f32 %v223, 0.2
  %v352 = vmul.f32 %v224, 0.2
  %v353 = vmul.f32 %v225, 0.2
  %v354 = vmul.f32 %v226, 0.2
  %v355 = vmul.f32 %v227, 0.2
  %v356 = vmul.f32 %v228, 0.2
  %v357 = vmul.f32 %v229, 0.2
  %v358 = vmul.f32 %v230, 0.2
  %v359 = vmul.f32 %v231, 0.2
  %v360 = vmul.f32 %v232, 0.2
  %v361 = vmul.f32 %v233, 0.2
  %v362 = vmul.f32 %v234, 0.2
  %v363 = vmul.f32 %v235, 0.2
  %v364 = vmul.f32 %v236, 0.2
  %v365 = vmul.f32 %v237, 0.2
  %v366 = vmul.f32 %v238, 0.2
  %v367 = vmul.f32 %v239, 0.2
  %v368 = vmul.f32 %v240, 0.2
  %v369 = vmul.f32 %v241, 0.2
  %v370 = vmul.f32 %v242, 0.2
  %v371 = vmul.f32 %v243, 0.2
  %v372 = vmul.f32 %v244, 0.2
  %v373 = vmul.f32 %v245, 0.2
  %v374 = vmul.f32 %v246, 0.2
  %v375 = vmul.f32 %v247, 0.2
  %v376 = vmul.f32 %v248, 0.2
  %v377 = vmul.f32 %v249, 0.2
  %v378 = vmul.f32 %v250, 0.2
  %v379 = vmul.f32 %v251, 0.2
  %v380 = vmul.f32 %v252, 0.2
  %v381 = vmul.f32 %v253, 0.2
  %v382 = vmul.f32 %v254, 0.2
  %v383 = vmul.f32 %v255, 0.2
  %v384 = vmul.f32 %v256, 0.2
  %v385 = vmul.f32 %v257, 0.2
  %v386 = vmul.f32 %v258, 0.2
  %v387 = vmul.f32 %v259, 0.2
  %v388 = vmul.f32 %v260, 0.2
  %v389 = vmul.f32 %v261, 0.2
  %v390 = vmul.f32 %v262, 0.2
  %v391 = vmul.f32 %v263, 0.2
  %v392 = vmul.f32 %v264, 0.2
  %v393 = vmul.f32 %v265, 0.2
  %v394 = vmul.f32 %v266, 0.2
  %v395 = vmul.f32 %v267, 0.2
  %v396 = vmul.f32 %v268, 0.2
  %v397 = vmul.f32 %v269, 0.2
  %v398 = vmul.f32 %v270, 0.2
  %v399 = vmul.f32 %v271, 0.2
  %v400 = vmul.f32 %v272, 0.2
  %v401 = vmul.f32 %v273, 0.2
  %v402 = vmul.f32 %v274, 0.2
  %v403 = vmul.f32 %v275, 0.2
  %v404 = vmul.f32 %v276, 0.2
  %v405 = vmul.f32 %v277, 0.2
  %v406 = vmul.f32 %v278, 0.2
  %v407 = vmul.f32 %v279, 0.2
  %v408 = vmul.f32 %v280, 0.2
  %v409 = vmul.f32 %v281, 0.2
  %v410 = vmul.f32 %v282, 0.2
  %v411 = vmul.f32 %v283, 0.2
  %v412 = vsel %vm284, %v220, %v348
  %v413 = vsel %vm285, %v221, %v349
  %v414 = vsel %vm286, %v222, %v350
  %v415 = vsel %vm287, %v223, %v351
  %v416 = vsel %vm288, %v224, %v352
  %v417 = vsel %vm289, %v225, %v353
  %v418 = vsel %vm290, %v226, %v354
  %v419 = vsel %vm291, %v227, %v355
  %v420 = vsel %vm292, %v228, %v356
  %v421 = vsel %vm293, %v229, %v357
  %v422 = vsel %vm294, %v230, %v358
  %v423 = vsel %vm295, %v231, %v359
  %v424 = vsel %vm296, %v232, %v360
  %v425 = vsel %vm297, %v233, %v361
  %v426 = vsel %vm298, %v234, %v362
  %v427 = vsel %vm299, %v235, %v363
  %v428 = vsel %vm300, %v236, %v364
  %v429 = vsel %vm301, %v237, %v365
  %v430 = vsel %vm302, %v238, %v366
  %v431 = vsel %vm303, %v239, %v367
  %v432 = vsel %vm304, %v240, %v368
  %v433 = vsel %vm305, %v241, %v369
  %v434 = vsel %vm306, %v242, %v370
  %v435 = vsel %vm307, %v243, %v371
  %v436 = vsel %vm308, %v244, %v372
  %v437 = vsel %vm309, %v245, %v373
  %v438 = vsel %vm310, %v246, %v374
  %v439 = vsel %vm311, %v247, %v375
  %v440 = vsel %vm312, %v248, %v376
  %v441 = vsel %vm313, %v249, %v377
  %v442 = vsel %vm314, %v250, %v378
  %v443 = vsel %vm315, %v251, %v379
  %v444 = vsel %vm316, %v252, %v380
  %v445 = vsel %vm317, %v253, %v381
  %v446 = vsel %vm318, %v254, %v382
  %v447 = vsel %vm319, %v255, %v383
  %v448 = vsel %vm320, %v256, %v384
  %v449 = vsel %vm321, %v257, %v385
  %v450 = vsel %vm322, %v258, %v386
  %v451 = vsel %vm323, %v259, %v387
  %v452 = vsel %vm324, %v260, %v388
  %v453 = vsel %vm325, %v261, %v389
  %v454 = vsel %vm326, %v262, %v390
  %v455 = vsel %vm327, %v263, %v391
  %v456 = vsel %vm328, %v264, %v392
  %v457 = vsel %vm329, %v265, %v393
  %v458 = vsel %vm330, %v266, %v394
  %v459 = vsel %vm331, %v267, %v395
  %v460 = vsel %vm332, %v268, %v396
  %v461 = vsel %vm333, %v269, %v397
  %v462 = vsel %vm334, %v270, %v398
  %v463 = vsel %vm335, %v271, %v399
  %v464 = vsel %vm336, %v272, %v400
  %v465 = vsel %vm337, %v273, %v401
  %v466 = vsel %vm338, %v274, %v402
  %v467 = vsel %vm339, %v275, %v403
  %v468 = vsel %vm340, %v276, %v404
  %v469 = vsel %vm341, %v277, %v405
  %v470 = vsel %vm342, %v278, %v406
  %v471 = vsel %vm343, %v279, %v407
  %v472 = vsel %vm344, %v280, %v408
  %v473 = vsel %vm345, %v281, %v409
  %v474 = vsel %vm346, %v282, %v410
  %v475 = vsel %vm347, %v283, %v411
  %v476 = vpack.c.bf16 %v413, %v412
  %v477 = vpack.c.bf16 %v415, %v414
  %v478 = vpack.c.bf16 %v417, %v416
  %v479 = vpack.c.bf16 %v419, %v418
  %v480 = vpack.c.bf16 %v421, %v420
  %v481 = vpack.c.bf16 %v423, %v422
  %v482 = vpack.c.bf16 %v425, %v424
  %v483 = vpack.c.bf16 %v427, %v426
  %v484 = vpack.c.bf16 %v429, %v428
  %v485 = vpack.c.bf16 %v431, %v430
  %v486 = vpack.c.bf16 %v433, %v432
  %v487 = vpack.c.bf16 %v435, %v434
  %v488 = vpack.c.bf16 %v437, %v436
  %v489 = vpack.c.bf16 %v439, %v438
  %v490 = vpack.c.bf16 %v441, %v440
  %v491 = vpack.c.bf16 %v443, %v442
  %v492 = vpack.c.bf16 %v445, %v444
  %v493 = vpack.c.bf16 %v447, %v446
  %v494 = vpack.c.bf16 %v449, %v448
  %v495 = vpack.c.bf16 %v451, %v450
  %v496 = vpack.c.bf16 %v453, %v452
  %v497 = vpack.c.bf16 %v455, %v454
  %v498 = vpack.c.bf16 %v457, %v456
  %v499 = vpack.c.bf16 %v459, %v458
  %v500 = vpack.c.bf16 %v461, %v460
  %v501 = vpack.c.bf16 %v463, %v462
  %v502 = vpack.c.bf16 %v465, %v464
  %v503 = vpack.c.bf16 %v467, %v466
  %v504 = vpack.c.bf16 %v469, %v468
  %v505 = vpack.c.bf16 %v471, %v470
  %v506 = vpack.c.bf16 %v473, %v472
  %v507 = vpack.c.bf16 %v475, %v474
  %v540 = vunpack.c.l.b16 %v476
  %v541 = vunpack.c.h.b16 %v476
  %v542 = vunpack.c.l.b16 %v477
  %v543 = vunpack.c.h.b16 %v477
  %v544 = vunpack.c.l.b16 %v478
  %v545 = vunpack.c.h.b16 %v478
  %v546 = vunpack.c.l.b16 %v479
  %v547 = vunpack.c.h.b16 %v479
  %v548 = vunpack.c.l.b16 %v480
  %v549 = vunpack.c.h.b16 %v480
  %v550 = vunpack.c.l.b16 %v481
  %v551 = vunpack.c.h.b16 %v481
  %v552 = vunpack.c.l.b16 %v482
  %v553 = vunpack.c.h.b16 %v482
  %v554 = vunpack.c.l.b16 %v483
  %v555 = vunpack.c.h.b16 %v483
  %v556 = vunpack.c.l.b16 %v484
  %v557 = vunpack.c.h.b16 %v484
  %v558 = vunpack.c.l.b16 %v485
  %v559 = vunpack.c.h.b16 %v485
  %v560 = vunpack.c.l.b16 %v486
  %v561 = vunpack.c.h.b16 %v486
  %v562 = vunpack.c.l.b16 %v487
  %v563 = vunpack.c.h.b16 %v487
  %v564 = vunpack.c.l.b16 %v488
  %v565 = vunpack.c.h.b16 %v488
  %v566 = vunpack.c.l.b16 %v489
  %v567 = vunpack.c.h.b16 %v489
  %v568 = vunpack.c.l.b16 %v490
  %v569 = vunpack.c.h.b16 %v490
  %v570 = vunpack.c.l.b16 %v491
  %v571 = vunpack.c.h.b16 %v491
  %v572 = vunpack.c.l.b16 %v492
  %v573 = vunpack.c.h.b16 %v492
  %v574 = vunpack.c.l.b16 %v493
  %v575 = vunpack.c.h.b16 %v493
  %v576 = vunpack.c.l.b16 %v494
  %v577 = vunpack.c.h.b16 %v494
  %v578 = vunpack.c.l.b16 %v495
  %v579 = vunpack.c.h.b16 %v495
  %v580 = vunpack.c.l.b16 %v496
  %v581 = vunpack.c.h.b16 %v496
  %v582 = vunpack.c.l.b16 %v497
  %v583 = vunpack.c.h.b16 %v497
  %v584 = vunpack.c.l.b16 %v498
  %v585 = vunpack.c.h.b16 %v498
  %v586 = vunpack.c.l.b16 %v499
  %v587 = vunpack.c.h.b16 %v499
  %v588 = vunpack.c.l.b16 %v500
  %v589 = vunpack.c.h.b16 %v500
  %v590 = vunpack.c.l.b16 %v501
  %v591 = vunpack.c.h.b16 %v501
  %v592 = vunpack.c.l.b16 %v502
  %v593 = vunpack.c.h.b16 %v502
  %v594 = vunpack.c.l.b16 %v503
  %v595 = vunpack.c.h.b16 %v503
  %v596 = vunpack.c.l.b16 %v504
  %v597 = vunpack.c.h.b16 %v504
  %v598 = vunpack.c.l.b16 %v505
  %v599 = vunpack.c.h.b16 %v505
  %v600 = vunpack.c.l.b16 %v506
  %v601 = vunpack.c.h.b16 %v506
  %v602 = vunpack.c.l.b16 %v507
  %v603 = vunpack.c.h.b16 %v507
  %v604 = vpack.c.b16 %v540, %v540
  %v605 = vpack.c.b16 %v541, %v541
  %v606 = vpack.c.b16 %v542, %v542
  %v607 = vpack.c.b16 %v543, %v543
  %v608 = vpack.c.b16 %v544, %v544
  %v609 = vpack.c.b16 %v545, %v545
  %v610 = vpack.c.b16 %v546, %v546
  %v611 = vpack.c.b16 %v547, %v547
  %v612 = vpack.c.b16 %v548, %v548
  %v613 = vpack.c.b16 %v549, %v549
  %v614 = vpack.c.b16 %v550, %v550
  %v615 = vpack.c.b16 %v551, %v551
  %v616 = vpack.c.b16 %v552, %v552
  %v617 = vpack.c.b16 %v553, %v553
  %v618 = vpack.c.b16 %v554, %v554
  %v619 = vpack.c.b16 %v555, %v555
  %v620 = vpack.c.b16 %v556, %v556
  %v621 = vpack.c.b16 %v557, %v557
  %v622 = vpack.c.b16 %v558, %v558
  %v623 = vpack.c.b16 %v559, %v559
  %v624 = vpack.c.b16 %v560, %v560
  %v625 = vpack.c.b16 %v561, %v561
  %v626 = vpack.c.b16 %v562, %v562
  %v627 = vpack.c.b16 %v563, %v563
  %v628 = vpack.c.b16 %v564, %v564
  %v629 = vpack.c.b16 %v565, %v565
  %v630 = vpack.c.b16 %v566, %v566
  %v631 = vpack.c.b16 %v567, %v567
  %v632 = vpack.c.b16 %v568, %v568
  %v633 = vpack.c.b16 %v569, %v569
  %v634 = vpack.c.b16 %v570, %v570
  %v635 = vpack.c.b16 %v571, %v571
  %v636 = vpack.c.b16 %v572, %v572
  %v637 = vpack.c.b16 %v573, %v573
  %v638 = vpack.c.b16 %v574, %v574
  %v639 = vpack.c.b16 %v575, %v575
  %v640 = vpack.c.b16 %v576, %v576
  %v641 = vpack.c.b16 %v577, %v577
  %v642 = vpack.c.b16 %v578, %v578
  %v643 = vpack.c.b16 %v579, %v579
  %v644 = vpack.c.b16 %v580, %v580
  %v645 = vpack.c.b16 %v581, %v581
  %v646 = vpack.c.b16 %v582, %v582
  %v647 = vpack.c.b16 %v583, %v583
  %v648 = vpack.c.b16 %v584, %v584
  %v649 = vpack.c.b16 %v585, %v585
  %v650 = vpack.c.b16 %v586, %v586
  %v651 = vpack.c.b16 %v587, %v587
  %v652 = vpack.c.b16 %v588, %v588
  %v653 = vpack.c.b16 %v589, %v589
  %v654 = vpack.c.b16 %v590, %v590
  %v655 = vpack.c.b16 %v591, %v591
  %v656 = vpack.c.b16 %v592, %v592
  %v657 = vpack.c.b16 %v593, %v593
  %v658 = vpack.c.b16 %v594, %v594
  %v659 = vpack.c.b16 %v595, %v595
  %v660 = vpack.c.b16 %v596, %v596
  %v661 = vpack.c.b16 %v597, %v597
  %v662 = vpack.c.b16 %v598, %v598
  %v663 = vpack.c.b16 %v599, %v599
  %v664 = vpack.c.b16 %v600, %v600
  %v665 = vpack.c.b16 %v601, %v601
  %v666 = vpack.c.b16 %v602, %v602
  %v667 = vpack.c.b16 %v603, %v603
  %732 = vst [vmem:[%s3] sm:$0xf] %v604
  %733 = vst [vmem:[%s3 + $0x4] sm:$0xf] %v605
  %734 = vst [vmem:[%s3 + $0x8] sm:$0xf] %v606
  %735 = vst [vmem:[%s3 + $0xc] sm:$0xf] %v607
  %736 = vst [vmem:[%s3 + $0x10] sm:$0xf] %v608
  %737 = vst [vmem:[%s3 + $0x14] sm:$0xf] %v609
  %738 = vst [vmem:[%s3 + $0x18] sm:$0xf] %v610
  %739 = vst [vmem:[%s3 + $0x1c] sm:$0xf] %v611
  %740 = vst [vmem:[%s3 + $0x20] sm:$0xf] %v612
  %741 = vst [vmem:[%s3 + $0x24] sm:$0xf] %v613
  %742 = vst [vmem:[%s3 + $0x28] sm:$0xf] %v614
  %743 = vst [vmem:[%s3 + $0x2c] sm:$0xf] %v615
  %744 = vst [vmem:[%s3 + $0x30] sm:$0xf] %v616
  %745 = vst [vmem:[%s3 + $0x34] sm:$0xf] %v617
  %746 = vst [vmem:[%s3 + $0x38] sm:$0xf] %v618
  %747 = vst [vmem:[%s3 + $0x3c] sm:$0xf] %v619
  %748 = vst [vmem:[%s3 + $0x40] sm:$0xf] %v620
  %749 = vst [vmem:[%s3 + $0x44] sm:$0xf] %v621
  %750 = vst [vmem:[%s3 + $0x48] sm:$0xf] %v622
  %751 = vst [vmem:[%s3 + $0x4c] sm:$0xf] %v623
  %752 = vst [vmem:[%s3 + $0x50] sm:$0xf] %v624
  %753 = vst [vmem:[%s3 + $0x54] sm:$0xf] %v625
  %754 = vst [vmem:[%s3 + $0x58] sm:$0xf] %v626
  %755 = vst [vmem:[%s3 + $0x5c] sm:$0xf] %v627
  %756 = vst [vmem:[%s3 + $0x60] sm:$0xf] %v628
  %757 = vst [vmem:[%s3 + $0x64] sm:$0xf] %v629
  %758 = vst [vmem:[%s3 + $0x68] sm:$0xf] %v630
  %759 = vst [vmem:[%s3 + $0x6c] sm:$0xf] %v631
  %760 = vst [vmem:[%s3 + $0x70] sm:$0xf] %v632
  %761 = vst [vmem:[%s3 + $0x74] sm:$0xf] %v633
  %762 = vst [vmem:[%s3 + $0x78] sm:$0xf] %v634
  %763 = vst [vmem:[%s3 + $0x7c] sm:$0xf] %v635
  %764 = vst [vmem:[%s3 + $0x80] sm:$0xf] %v636
  %765 = vst [vmem:[%s3 + $0x84] sm:$0xf] %v637
  %766 = vst [vmem:[%s3 + $0x88] sm:$0xf] %v638
  %767 = vst [vmem:[%s3 + $0x8c] sm:$0xf] %v639
  %768 = vst [vmem:[%s3 + $0x90] sm:$0xf] %v640
  %769 = vst [vmem:[%s3 + $0x94] sm:$0xf] %v641
  %770 = vst [vmem:[%s3 + $0x98] sm:$0xf] %v642
  %771 = vst [vmem:[%s3 + $0x9c] sm:$0xf] %v643
  %772 = vst [vmem:[%s3 + $0xa0] sm:$0xf] %v644
  %773 = vst [vmem:[%s3 + $0xa4] sm:$0xf] %v645
  %774 = vst [vmem:[%s3 + $0xa8] sm:$0xf] %v646
  %775 = vst [vmem:[%s3 + $0xac] sm:$0xf] %v647
  %776 = vst [vmem:[%s3 + $0xb0] sm:$0xf] %v648
  %777 = vst [vmem:[%s3 + $0xb4] sm:$0xf] %v649
  %778 = vst [vmem:[%s3 + $0xb8] sm:$0xf] %v650
  %779 = vst [vmem:[%s3 + $0xbc] sm:$0xf] %v651
  %780 = vst [vmem:[%s3 + $0xc0] sm:$0xf] %v652
  %781 = vst [vmem:[%s3 + $0xc4] sm:$0xf] %v653
  %782 = vst [vmem:[%s3 + $0xc8] sm:$0xf] %v654
  %783 = vst [vmem:[%s3 + $0xcc] sm:$0xf] %v655
  %784 = vst [vmem:[%s3 + $0xd0] sm:$0xf] %v656
  %785 = vst [vmem:[%s3 + $0xd4] sm:$0xf] %v657
  %786 = vst [vmem:[%s3 + $0xd8] sm:$0xf] %v658
  %787 = vst [vmem:[%s3 + $0xdc] sm:$0xf] %v659
  %788 = vst [vmem:[%s3 + $0xe0] sm:$0xf] %v660
  %789 = vst [vmem:[%s3 + $0xe4] sm:$0xf] %v661
  %790 = vst [vmem:[%s3 + $0xe8] sm:$0xf] %v662
  %791 = vst [vmem:[%s3 + $0xec] sm:$0xf] %v663
  %792 = vst [vmem:[%s3 + $0xf0] sm:$0xf] %v664
  %793 = vst [vmem:[%s3 + $0xf4] sm:$0xf] %v665
  %794 = vst [vmem:[%s3 + $0xf8] sm:$0xf] %v666
  %795 = vst [vmem:[%s3 + $0xfc] sm:$0xf] %v667
  // Predicated region
  $region14: #{domain_classifier_forward.10} parent=0 // pred_check
    _
  $region15: #{domain_classifier_forward.10} parent=0 // pred_check_branch
    %797 = sbr.rel (0) target = $region17
  $region16: #{domain_classifier_forward.10} parent=0 // pred_region
    _
  $region17: #{domain_classifier_forward.10} parent=0 // pred_fallthru
    _
  // Predicated region
  $region18: #{domain_classifier_forward.10} parent=0 // pred_check
    _
  $region19: #{domain_classifier_forward.10} parent=0 // pred_check_branch
    %799 = sbr.rel (0) target = $region21
  $region20: #{domain_classifier_forward.10} parent=0 // pred_region
    _
  $region21: #{domain_classifier_forward.10} parent=0 // pred_fallthru
    _

// kernel: domain_classifier_forward.9
$region0: #{domain_classifier_forward.9}
  #allocation0 [shape = 'u32[]', space=smem, size = 0x4, offset = 0x4, fixed_abs, tag = 'smem constant byte address 0x4 - core index']
  #allocation1 [shape = 'u32[144,128]{1,0:T(1,128)}', space=vmem, size = 0x12000, scoped, tag = 'internal scratch']
  %s0 = inlined_call_operand.vmem [shape: bf16[512,128], index: 0, kind: input, shape index: {}]
  %s1 = inlined_call_operand.vmem [shape: bf16[128,128], index: 1, kind: input, shape index: {}]
  %s2 = inlined_call_operand.vmem [shape: bf16[512,128], index: 2, kind: output, shape index: {0}]
  %s3 = inlined_call_operand.vmem [shape: f32[1,1,128], index: 3, kind: output, shape index: {1}]
  %s4 = inlined_call_operand.vmem [shape: f32[1,1,128], index: 4, kind: output, shape index: {2}]
  %5 = xla_tuple %s2, %s3, %s4
  %s6 = sld [smem:[#allocation0]]
  $region34: #{domain_classifier_forward.9} parent=0
    _
  %s8 = ssub.s32 1, %s6
  %s9 = scalar_select 0, %s8, %s6
  // Predicated region
  $region2: #{domain_classifier_forward.9} parent=0 // pred_check
    _
  $region3: #{domain_classifier_forward.9} parent=0 // pred_check_branch
    %11 = sbr.rel (0) target = $region5
  $region4: #{domain_classifier_forward.9} parent=0 // pred_region
    _
  $region5: #{domain_classifier_forward.9} parent=0 // pred_fallthru
    _
  // Predicated region
  $region6: #{domain_classifier_forward.9} parent=0 // pred_check
    _
  $region7: #{domain_classifier_forward.9} parent=0 // pred_check_branch
    %13 = sbr.rel (0) target = $region9
  $region8: #{domain_classifier_forward.9} parent=0 // pred_region
    _
  $region9: #{domain_classifier_forward.9} parent=0 // pred_fallthru
    _
  %v15 = vld [vmem:[%s0] sm:$0xf]
  %v16 = vld [vmem:[%s0 + $0x4] sm:$0xf]
  %v17 = vld [vmem:[%s0 + $0x8] sm:$0xf]
  %v18 = vld [vmem:[%s0 + $0xc] sm:$0xf]
  %v19 = vld [vmem:[%s0 + $0x10] sm:$0xf]
  %v20 = vld [vmem:[%s0 + $0x14] sm:$0xf]
  %v21 = vld [vmem:[%s0 + $0x18] sm:$0xf]
  %v22 = vld [vmem:[%s0 + $0x1c] sm:$0xf]
  %v23 = vld [vmem:[%s0 + $0x20] sm:$0xf]
  %v24 = vld [vmem:[%s0 + $0x24] sm:$0xf]
  %v25 = vld [vmem:[%s0 + $0x28] sm:$0xf]
  %v26 = vld [vmem:[%s0 + $0x2c] sm:$0xf]
  %v27 = vld [vmem:[%s0 + $0x30] sm:$0xf]
  %v28 = vld [vmem:[%s0 + $0x34] sm:$0xf]
  %v29 = vld [vmem:[%s0 + $0x38] sm:$0xf]
  %v30 = vld [vmem:[%s0 + $0x3c] sm:$0xf]
  %v31 = vld [vmem:[%s0 + $0x40] sm:$0xf]
  %v32 = vld [vmem:[%s0 + $0x44] sm:$0xf]
  %v33 = vld [vmem:[%s0 + $0x48] sm:$0xf]
  %v34 = vld [vmem:[%s0 + $0x4c] sm:$0xf]
  %v35 = vld [vmem:[%s0 + $0x50] sm:$0xf]
  %v36 = vld [vmem:[%s0 + $0x54] sm:$0xf]
  %v37 = vld [vmem:[%s0 + $0x58] sm:$0xf]
  %v38 = vld [vmem:[%s0 + $0x5c] sm:$0xf]
  %v39 = vld [vmem:[%s0 + $0x60] sm:$0xf]
  %v40 = vld [vmem:[%s0 + $0x64] sm:$0xf]
  %v41 = vld [vmem:[%s0 + $0x68] sm:$0xf]
  %v42 = vld [vmem:[%s0 + $0x6c] sm:$0xf]
  %v43 = vld [vmem:[%s0 + $0x70] sm:$0xf]
  %v44 = vld [vmem:[%s0 + $0x74] sm:$0xf]
  %v45 = vld [vmem:[%s0 + $0x78] sm:$0xf]
  %v46 = vld [vmem:[%s0 + $0x7c] sm:$0xf]
  %v47 = vld [vmem:[%s0 + $0x80] sm:$0xf]
  %v48 = vld [vmem:[%s0 + $0x84] sm:$0xf]
  %v49 = vld [vmem:[%s0 + $0x88] sm:$0xf]
  %v50 = vld [vmem:[%s0 + $0x8c] sm:$0xf]
  %v51 = vld [vmem:[%s0 + $0x90] sm:$0xf]
  %v52 = vld [vmem:[%s0 + $0x94] sm:$0xf]
  %v53 = vld [vmem:[%s0 + $0x98] sm:$0xf]
  %v54 = vld [vmem:[%s0 + $0x9c] sm:$0xf]
  %v55 = vld [vmem:[%s0 + $0xa0] sm:$0xf]
  %v56 = vld [vmem:[%s0 + $0xa4] sm:$0xf]
  %v57 = vld [vmem:[%s0 + $0xa8] sm:$0xf]
  %v58 = vld [vmem:[%s0 + $0xac] sm:$0xf]
  %v59 = vld [vmem:[%s0 + $0xb0] sm:$0xf]
  %v60 = vld [vmem:[%s0 + $0xb4] sm:$0xf]
  %v61 = vld [vmem:[%s0 + $0xb8] sm:$0xf]
  %v62 = vld [vmem:[%s0 + $0xbc] sm:$0xf]
  %v63 = vld [vmem:[%s0 + $0xc0] sm:$0xf]
  %v64 = vld [vmem:[%s0 + $0xc4] sm:$0xf]
  %v65 = vld [vmem:[%s0 + $0xc8] sm:$0xf]
  %v66 = vld [vmem:[%s0 + $0xcc] sm:$0xf]
  %v67 = vld [vmem:[%s0 + $0xd0] sm:$0xf]
  %v68 = vld [vmem:[%s0 + $0xd4] sm:$0xf]
  %v69 = vld [vmem:[%s0 + $0xd8] sm:$0xf]
  %v70 = vld [vmem:[%s0 + $0xdc] sm:$0xf]
  %v71 = vld [vmem:[%s0 + $0xe0] sm:$0xf]
  %v72 = vld [vmem:[%s0 + $0xe4] sm:$0xf]
  %v73 = vld [vmem:[%s0 + $0xe8] sm:$0xf]
  %v74 = vld [vmem:[%s0 + $0xec] sm:$0xf]
  %v75 = vld [vmem:[%s0 + $0xf0] sm:$0xf]
  %v76 = vld [vmem:[%s0 + $0xf4] sm:$0xf]
  %v77 = vld [vmem:[%s0 + $0xf8] sm:$0xf]
  %v78 = vld [vmem:[%s0 + $0xfc] sm:$0xf]
  %v79 = vld [vmem:[%s1] sm:$0xf]
  %v80 = vld [vmem:[%s1 + $0x4] sm:$0xf]
  %v81 = vld [vmem:[%s1 + $0x8] sm:$0xf]
  %v82 = vld [vmem:[%s1 + $0xc] sm:$0xf]
  %v83 = vld [vmem:[%s1 + $0x10] sm:$0xf]
  %v84 = vld [vmem:[%s1 + $0x14] sm:$0xf]
  %v85 = vld [vmem:[%s1 + $0x18] sm:$0xf]
  %v86 = vld [vmem:[%s1 + $0x1c] sm:$0xf]
  %v87 = vld [vmem:[%s1 + $0x20] sm:$0xf]
  %v88 = vld [vmem:[%s1 + $0x24] sm:$0xf]
  %v89 = vld [vmem:[%s1 + $0x28] sm:$0xf]
  %v90 = vld [vmem:[%s1 + $0x2c] sm:$0xf]
  %v91 = vld [vmem:[%s1 + $0x30] sm:$0xf]
  %v92 = vld [vmem:[%s1 + $0x34] sm:$0xf]
  %v93 = vld [vmem:[%s1 + $0x38] sm:$0xf]
  %v94 = vld [vmem:[%s1 + $0x3c] sm:$0xf]
  %v159 = vunpack.c.l.b16 %v15
  %v160 = vunpack.c.l.b16 %v16
  %v161 = vunpack.c.l.b16 %v17
  %v162 = vunpack.c.l.b16 %v18
  %v163 = vunpack.c.l.b16 %v19
  %v164 = vunpack.c.l.b16 %v20
  %v165 = vunpack.c.l.b16 %v21
  %v166 = vunpack.c.l.b16 %v22
  %v167 = vunpack.c.l.b16 %v23
  %v168 = vunpack.c.l.b16 %v24
  %v169 = vunpack.c.l.b16 %v25
  %v170 = vunpack.c.l.b16 %v26
  %v171 = vunpack.c.l.b16 %v27
  %v172 = vunpack.c.l.b16 %v28
  %v173 = vunpack.c.l.b16 %v29
  %v174 = vunpack.c.l.b16 %v30
  %v175 = vunpack.c.l.b16 %v31
  %v176 = vunpack.c.l.b16 %v32
  %v177 = vunpack.c.l.b16 %v33
  %v178 = vunpack.c.l.b16 %v34
  %v179 = vunpack.c.l.b16 %v35
  %v180 = vunpack.c.l.b16 %v36
  %v181 = vunpack.c.l.b16 %v37
  %v182 = vunpack.c.l.b16 %v38
  %v183 = vunpack.c.l.b16 %v39
  %v184 = vunpack.c.l.b16 %v40
  %v185 = vunpack.c.l.b16 %v41
  %v186 = vunpack.c.l.b16 %v42
  %v187 = vunpack.c.l.b16 %v43
  %v188 = vunpack.c.l.b16 %v44
  %v189 = vunpack.c.l.b16 %v45
  %v190 = vunpack.c.l.b16 %v46
  %v191 = vunpack.c.l.b16 %v47
  %v192 = vunpack.c.l.b16 %v48
  %v193 = vunpack.c.l.b16 %v49
  %v194 = vunpack.c.l.b16 %v50
  %v195 = vunpack.c.l.b16 %v51
  %v196 = vunpack.c.l.b16 %v52
  %v197 = vunpack.c.l.b16 %v53
  %v198 = vunpack.c.l.b16 %v54
  %v199 = vunpack.c.l.b16 %v55
  %v200 = vunpack.c.l.b16 %v56
  %v201 = vunpack.c.l.b16 %v57
  %v202 = vunpack.c.l.b16 %v58
  %v203 = vunpack.c.l.b16 %v59
  %v204 = vunpack.c.l.b16 %v60
  %v205 = vunpack.c.l.b16 %v61
  %v206 = vunpack.c.l.b16 %v62
  %v207 = vunpack.c.l.b16 %v63
  %v208 = vunpack.c.l.b16 %v64
  %v209 = vunpack.c.l.b16 %v65
  %v210 = vunpack.c.l.b16 %v66
  %v211 = vunpack.c.l.b16 %v67
  %v212 = vunpack.c.l.b16 %v68
  %v213 = vunpack.c.l.b16 %v69
  %v214 = vunpack.c.l.b16 %v70
  %v215 = vunpack.c.l.b16 %v71
  %v216 = vunpack.c.l.b16 %v72
  %v217 = vunpack.c.l.b16 %v73
  %v218 = vunpack.c.l.b16 %v74
  %v219 = vunpack.c.l.b16 %v75
  %v220 = vunpack.c.l.b16 %v76
  %v221 = vunpack.c.l.b16 %v77
  %v222 = vunpack.c.l.b16 %v78
  %v223 = vpack.c.b16 %v160, %v159
  %v224 = vpack.c.b16 %v162, %v161
  %v225 = vpack.c.b16 %v164, %v163
  %v226 = vpack.c.b16 %v166, %v165
  %v227 = vpack.c.b16 %v168, %v167
  %v228 = vpack.c.b16 %v170, %v169
  %v229 = vpack.c.b16 %v172, %v171
  %v230 = vpack.c.b16 %v174, %v173
  %v231 = vpack.c.b16 %v176, %v175
  %v232 = vpack.c.b16 %v178, %v177
  %v233 = vpack.c.b16 %v180, %v179
  %v234 = vpack.c.b16 %v182, %v181
  %v235 = vpack.c.b16 %v184, %v183
  %v236 = vpack.c.b16 %v186, %v185
  %v237 = vpack.c.b16 %v188, %v187
  %v238 = vpack.c.b16 %v190, %v189
  %v239 = vpack.c.b16 %v192, %v191
  %v240 = vpack.c.b16 %v194, %v193
  %v241 = vpack.c.b16 %v196, %v195
  %v242 = vpack.c.b16 %v198, %v197
  %v243 = vpack.c.b16 %v200, %v199
  %v244 = vpack.c.b16 %v202, %v201
  %v245 = vpack.c.b16 %v204, %v203
  %v246 = vpack.c.b16 %v206, %v205
  %v247 = vpack.c.b16 %v208, %v207
  %v248 = vpack.c.b16 %v210, %v209
  %v249 = vpack.c.b16 %v212, %v211
  %v250 = vpack.c.b16 %v214, %v213
  %v251 = vpack.c.b16 %v216, %v215
  %v252 = vpack.c.b16 %v218, %v217
  %v253 = vpack.c.b16 %v220, %v219
  %v254 = vpack.c.b16 %v222, %v221
  %v303 = vunpack.c.l.b16 %v79
  %v304 = vunpack.c.l.b16 %v80
  %v305 = vunpack.c.l.b16 %v81
  %v306 = vunpack.c.l.b16 %v82
  %v307 = vunpack.c.l.b16 %v83
  %v308 = vunpack.c.l.b16 %v84
  %v309 = vunpack.c.l.b16 %v85
  %v310 = vunpack.c.l.b16 %v86
  %v311 = vunpack.c.l.b16 %v87
  %v312 = vunpack.c.l.b16 %v88
  %v313 = vunpack.c.l.b16 %v89
  %v314 = vunpack.c.l.b16 %v90
  %v315 = vunpack.c.l.b16 %v91
  %v316 = vunpack.c.l.b16 %v92
  %v317 = vunpack.c.l.b16 %v93
  %v318 = vunpack.c.l.b16 %v94
  %v319 = vpack.c.b16 %v304, %v303
  %v320 = vpack.c.b16 %v306, %v305
  %v321 = vpack.c.b16 %v308, %v307
  %v322 = vpack.c.b16 %v310, %v309
  %v323 = vpack.c.b16 %v312, %v311
  %v324 = vpack.c.b16 %v314, %v313
  %v325 = vpack.c.b16 %v316, %v315
  %v326 = vpack.c.b16 %v318, %v317
  %335 = vmatprep.subr.bf16.mxu0 0
  %336 = vmatpush1.bf16.msra.mxu0 %v319
  %337 = vmatprep.subr.bf16.mxu0 0
  %338 = vmatpush1.bf16.msra.mxu0 %v320
  %339 = vmatprep.subr.bf16.mxu0 0
  %340 = vmatpush1.bf16.msra.mxu0 %v321
  %341 = vmatprep.subr.bf16.mxu0 0
  %342 = vmatpush1.bf16.msra.mxu0 %v322
  %343 = vmatprep.subr.bf16.mxu0 0
  %344 = vmatpush1.bf16.msra.mxu0 %v323
  %345 = vmatprep.subr.bf16.mxu0 0
  %346 = vmatpush1.bf16.msra.mxu0 %v324
  %347 = vmatprep.subr.bf16.mxu0 0
  %348 = vmatpush1.bf16.msra.mxu0 %v325
  %349 = vmatprep.subr.bf16.mxu0 0
  %350 = vmatpush1.bf16.msra.mxu0 %v326
  %351 = vmatprep.subr.bf16.mxu0 0
  %352 = vmatpush1.bf16.msra.mxu0 0
  %353 = vmatprep.subr.bf16.mxu0 0
  %354 = vmatpush1.bf16.msra.mxu0 0
  %355 = vmatprep.subr.bf16.mxu0 0
  %356 = vmatpush1.bf16.msra.mxu0 0
  %357 = vmatprep.subr.bf16.mxu0 0
  %358 = vmatpush1.bf16.msra.mxu0 0
  %359 = vmatprep.subr.bf16.mxu0 0
  %360 = vmatpush1.bf16.msra.mxu0 0
  %361 = vmatprep.subr.bf16.mxu0 0
  %362 = vmatpush1.bf16.msra.mxu0 0
  %363 = vmatprep.subr.bf16.mxu0 0
  %364 = vmatpush1.bf16.msra.mxu0 0
  %365 = vmatprep.subr.bf16.mxu0 0
  %366 = vmatpush1.bf16.msra.mxu0 0
  %367 = vmatprep.mubr.bf16.mxu0 0
  %368 = vmatmul.mubr.bf16.gmra.mrb[0].mxu0 %v223
  %v369 = vpop.f32.mrb[0].mxu0
  %v370 = vadd.f32 0.0, %v369
  %v371 = vpop.f32.mrb[0].mxu0
  %v372 = vpop.f32.mrb[0].mxu0
  %v373 = vadd.f32 0.0, %v372
  %v374 = vpop.f32.mrb[0].mxu0
  %375 = vmatprep.mubr.bf16.mxu0 0
  %376 = vmatmul.mubr.bf16.gmra.mrb[0].mxu0 %v224
  %v377 = vpop.f32.mrb[0].mxu0
  %v378 = vadd.f32 0.0, %v377
  %v379 = vpop.f32.mrb[0].mxu0
  %v380 = vpop.f32.mrb[0].mxu0
  %v381 = vadd.f32 0.0, %v380
  %v382 = vpop.f32.mrb[0].mxu0
  %383 = vmatprep.mubr.bf16.mxu0 0
  %384 = vmatmul.mubr.bf16.gmra.mrb[0].mxu0 %v225
  %v385 = vpop.f32.mrb[0].mxu0
  %v386 = vadd.f32 0.0, %v385
  %v387 = vpop.f32.mrb[0].mxu0
  %v388 = vpop.f32.mrb[0].mxu0
  %v389 = vadd.f32 0.0, %v388
  %v390 = vpop.f32.mrb[0].mxu0
  %391 = vmatprep.mubr.bf16.mxu0 0
  %392 = vmatmul.mubr.bf16.gmra.mrb[0].mxu0 %v226
  %v393 = vpop.f32.mrb[0].mxu0
  %v394 = vadd.f32 0.0, %v393
  %v395 = vpop.f32.mrb[0].mxu0
  %v396 = vpop.f32.mrb[0].mxu0
  %v397 = vadd.f32 0.0, %v396
  %v398 = vpop.f32.mrb[0].mxu0
  %399 = vmatprep.mubr.bf16.mxu0 0
  %400 = vmatmul.mubr.bf16.gmra.mrb[0].mxu0 %v227
  %v401 = vpop.f32.mrb[0].mxu0
  %v402 = vadd.f32 0.0, %v401
  %v403 = vpop.f32.mrb[0].mxu0
  %v404 = vpop.f32.mrb[0].mxu0
  %v405 = vadd.f32 0.0, %v404
  %v406 = vpop.f32.mrb[0].mxu0
  %407 = vmatprep.mubr.bf16.mxu0 0
  %408 = vmatmul.mubr.bf16.gmra.mrb[0].mxu0 %v228
  %v409 = vpop.f32.mrb[0].mxu0
  %v410 = vadd.f32 0.0, %v409
  %v411 = vpop.f32.mrb[0].mxu0
  %v412 = vpop.f32.mrb[0].mxu0
  %v413 = vadd.f32 0.0, %v412
  %v414 = vpop.f32.mrb[0].mxu0
  %415 = vmatprep.mubr.bf16.mxu0 0
  %416 = vmatmul.mubr.bf16.gmra.mrb[0].mxu0 %v229
  %v417 = vpop.f32.mrb[0].mxu0
  %v418 = vadd.f32 0.0, %v417
  %v419 = vpop.f32.mrb[0].mxu0
  %v420 = vpop.f32.mrb[0].mxu0
  %v421 = vadd.f32 0.0, %v420
  %v422 = vpop.f32.mrb[0].mxu0
  %423 = vmatprep.mubr.bf16.mxu0 0
  %424 = vmatmul.mubr.bf16.gmra.mrb[0].mxu0 %v230
  %v425 = vpop.f32.mrb[0].mxu0
  %v426 = vadd.f32 0.0, %v425
  %v427 = vpop.f32.mrb[0].mxu0
  %v428 = vpop.f32.mrb[0].mxu0
  %v429 = vadd.f32 0.0, %v428
  %v430 = vpop.f32.mrb[0].mxu0
  %431 = vmatprep.mubr.bf16.mxu0 0
  %432 = vmatmul.mubr.bf16.gmra.mrb[0].mxu0 %v231
  %v433 = vpop.f32.mrb[0].mxu0
  %v434 = vadd.f32 0.0, %v433
  %v435 = vpop.f32.mrb[0].mxu0
  %v436 = vpop.f32.mrb[0].mxu0
  %v437 = vadd.f32 0.0, %v436
  %v438 = vpop.f32.mrb[0].mxu0
  %439 = vmatprep.mubr.bf16.mxu0 0
  %440 = vmatmul.mubr.bf16.gmra.mrb[0].mxu0 %v232
  %v441 = vpop.f32.mrb[0].mxu0
  %v442 = vadd.f32 0.0, %v441
  %v443 = vpop.f32.mrb[0].mxu0
  %v444 = vpop.f32.mrb[0].mxu0
  %v445 = vadd.f32 0.0, %v444
  %v446 = vpop.f32.mrb[0].mxu0
  %447 = vmatprep.mubr.bf16.mxu0 0
  %448 = vmatmul.mubr.bf16.gmra.mrb[0].mxu0 %v233
  %v449 = vpop.f32.mrb[0].mxu0
  %v450 = vadd.f32 0.0, %v449
  %v451 = vpop.f32.mrb[0].mxu0
  %v452 = vpop.f32.mrb[0].mxu0
  %v453 = vadd.f32 0.0, %v452
  %v454 = vpop.f32.mrb[0].mxu0
  %455 = vmatprep.mubr.bf16.mxu0 0
  %456 = vmatmul.mubr.bf16.gmra.mrb[0].mxu0 %v234
  %v457 = vpop.f32.mrb[0].mxu0
  %v458 = vadd.f32 0.0, %v457
  %v459 = vpop.f32.mrb[0].mxu0
  %v460 = vpop.f32.mrb[0].mxu0
  %v461 = vadd.f32 0.0, %v460
  %v462 = vpop.f32.mrb[0].mxu0
  %463 = vmatprep.mubr.bf16.mxu0 0
  %464 = vmatmul.mubr.bf16.gmra.mrb[0].mxu0 %v235
  %v465 = vpop.f32.mrb[0].mxu0
  %v466 = vadd.f32 0.0, %v465
  %v467 = vpop.f32.mrb[0].mxu0
  %v468 = vpop.f32.mrb[0].mxu0
  %v469 = vadd.f32 0.0, %v468
  %v470 = vpop.f32.mrb[0].mxu0
  %471 = vmatprep.mubr.bf16.mxu0 0
  %472 = vmatmul.mubr.bf16.gmra.mrb[0].mxu0 %v236
  %v473 = vpop.f32.mrb[0].mxu0
  %v474 = vadd.f32 0.0, %v473
  %v475 = vpop.f32.mrb[0].mxu0
  %v476 = vpop.f32.mrb[0].mxu0
  %v477 = vadd.f32 0.0, %v476
  %v478 = vpop.f32.mrb[0].mxu0
  %479 = vmatprep.mubr.bf16.mxu0 0
  %480 = vmatmul.mubr.bf16.gmra.mrb[0].mxu0 %v237
  %v481 = vpop.f32.mrb[0].mxu0
  %v482 = vadd.f32 0.0, %v481
  %v483 = vpop.f32.mrb[0].mxu0
  %v484 = vpop.f32.mrb[0].mxu0
  %v485 = vadd.f32 0.0, %v484
  %v486 = vpop.f32.mrb[0].mxu0
  %487 = vmatprep.mubr.bf16.mxu0 0
  %488 = vmatmul.mubr.bf16.gmra.mrb[0].mxu0 %v238
  %v489 = vpop.f32.mrb[0].mxu0
  %v490 = vadd.f32 0.0, %v489
  %v491 = vpop.f32.mrb[0].mxu0
  %v492 = vpop.f32.mrb[0].mxu0
  %v493 = vadd.f32 0.0, %v492
  %v494 = vpop.f32.mrb[0].mxu0
  %495 = vmatprep.mubr.bf16.mxu0 0
  %496 = vmatmul.mubr.bf16.gmra.mrb[0].mxu0 %v239
  %v497 = vpop.f32.mrb[0].mxu0
  %v498 = vadd.f32 0.0, %v497
  %v499 = vpop.f32.mrb[0].mxu0
  %v500 = vpop.f32.mrb[0].mxu0
  %v501 = vadd.f32 0.0, %v500
  %v502 = vpop.f32.mrb[0].mxu0
  %503 = vmatprep.mubr.bf16.mxu0 0
  %504 = vmatmul.mubr.bf16.gmra.mrb[0].mxu0 %v240
  %v505 = vpop.f32.mrb[0].mxu0
  %v506 = vadd.f32 0.0, %v505
  %v507 = vpop.f32.mrb[0].mxu0
  %v508 = vpop.f32.mrb[0].mxu0
  %v509 = vadd.f32 0.0, %v508
  %v510 = vpop.f32.mrb[0].mxu0
  %511 = vmatprep.mubr.bf16.mxu0 0
  %512 = vmatmul.mubr.bf16.gmra.mrb[0].mxu0 %v241
  %v513 = vpop.f32.mrb[0].mxu0
  %v514 = vadd.f32 0.0, %v513
  %v515 = vpop.f32.mrb[0].mxu0
  %v516 = vpop.f32.mrb[0].mxu0
  %v517 = vadd.f32 0.0, %v516
  %v518 = vpop.f32.mrb[0].mxu0
  %519 = vmatprep.mubr.bf16.mxu0 0
  %520 = vmatmul.mubr.bf16.gmra.mrb[0].mxu0 %v242
  %v521 = vpop.f32.mrb[0].mxu0
  %v522 = vadd.f32 0.0, %v521
  %v523 = vpop.f32.mrb[0].mxu0
  %v524 = vpop.f32.mrb[0].mxu0
  %v525 = vadd.f32 0.0, %v524
  %v526 = vpop.f32.mrb[0].mxu0
  %527 = vmatprep.mubr.bf16.mxu0 0
  %528 = vmatmul.mubr.bf16.gmra.mrb[0].mxu0 %v243
  %v529 = vpop.f32.mrb[0].mxu0
  %v530 = vadd.f32 0.0, %v529
  %v531 = vpop.f32.mrb[0].mxu0
  %v532 = vpop.f32.mrb[0].mxu0
  %v533 = vadd.f32 0.0, %v532
  %v534 = vpop.f32.mrb[0].mxu0
  %535 = vmatprep.mubr.bf16.mxu0 0
  %536 = vmatmul.mubr.bf16.gmra.mrb[0].mxu0 %v244
  %v537 = vpop.f32.mrb[0].mxu0
  %v538 = vadd.f32 0.0, %v537
  %v539 = vpop.f32.mrb[0].mxu0
  %v540 = vpop.f32.mrb[0].mxu0
  %v541 = vadd.f32 0.0, %v540
  %v542 = vpop.f32.mrb[0].mxu0
  %543 = vmatprep.mubr.bf16.mxu0 0
  %544 = vmatmul.mubr.bf16.gmra.mrb[0].mxu0 %v245
  %v545 = vpop.f32.mrb[0].mxu0
  %v546 = vadd.f32 0.0, %v545
  %v547 = vpop.f32.mrb[0].mxu0
  %v548 = vpop.f32.mrb[0].mxu0
  %v549 = vadd.f32 0.0, %v548
  %v550 = vpop.f32.mrb[0].mxu0
  %551 = vmatprep.mubr.bf16.mxu0 0
  %552 = vmatmul.mubr.bf16.gmra.mrb[0].mxu0 %v246
  %v553 = vpop.f32.mrb[0].mxu0
  %v554 = vadd.f32 0.0, %v553
  %v555 = vpop.f32.mrb[0].mxu0
  %v556 = vpop.f32.mrb[0].mxu0
  %v557 = vadd.f32 0.0, %v556
  %v558 = vpop.f32.mrb[0].mxu0
  %559 = vmatprep.mubr.bf16.mxu0 0
  %560 = vmatmul.mubr.bf16.gmra.mrb[0].mxu0 %v247
  %v561 = vpop.f32.mrb[0].mxu0
  %v562 = vadd.f32 0.0, %v561
  %v563 = vpop.f32.mrb[0].mxu0
  %v564 = vpop.f32.mrb[0].mxu0
  %v565 = vadd.f32 0.0, %v564
  %v566 = vpop.f32.mrb[0].mxu0
  %567 = vmatprep.mubr.bf16.mxu0 0
  %568 = vmatmul.mubr.bf16.gmra.mrb[0].mxu0 %v248
  %v569 = vpop.f32.mrb[0].mxu0
  %v570 = vadd.f32 0.0, %v569
  %v571 = vpop.f32.mrb[0].mxu0
  %v572 = vpop.f32.mrb[0].mxu0
  %v573 = vadd.f32 0.0, %v572
  %v574 = vpop.f32.mrb[0].mxu0
  %575 = vmatprep.mubr.bf16.mxu0 0
  %576 = vmatmul.mubr.bf16.gmra.mrb[0].mxu0 %v249
  %v577 = vpop.f32.mrb[0].mxu0
  %v578 = vadd.f32 0.0, %v577
  %v579 = vpop.f32.mrb[0].mxu0
  %v580 = vpop.f32.mrb[0].mxu0
  %v581 = vadd.f32 0.0, %v580
  %v582 = vpop.f32.mrb[0].mxu0
  %583 = vmatprep.mubr.bf16.mxu0 0
  %584 = vmatmul.mubr.bf16.gmra.mrb[0].mxu0 %v250
  %v585 = vpop.f32.mrb[0].mxu0
  %v586 = vadd.f32 0.0, %v585
  %v587 = vpop.f32.mrb[0].mxu0
  %v588 = vpop.f32.mrb[0].mxu0
  %v589 = vadd.f32 0.0, %v588
  %v590 = vpop.f32.mrb[0].mxu0
  %591 = vmatprep.mubr.bf16.mxu0 0
  %592 = vmatmul.mubr.bf16.gmra.mrb[0].mxu0 %v251
  %v593 = vpop.f32.mrb[0].mxu0
  %v594 = vadd.f32 0.0, %v593
  %v595 = vpop.f32.mrb[0].mxu0
  %v596 = vpop.f32.mrb[0].mxu0
  %v597 = vadd.f32 0.0, %v596
  %v598 = vpop.f32.mrb[0].mxu0
  %599 = vmatprep.mubr.bf16.mxu0 0
  %600 = vmatmul.mubr.bf16.gmra.mrb[0].mxu0 %v252
  %v601 = vpop.f32.mrb[0].mxu0
  %v602 = vadd.f32 0.0, %v601
  %v603 = vpop.f32.mrb[0].mxu0
  %v604 = vpop.f32.mrb[0].mxu0
  %v605 = vadd.f32 0.0, %v604
  %v606 = vpop.f32.mrb[0].mxu0
  %607 = vmatprep.mubr.bf16.mxu0 0
  %608 = vmatmul.mubr.bf16.gmra.mrb[0].mxu0 %v253
  %v609 = vpop.f32.mrb[0].mxu0
  %v610 = vadd.f32 0.0, %v609
  %v611 = vpop.f32.mrb[0].mxu0
  %v612 = vpop.f32.mrb[0].mxu0
  %v613 = vadd.f32 0.0, %v612
  %v614 = vpop.f32.mrb[0].mxu0
  %615 = vmatprep.mubr.bf16.mxu0 0
  %616 = vmatmul.mubr.bf16.gmra.mrb[0].mxu0 %v254
  %v617 = vpop.f32.mrb[0].mxu0
  %v618 = vadd.f32 0.0, %v617
  %v619 = vpop.f32.mrb[0].mxu0
  %v620 = vpop.f32.mrb[0].mxu0
  %v621 = vadd.f32 0.0, %v620
  %v622 = vpop.f32.mrb[0].mxu0
  %623 = vdwg.mxu0
  %v624 = vpack.c.bf16 %v373, %v370
  %v625 = vpack.c.bf16 %v381, %v378
  %v626 = vpack.c.bf16 %v389, %v386
  %v627 = vpack.c.bf16 %v397, %v394
  %v628 = vpack.c.bf16 %v405, %v402
  %v629 = vpack.c.bf16 %v413, %v410
  %v630 = vpack.c.bf16 %v421, %v418
  %v631 = vpack.c.bf16 %v429, %v426
  %v632 = vpack.c.bf16 %v437, %v434
  %v633 = vpack.c.bf16 %v445, %v442
  %v634 = vpack.c.bf16 %v453, %v450
  %v635 = vpack.c.bf16 %v461, %v458
  %v636 = vpack.c.bf16 %v469, %v466
  %v637 = vpack.c.bf16 %v477, %v474
  %v638 = vpack.c.bf16 %v485, %v482
  %v639 = vpack.c.bf16 %v493, %v490
  %v640 = vpack.c.bf16 %v501, %v498
  %v641 = vpack.c.bf16 %v509, %v506
  %v642 = vpack.c.bf16 %v517, %v514
  %v643 = vpack.c.bf16 %v525, %v522
  %v644 = vpack.c.bf16 %v533, %v530
  %v645 = vpack.c.bf16 %v541, %v538
  %v646 = vpack.c.bf16 %v549, %v546
  %v647 = vpack.c.bf16 %v557, %v554
  %v648 = vpack.c.bf16 %v565, %v562
  %v649 = vpack.c.bf16 %v573, %v570
  %v650 = vpack.c.bf16 %v581, %v578
  %v651 = vpack.c.bf16 %v589, %v586
  %v652 = vpack.c.bf16 %v597, %v594
  %v653 = vpack.c.bf16 %v605, %v602
  %v654 = vpack.c.bf16 %v613, %v610
  %v655 = vpack.c.bf16 %v621, %v618
  %v688 = vunpack.c.l.b16 %v624
  %v689 = vunpack.c.h.b16 %v624
  %v690 = vunpack.c.l.b16 %v625
  %v691 = vunpack.c.h.b16 %v625
  %v692 = vunpack.c.l.b16 %v626
  %v693 = vunpack.c.h.b16 %v626
  %v694 = vunpack.c.l.b16 %v627
  %v695 = vunpack.c.h.b16 %v627
  %v696 = vunpack.c.l.b16 %v628
  %v697 = vunpack.c.h.b16 %v628
  %v698 = vunpack.c.l.b16 %v629
  %v699 = vunpack.c.h.b16 %v629
  %v700 = vunpack.c.l.b16 %v630
  %v701 = vunpack.c.h.b16 %v630
  %v702 = vunpack.c.l.b16 %v631
  %v703 = vunpack.c.h.b16 %v631
  %v704 = vunpack.c.l.b16 %v632
  %v705 = vunpack.c.h.b16 %v632
  %v706 = vunpack.c.l.b16 %v633
  %v707 = vunpack.c.h.b16 %v633
  %v708 = vunpack.c.l.b16 %v634
  %v709 = vunpack.c.h.b16 %v634
  %v710 = vunpack.c.l.b16 %v635
  %v711 = vunpack.c.h.b16 %v635
  %v712 = vunpack.c.l.b16 %v636
  %v713 = vunpack.c.h.b16 %v636
  %v714 = vunpack.c.l.b16 %v637
  %v715 = vunpack.c.h.b16 %v637
  %v716 = vunpack.c.l.b16 %v638
  %v717 = vunpack.c.h.b16 %v638
  %v718 = vunpack.c.l.b16 %v639
  %v719 = vunpack.c.h.b16 %v639
  %v720 = vunpack.c.l.b16 %v640
  %v721 = vunpack.c.h.b16 %v640
  %v722 = vunpack.c.l.b16 %v641
  %v723 = vunpack.c.h.b16 %v641
  %v724 = vunpack.c.l.b16 %v642
  %v725 = vunpack.c.h.b16 %v642
  %v726 = vunpack.c.l.b16 %v643
  %v727 = vunpack.c.h.b16 %v643
  %v728 = vunpack.c.l.b16 %v644
  %v729 = vunpack.c.h.b16 %v644
  %v730 = vunpack.c.l.b16 %v645
  %v731 = vunpack.c.h.b16 %v645
  %v732 = vunpack.c.l.b16 %v646
  %v733 = vunpack.c.h.b16 %v646
  %v734 = vunpack.c.l.b16 %v647
  %v735 = vunpack.c.h.b16 %v647
  %v736 = vunpack.c.l.b16 %v648
  %v737 = vunpack.c.h.b16 %v648
  %v738 = vunpack.c.l.b16 %v649
  %v739 = vunpack.c.h.b16 %v649
  %v740 = vunpack.c.l.b16 %v650
  %v741 = vunpack.c.h.b16 %v650
  %v742 = vunpack.c.l.b16 %v651
  %v743 = vunpack.c.h.b16 %v651
  %v744 = vunpack.c.l.b16 %v652
  %v745 = vunpack.c.h.b16 %v652
  %v746 = vunpack.c.l.b16 %v653
  %v747 = vunpack.c.h.b16 %v653
  %v748 = vunpack.c.l.b16 %v654
  %v749 = vunpack.c.h.b16 %v654
  %v750 = vunpack.c.l.b16 %v655
  %v751 = vunpack.c.h.b16 %v655
  %v752 = vpack.c.b16 %v688, %v688
  %v753 = vpack.c.b16 %v689, %v689
  %v754 = vpack.c.b16 %v690, %v690
  %v755 = vpack.c.b16 %v691, %v691
  %v756 = vpack.c.b16 %v692, %v692
  %v757 = vpack.c.b16 %v693, %v693
  %v758 = vpack.c.b16 %v694, %v694
  %v759 = vpack.c.b16 %v695, %v695
  %v760 = vpack.c.b16 %v696, %v696
  %v761 = vpack.c.b16 %v697, %v697
  %v762 = vpack.c.b16 %v698, %v698
  %v763 = vpack.c.b16 %v699, %v699
  %v764 = vpack.c.b16 %v700, %v700
  %v765 = vpack.c.b16 %v701, %v701
  %v766 = vpack.c.b16 %v702, %v702
  %v767 = vpack.c.b16 %v703, %v703
  %v768 = vpack.c.b16 %v704, %v704
  %v769 = vpack.c.b16 %v705, %v705
  %v770 = vpack.c.b16 %v706, %v706
  %v771 = vpack.c.b16 %v707, %v707
  %v772 = vpack.c.b16 %v708, %v708
  %v773 = vpack.c.b16 %v709, %v709
  %v774 = vpack.c.b16 %v710, %v710
  %v775 = vpack.c.b16 %v711, %v711
  %v776 = vpack.c.b16 %v712, %v712
  %v777 = vpack.c.b16 %v713, %v713
  %v778 = vpack.c.b16 %v714, %v714
  %v779 = vpack.c.b16 %v715, %v715
  %v780 = vpack.c.b16 %v716, %v716
  %v781 = vpack.c.b16 %v717, %v717
  %v782 = vpack.c.b16 %v718, %v718
  %v783 = vpack.c.b16 %v719, %v719
  %v784 = vpack.c.b16 %v720, %v720
  %v785 = vpack.c.b16 %v721, %v721
  %v786 = vpack.c.b16 %v722, %v722
  %v787 = vpack.c.b16 %v723, %v723
  %v788 = vpack.c.b16 %v724, %v724
  %v789 = vpack.c.b16 %v725, %v725
  %v790 = vpack.c.b16 %v726, %v726
  %v791 = vpack.c.b16 %v727, %v727
  %v792 = vpack.c.b16 %v728, %v728
  %v793 = vpack.c.b16 %v729, %v729
  %v794 = vpack.c.b16 %v730, %v730
  %v795 = vpack.c.b16 %v731, %v731
  %v796 = vpack.c.b16 %v732, %v732
  %v797 = vpack.c.b16 %v733, %v733
  %v798 = vpack.c.b16 %v734, %v734
  %v799 = vpack.c.b16 %v735, %v735
  %v800 = vpack.c.b16 %v736, %v736
  %v801 = vpack.c.b16 %v737, %v737
  %v802 = vpack.c.b16 %v738, %v738
  %v803 = vpack.c.b16 %v739, %v739
  %v804 = vpack.c.b16 %v740, %v740
  %v805 = vpack.c.b16 %v741, %v741
  %v806 = vpack.c.b16 %v742, %v742
  %v807 = vpack.c.b16 %v743, %v743
  %v808 = vpack.c.b16 %v744, %v744
  %v809 = vpack.c.b16 %v745, %v745
  %v810 = vpack.c.b16 %v746, %v746
  %v811 = vpack.c.b16 %v747, %v747
  %v812 = vpack.c.b16 %v748, %v748
  %v813 = vpack.c.b16 %v749, %v749
  %v814 = vpack.c.b16 %v750, %v750
  %v815 = vpack.c.b16 %v751, %v751
  %880 = vst [vmem:[%s2] sm:$0xf] %v752
  %881 = vst [vmem:[%s2 + $0x4] sm:$0xf] %v753
  %882 = vst [vmem:[%s2 + $0x8] sm:$0xf] %v754
  %883 = vst [vmem:[%s2 + $0xc] sm:$0xf] %v755
  %884 = vst [vmem:[%s2 + $0x10] sm:$0xf] %v756
  %885 = vst [vmem:[%s2 + $0x14] sm:$0xf] %v757
  %886 = vst [vmem:[%s2 + $0x18] sm:$0xf] %v758
  %887 = vst [vmem:[%s2 + $0x1c] sm:$0xf] %v759
  %888 = vst [vmem:[%s2 + $0x20] sm:$0xf] %v760
  %889 = vst [vmem:[%s2 + $0x24] sm:$0xf] %v761
  %890 = vst [vmem:[%s2 + $0x28] sm:$0xf] %v762
  %891 = vst [vmem:[%s2 + $0x2c] sm:$0xf] %v763
  %892 = vst [vmem:[%s2 + $0x30] sm:$0xf] %v764
  %893 = vst [vmem:[%s2 + $0x34] sm:$0xf] %v765
  %894 = vst [vmem:[%s2 + $0x38] sm:$0xf] %v766
  %895 = vst [vmem:[%s2 + $0x3c] sm:$0xf] %v767
  %896 = vst [vmem:[%s2 + $0x40] sm:$0xf] %v768
  %897 = vst [vmem:[%s2 + $0x44] sm:$0xf] %v769
  %898 = vst [vmem:[%s2 + $0x48] sm:$0xf] %v770
  %899 = vst [vmem:[%s2 + $0x4c] sm:$0xf] %v771
  %900 = vst [vmem:[%s2 + $0x50] sm:$0xf] %v772
  %901 = vst [vmem:[%s2 + $0x54] sm:$0xf] %v773
  %902 = vst [vmem:[%s2 + $0x58] sm:$0xf] %v774
  %903 = vst [vmem:[%s2 + $0x5c] sm:$0xf] %v775
  %904 = vst [vmem:[%s2 + $0x60] sm:$0xf] %v776
  %905 = vst [vmem:[%s2 + $0x64] sm:$0xf] %v777
  %906 = vst [vmem:[%s2 + $0x68] sm:$0xf] %v778
  %907 = vst [vmem:[%s2 + $0x6c] sm:$0xf] %v779
  %908 = vst [vmem:[%s2 + $0x70] sm:$0xf] %v780
  %909 = vst [vmem:[%s2 + $0x74] sm:$0xf] %v781
  %910 = vst [vmem:[%s2 + $0x78] sm:$0xf] %v782
  %911 = vst [vmem:[%s2 + $0x7c] sm:$0xf] %v783
  %912 = vst [vmem:[%s2 + $0x80] sm:$0xf] %v784
  %913 = vst [vmem:[%s2 + $0x84] sm:$0xf] %v785
  %914 = vst [vmem:[%s2 + $0x88] sm:$0xf] %v786
  %915 = vst [vmem:[%s2 + $0x8c] sm:$0xf] %v787
  %916 = vst [vmem:[%s2 + $0x90] sm:$0xf] %v788
  %917 = vst [vmem:[%s2 + $0x94] sm:$0xf] %v789
  %918 = vst [vmem:[%s2 + $0x98] sm:$0xf] %v790
  %919 = vst [vmem:[%s2 + $0x9c] sm:$0xf] %v791
  %920 = vst [vmem:[%s2 + $0xa0] sm:$0xf] %v792
  %921 = vst [vmem:[%s2 + $0xa4] sm:$0xf] %v793
  %922 = vst [vmem:[%s2 + $0xa8] sm:$0xf] %v794
  %923 = vst [vmem:[%s2 + $0xac] sm:$0xf] %v795
  %924 = vst [vmem:[%s2 + $0xb0] sm:$0xf] %v796
  %925 = vst [vmem:[%s2 + $0xb4] sm:$0xf] %v797
  %926 = vst [vmem:[%s2 + $0xb8] sm:$0xf] %v798
  %927 = vst [vmem:[%s2 + $0xbc] sm:$0xf] %v799
  %928 = vst [vmem:[%s2 + $0xc0] sm:$0xf] %v800
  %929 = vst [vmem:[%s2 + $0xc4] sm:$0xf] %v801
  %930 = vst [vmem:[%s2 + $0xc8] sm:$0xf] %v802
  %931 = vst [vmem:[%s2 + $0xcc] sm:$0xf] %v803
  %932 = vst [vmem:[%s2 + $0xd0] sm:$0xf] %v804
  %933 = vst [vmem:[%s2 + $0xd4] sm:$0xf] %v805
  %934 = vst [vmem:[%s2 + $0xd8] sm:$0xf] %v806
  %935 = vst [vmem:[%s2 + $0xdc] sm:$0xf] %v807
  %936 = vst [vmem:[%s2 + $0xe0] sm:$0xf] %v808
  %937 = vst [vmem:[%s2 + $0xe4] sm:$0xf] %v809
  %938 = vst [vmem:[%s2 + $0xe8] sm:$0xf] %v810
  %939 = vst [vmem:[%s2 + $0xec] sm:$0xf] %v811
  %940 = vst [vmem:[%s2 + $0xf0] sm:$0xf] %v812
  %941 = vst [vmem:[%s2 + $0xf4] sm:$0xf] %v813
  %942 = vst [vmem:[%s2 + $0xf8] sm:$0xf] %v814
  %943 = vst [vmem:[%s2 + $0xfc] sm:$0xf] %v815
  %v944 = vunpack.c.l.bf16 %v624
  %v945 = vunpack.c.h.bf16 %v624
  %v946 = vunpack.c.l.bf16 %v625
  %v947 = vunpack.c.h.bf16 %v625
  %v948 = vunpack.c.l.bf16 %v626
  %v949 = vunpack.c.h.bf16 %v626
  %v950 = vunpack.c.l.bf16 %v627
  %v951 = vunpack.c.h.bf16 %v627
  %v952 = vunpack.c.l.bf16 %v628
  %v953 = vunpack.c.h.bf16 %v628
  %v954 = vunpack.c.l.bf16 %v629
  %v955 = vunpack.c.h.bf16 %v629
  %v956 = vunpack.c.l.bf16 %v630
  %v957 = vunpack.c.h.bf16 %v630
  %v958 = vunpack.c.l.bf16 %v631
  %v959 = vunpack.c.h.bf16 %v631
  %v960 = vunpack.c.l.bf16 %v632
  %v961 = vunpack.c.h.bf16 %v632
  %v962 = vunpack.c.l.bf16 %v633
  %v963 = vunpack.c.h.bf16 %v633
  %v964 = vunpack.c.l.bf16 %v634
  %v965 = vunpack.c.h.bf16 %v634
  %v966 = vunpack.c.l.bf16 %v635
  %v967 = vunpack.c.h.bf16 %v635
  %v968 = vunpack.c.l.bf16 %v636
  %v969 = vunpack.c.h.bf16 %v636
  %v970 = vunpack.c.l.bf16 %v637
  %v971 = vunpack.c.h.bf16 %v637
  %v972 = vunpack.c.l.bf16 %v638
  %v973 = vunpack.c.h.bf16 %v638
  %v974 = vunpack.c.l.bf16 %v639
  %v975 = vunpack.c.h.bf16 %v639
  %v976 = vunpack.c.l.bf16 %v640
  %v977 = vunpack.c.h.bf16 %v640
  %v978 = vunpack.c.l.bf16 %v641
  %v979 = vunpack.c.h.bf16 %v641
  %v980 = vunpack.c.l.bf16 %v642
  %v981 = vunpack.c.h.bf16 %v642
  %v982 = vunpack.c.l.bf16 %v643
  %v983 = vunpack.c.h.bf16 %v643
  %v984 = vunpack.c.l.bf16 %v644
  %v985 = vunpack.c.h.bf16 %v644
  %v986 = vunpack.c.l.bf16 %v645
  %v987 = vunpack.c.h.bf16 %v645
  %v988 = vunpack.c.l.bf16 %v646
  %v989 = vunpack.c.h.bf16 %v646
  %v990 = vunpack.c.l.bf16 %v647
  %v991 = vunpack.c.h.bf16 %v647
  %v992 = vunpack.c.l.bf16 %v648
  %v993 = vunpack.c.h.bf16 %v648
  %v994 = vunpack.c.l.bf16 %v649
  %v995 = vunpack.c.h.bf16 %v649
  %v996 = vunpack.c.l.bf16 %v650
  %v997 = vunpack.c.h.bf16 %v650
  %v998 = vunpack.c.l.bf16 %v651
  %v999 = vunpack.c.h.bf16 %v651
  %v1000 = vunpack.c.l.bf16 %v652
  %v1001 = vunpack.c.h.bf16 %v652
  %v1002 = vunpack.c.l.bf16 %v653
  %v1003 = vunpack.c.h.bf16 %v653
  %v1004 = vunpack.c.l.bf16 %v654
  %v1005 = vunpack.c.h.bf16 %v654
  %v1006 = vunpack.c.l.bf16 %v655
  %v1007 = vunpack.c.h.bf16 %v655
  %v1008 = vadd.f32 %v944, %v945
  %v1009 = vadd.f32 %v1008, %v946
  %v1010 = vadd.f32 %v1009, %v947
  %v1011 = vadd.f32 %v1010, %v948
  %v1012 = vadd.f32 %v1011, %v949
  %v1013 = vadd.f32 %v1012, %v950
  %v1014 = vadd.f32 %v1013, %v951
  %v1015 = vadd.f32 %v1014, %v952
  %v1016 = vadd.f32 %v1015, %v953
  %v1017 = vadd.f32 %v1016, %v954
  %v1018 = vadd.f32 %v1017, %v955
  %v1019 = vadd.f32 %v1018, %v956
  %v1020 = vadd.f32 %v1019, %v957
  %v1021 = vadd.f32 %v1020, %v958
  %v1022 = vadd.f32 %v1021, %v959
  %v1023 = vadd.f32 %v1022, %v960
  %v1024 = vadd.f32 %v1023, %v961
  %v1025 = vadd.f32 %v1024, %v962
  %v1026 = vadd.f32 %v1025, %v963
  %v1027 = vadd.f32 %v1026, %v964
  %v1028 = vadd.f32 %v1027, %v965
  %v1029 = vadd.f32 %v1028, %v966
  %v1030 = vadd.f32 %v1029, %v967
  %v1031 = vadd.f32 %v1030, %v968
  %v1032 = vadd.f32 %v1031, %v969
  %v1033 = vadd.f32 %v1032, %v970
  %v1034 = vadd.f32 %v1033, %v971
  %v1035 = vadd.f32 %v1034, %v972
  %v1036 = vadd.f32 %v1035, %v973
  %v1037 = vadd.f32 %v1036, %v974
  %v1038 = vadd.f32 %v1037, %v975
  %v1039 = vadd.f32 %v1038, %v976
  %v1040 = vadd.f32 %v1039, %v977
  %v1041 = vadd.f32 %v1040, %v978
  %v1042 = vadd.f32 %v1041, %v979
  %v1043 = vadd.f32 %v1042, %v980
  %v1044 = vadd.f32 %v1043, %v981
  %v1045 = vadd.f32 %v1044, %v982
  %v1046 = vadd.f32 %v1045, %v983
  %v1047 = vadd.f32 %v1046, %v984
  %v1048 = vadd.f32 %v1047, %v985
  %v1049 = vadd.f32 %v1048, %v986
  %v1050 = vadd.f32 %v1049, %v987
  %v1051 = vadd.f32 %v1050, %v988
  %v1052 = vadd.f32 %v1051, %v989
  %v1053 = vadd.f32 %v1052, %v990
  %v1054 = vadd.f32 %v1053, %v991
  %v1055 = vadd.f32 %v1054, %v992
  %v1056 = vadd.f32 %v1055, %v993
  %v1057 = vadd.f32 %v1056, %v994
  %v1058 = vadd.f32 %v1057, %v995
  %v1059 = vadd.f32 %v1058, %v996
  %v1060 = vadd.f32 %v1059, %v997
  %v1061 = vadd.f32 %v1060, %v998
  %v1062 = vadd.f32 %v1061, %v999
  %v1063 = vadd.f32 %v1062, %v1000
  %v1064 = vadd.f32 %v1063, %v1001
  %v1065 = vadd.f32 %v1064, %v1002
  %v1066 = vadd.f32 %v1065, %v1003
  %v1067 = vadd.f32 %v1066, %v1004
  %v1068 = vadd.f32 %v1067, %v1005
  %v1069 = vadd.f32 %v1068, %v1006
  %v1070 = vadd.f32 %v1069, %v1007
  %v1071 = vrot.slane %v1070, 4
  %v1072 = vadd.f32 %v1070, %v1071
  %v1073 = vrot.slane %v1072, 2
  %v1074 = vadd.f32 %v1072, %v1073
  %v1075 = vrot.slane %v1074, 1
  %v1076 = vadd.f32 %v1074, %v1075
  %1077 = vst [vmem:[%s3] sm:$0x1] %v1076
  %v1078 = vmul.f32 %v944, %v944
  %v1079 = vmul.f32 %v945, %v945
  %v1080 = vmul.f32 %v946, %v946
  %v1081 = vmul.f32 %v947, %v947
  %v1082 = vmul.f32 %v948, %v948
  %v1083 = vmul.f32 %v949, %v949
  %v1084 = vmul.f32 %v950, %v950
  %v1085 = vmul.f32 %v951, %v951
  %v1086 = vmul.f32 %v952, %v952
  %v1087 = vmul.f32 %v953, %v953
  %v1088 = vmul.f32 %v954, %v954
  %v1089 = vmul.f32 %v955, %v955
  %v1090 = vmul.f32 %v956, %v956
  %v1091 = vmul.f32 %v957, %v957
  %v1092 = vmul.f32 %v958, %v958
  %v1093 = vmul.f32 %v959, %v959
  %v1094 = vmul.f32 %v960, %v960
  %v1095 = vmul.f32 %v961, %v961
  %v1096 = vmul.f32 %v962, %v962
  %v1097 = vmul.f32 %v963, %v963
  %v1098 = vmul.f32 %v964, %v964
  %v1099 = vmul.f32 %v965, %v965
  %v1100 = vmul.f32 %v966, %v966
  %v1101 = vmul.f32 %v967, %v967
  %v1102 = vmul.f32 %v968, %v968
  %v1103 = vmul.f32 %v969, %v969
  %v1104 = vmul.f32 %v970, %v970
  %v1105 = vmul.f32 %v971, %v971
  %v1106 = vmul.f32 %v972, %v972
  %v1107 = vmul.f32 %v973, %v973
  %v1108 = vmul.f32 %v974, %v974
  %v1109 = vmul.f32 %v975, %v975
  %v1110 = vmul.f32 %v976, %v976
  %v1111 = vmul.f32 %v977, %v977
  %v1112 = vmul.f32 %v978, %v978
  %v1113 = vmul.f32 %v979, %v979
  %v1114 = vmul.f32 %v980, %v980
  %v1115 = vmul.f32 %v981, %v981
  %v1116 = vmul.f32 %v982, %v982
  %v1117 = vmul.f32 %v983, %v983
  %v1118 = vmul.f32 %v984, %v984
  %v1119 = vmul.f32 %v985, %v985
  %v1120 = vmul.f32 %v986, %v986
  %v1121 = vmul.f32 %v987, %v987
  %v1122 = vmul.f32 %v988, %v988
  %v1123 = vmul.f32 %v989, %v989
  %v1124 = vmul.f32 %v990, %v990
  %v1125 = vmul.f32 %v991, %v991
  %v1126 = vmul.f32 %v992, %v992
  %v1127 = vmul.f32 %v993, %v993
  %v1128 = vmul.f32 %v994, %v994
  %v1129 = vmul.f32 %v995, %v995
  %v1130 = vmul.f32 %v996, %v996
  %v1131 = vmul.f32 %v997, %v997
  %v1132 = vmul.f32 %v998, %v998
  %v1133 = vmul.f32 %v999, %v999
  %v1134 = vmul.f32 %v1000, %v1000
  %v1135 = vmul.f32 %v1001, %v1001
  %v1136 = vmul.f32 %v1002, %v1002
  %v1137 = vmul.f32 %v1003, %v1003
  %v1138 = vmul.f32 %v1004, %v1004
  %v1139 = vmul.f32 %v1005, %v1005
  %v1140 = vmul.f32 %v1006, %v1006
  %v1141 = vmul.f32 %v1007, %v1007
  %v1142 = vadd.f32 %v1078, %v1079
  %v1143 = vadd.f32 %v1142, %v1080
  %v1144 = vadd.f32 %v1143, %v1081
  %v1145 = vadd.f32 %v1144, %v1082
  %v1146 = vadd.f32 %v1145, %v1083
  %v1147 = vadd.f32 %v1146, %v1084
  %v1148 = vadd.f32 %v1147, %v1085
  %v1149 = vadd.f32 %v1148, %v1086
  %v1150 = vadd.f32 %v1149, %v1087
  %v1151 = vadd.f32 %v1150, %v1088
  %v1152 = vadd.f32 %v1151, %v1089
  %v1153 = vadd.f32 %v1152, %v1090
  %v1154 = vadd.f32 %v1153, %v1091
  %v1155 = vadd.f32 %v1154, %v1092
  %v1156 = vadd.f32 %v1155, %v1093
  %v1157 = vadd.f32 %v1156, %v1094
  %v1158 = vadd.f32 %v1157, %v1095
  %v1159 = vadd.f32 %v1158, %v1096
  %v1160 = vadd.f32 %v1159, %v1097
  %v1161 = vadd.f32 %v1160, %v1098
  %v1162 = vadd.f32 %v1161, %v1099
  %v1163 = vadd.f32 %v1162, %v1100
  %v1164 = vadd.f32 %v1163, %v1101
  %v1165 = vadd.f32 %v1164, %v1102
  %v1166 = vadd.f32 %v1165, %v1103
  %v1167 = vadd.f32 %v1166, %v1104
  %v1168 = vadd.f32 %v1167, %v1105
  %v1169 = vadd.f32 %v1168, %v1106
  %v1170 = vadd.f32 %v1169, %v1107
  %v1171 = vadd.f32 %v1170, %v1108
  %v1172 = vadd.f32 %v1171, %v1109
  %v1173 = vadd.f32 %v1172, %v1110
  %v1174 = vadd.f32 %v1173, %v1111
  %v1175 = vadd.f32 %v1174, %v1112
  %v1176 = vadd.f32 %v1175, %v1113
  %v1177 = vadd.f32 %v1176, %v1114
  %v1178 = vadd.f32 %v1177, %v1115
  %v1179 = vadd.f32 %v1178, %v1116
  %v1180 = vadd.f32 %v1179, %v1117
  %v1181 = vadd.f32 %v1180, %v1118
  %v1182 = vadd.f32 %v1181, %v1119
  %v1183 = vadd.f32 %v1182, %v1120
  %v1184 = vadd.f32 %v1183, %v1121
  %v1185 = vadd.f32 %v1184, %v1122
  %v1186 = vadd.f32 %v1185, %v1123
  %v1187 = vadd.f32 %v1186, %v1124
  %v1188 = vadd.f32 %v1187, %v1125
  %v1189 = vadd.f32 %v1188, %v1126
  %v1190 = vadd.f32 %v1189, %v1127
  %v1191 = vadd.f32 %v1190, %v1128
  %v1192 = vadd.f32 %v1191, %v1129
  %v1193 = vadd.f32 %v1192, %v1130
  %v1194 = vadd.f32 %v1193, %v1131
  %v1195 = vadd.f32 %v1194, %v1132
  %v1196 = vadd.f32 %v1195, %v1133
  %v1197 = vadd.f32 %v1196, %v1134
  %v1198 = vadd.f32 %v1197, %v1135
  %v1199 = vadd.f32 %v1198, %v1136
  %v1200 = vadd.f32 %v1199, %v1137
  %v1201 = vadd.f32 %v1200, %v1138
  %v1202 = vadd.f32 %v1201, %v1139
  %v1203 = vadd.f32 %v1202, %v1140
  %v1204 = vadd.f32 %v1203, %v1141
  %v1205 = vrot.slane %v1204, 4
  %v1206 = vadd.f32 %v1204, %v1205
  %v1207 = vrot.slane %v1206, 2
  %v1208 = vadd.f32 %v1206, %v1207
  %v1209 = vrot.slane %v1208, 1
  %v1210 = vadd.f32 %v1208, %v1209
  %1211 = vst [vmem:[%s4] sm:$0x1] %v1210
  // Predicated region
  $region10: #{domain_classifier_forward.9} parent=0 // pred_check
    _
  $region11: #{domain_classifier_forward.9} parent=0 // pred_check_branch
    %1213 = sbr.rel (0) target = $region13
  $region12: #{domain_classifier_forward.9} parent=0 // pred_region
    _
  $region13: #{domain_classifier_forward.9} parent=0 // pred_fallthru
    _
  // Predicated region
  $region14: #{domain_classifier_forward.9} parent=0 // pred_check
    _
  $region15: #{domain_classifier_forward.9} parent=0 // pred_check_branch
    %1215 = sbr.rel (0) target = $region17
  $region16: #{domain_classifier_forward.9} parent=0 // pred_region
    _
  $region17: #{domain_classifier_forward.9} parent=0 // pred_fallthru
    _
  // Predicated region
  $region18: #{domain_classifier_forward.9} parent=0 // pred_check
    _
  $region19: #{domain_classifier_forward.9} parent=0 // pred_check_branch
    %1217 = sbr.rel (0) target = $region21
  $region20: #{domain_classifier_forward.9} parent=0 // pred_region
    _
  $region21: #{domain_classifier_forward.9} parent=0 // pred_fallthru
    _
  // Predicated region
  $region22: #{domain_classifier_forward.9} parent=0 // pred_check
    _
  $region23: #{domain_classifier_forward.9} parent=0 // pred_check_branch
    %1219 = sbr.rel (0) target = $region25
  $region24: #{domain_classifier_forward.9} parent=0 // pred_region
    _
  $region25: #{domain_classifier_forward.9} parent=0 // pred_fallthru
    _
  // Predicated region
  $region26: #{domain_classifier_forward.9} parent=0 // pred_check
    _
  $region27: #{domain_classifier_forward.9} parent=0 // pred_check_branch
    %1221 = sbr.rel (0) target = $region29
  $region28: #{domain_classifier_forward.9} parent=0 // pred_region
    _
  $region29: #{domain_classifier_forward.9} parent=0 // pred_fallthru
    _
  // Predicated region
  $region30: #{domain_classifier_forward.9} parent=0 // pred_check
    _
  $region31: #{domain_classifier_forward.9} parent=0 // pred_check_branch
    %1223 = sbr.rel (0) target = $region33
  $region32: #{domain_classifier_forward.9} parent=0 // pred_region
    _
  $region33: #{domain_classifier_forward.9} parent=0 // pred_fallthru
    _

// kernel: domain_classifier_forward.12
$region0: #{domain_classifier_forward.12}
  #allocation0 [shape = 'u32[]', space=smem, size = 0x4, offset = 0x4, fixed_abs, tag = 'smem constant byte address 0x4 - core index']
  #allocation1 [shape = 'u32[144,128]{1,0:T(1,128)}', space=vmem, size = 0x12000, scoped, tag = 'internal scratch']
  %s0 = inlined_call_operand.vmem [shape: bf16[128,128], index: 0, kind: input, shape index: {}]
  %s1 = inlined_call_operand.vmem [shape: f32[1,128], index: 1, kind: input, shape index: {}]
  %s2 = inlined_call_operand.vmem [shape: f32[1,128], index: 2, kind: input, shape index: {}]
  %s3 = inlined_call_operand.vmem [shape: bf16[128,128], index: 3, kind: output, shape index: {}]
  %s4 = sld [smem:[#allocation0]]
  $region22: #{domain_classifier_forward.12} parent=0
    _
  %s6 = ssub.s32 1, %s4
  %s7 = scalar_select 0, %s6, %s4
  // Predicated region
  $region2: #{domain_classifier_forward.12} parent=0 // pred_check
    _
  $region3: #{domain_classifier_forward.12} parent=0 // pred_check_branch
    %9 = sbr.rel (0) target = $region5
  $region4: #{domain_classifier_forward.12} parent=0 // pred_region
    _
  $region5: #{domain_classifier_forward.12} parent=0 // pred_fallthru
    _
  // Predicated region
  $region6: #{domain_classifier_forward.12} parent=0 // pred_check
    _
  $region7: #{domain_classifier_forward.12} parent=0 // pred_check_branch
    %11 = sbr.rel (0) target = $region9
  $region8: #{domain_classifier_forward.12} parent=0 // pred_region
    _
  $region9: #{domain_classifier_forward.12} parent=0 // pred_fallthru
    _
  // Predicated region
  $region10: #{domain_classifier_forward.12} parent=0 // pred_check
    _
  $region11: #{domain_classifier_forward.12} parent=0 // pred_check_branch
    %13 = sbr.rel (0) target = $region13
  $region12: #{domain_classifier_forward.12} parent=0 // pred_region
    _
  $region13: #{domain_classifier_forward.12} parent=0 // pred_fallthru
    _
  %v14 = vld [vmem:[%s0] sm:$0xf]
  %v15 = vld [vmem:[%s0 + $0x4] sm:$0xf]
  %v16 = vld [vmem:[%s0 + $0x8] sm:$0xf]
  %v17 = vld [vmem:[%s0 + $0xc] sm:$0xf]
  %v18 = vld [vmem:[%s0 + $0x10] sm:$0xf]
  %v19 = vld [vmem:[%s0 + $0x14] sm:$0xf]
  %v20 = vld [vmem:[%s0 + $0x18] sm:$0xf]
  %v21 = vld [vmem:[%s0 + $0x1c] sm:$0xf]
  %v22 = vld [vmem:[%s0 + $0x20] sm:$0xf]
  %v23 = vld [vmem:[%s0 + $0x24] sm:$0xf]
  %v24 = vld [vmem:[%s0 + $0x28] sm:$0xf]
  %v25 = vld [vmem:[%s0 + $0x2c] sm:$0xf]
  %v26 = vld [vmem:[%s0 + $0x30] sm:$0xf]
  %v27 = vld [vmem:[%s0 + $0x34] sm:$0xf]
  %v28 = vld [vmem:[%s0 + $0x38] sm:$0xf]
  %v29 = vld [vmem:[%s0 + $0x3c] sm:$0xf]
  %v30 = vunpack.c.l.bf16 %v14
  %v31 = vunpack.c.l.bf16 %v15
  %v32 = vunpack.c.l.bf16 %v16
  %v33 = vunpack.c.l.bf16 %v17
  %v34 = vunpack.c.l.bf16 %v18
  %v35 = vunpack.c.l.bf16 %v19
  %v36 = vunpack.c.l.bf16 %v20
  %v37 = vunpack.c.l.bf16 %v21
  %v38 = vunpack.c.l.bf16 %v22
  %v39 = vunpack.c.l.bf16 %v23
  %v40 = vunpack.c.l.bf16 %v24
  %v41 = vunpack.c.l.bf16 %v25
  %v42 = vunpack.c.l.bf16 %v26
  %v43 = vunpack.c.l.bf16 %v27
  %v44 = vunpack.c.l.bf16 %v28
  %v45 = vunpack.c.l.bf16 %v29
  %v46 = vld [vmem:[%s1] sm:$0x1]
  %v48 = vlaneseq
  %v49 = vshrl.u32 %v48, 7
  %v50 = vsub.s32 0, %v49
  %v51 = vrot.slane %v46, %v50
  %v53 = vmul.f32 %v30, %v51
  %v54 = vmul.f32 %v31, %v51
  %v55 = vmul.f32 %v32, %v51
  %v56 = vmul.f32 %v33, %v51
  %v57 = vmul.f32 %v34, %v51
  %v58 = vmul.f32 %v35, %v51
  %v59 = vmul.f32 %v36, %v51
  %v60 = vmul.f32 %v37, %v51
  %v61 = vmul.f32 %v38, %v51
  %v62 = vmul.f32 %v39, %v51
  %v63 = vmul.f32 %v40, %v51
  %v64 = vmul.f32 %v41, %v51
  %v65 = vmul.f32 %v42, %v51
  %v66 = vmul.f32 %v43, %v51
  %v67 = vmul.f32 %v44, %v51
  %v68 = vmul.f32 %v45, %v51
  %v69 = vld [vmem:[%s2] sm:$0x1]
  %v71 = vlaneseq
  %v72 = vshrl.u32 %v71, 7
  %v73 = vsub.s32 0, %v72
  %v74 = vrot.slane %v69, %v73
  %v76 = vadd.f32 %v53, %v74
  %v77 = vadd.f32 %v54, %v74
  %v78 = vadd.f32 %v55, %v74
  %v79 = vadd.f32 %v56, %v74
  %v80 = vadd.f32 %v57, %v74
  %v81 = vadd.f32 %v58, %v74
  %v82 = vadd.f32 %v59, %v74
  %v83 = vadd.f32 %v60, %v74
  %v84 = vadd.f32 %v61, %v74
  %v85 = vadd.f32 %v62, %v74
  %v86 = vadd.f32 %v63, %v74
  %v87 = vadd.f32 %v64, %v74
  %v88 = vadd.f32 %v65, %v74
  %v89 = vadd.f32 %v66, %v74
  %v90 = vadd.f32 %v67, %v74
  %v91 = vadd.f32 %v68, %v74
  %vm92 = vcmp.gt.f32.partialorder %v76, 0.0
  %vm93 = vcmp.gt.f32.partialorder %v77, 0.0
  %vm94 = vcmp.gt.f32.partialorder %v78, 0.0
  %vm95 = vcmp.gt.f32.partialorder %v79, 0.0
  %vm96 = vcmp.gt.f32.partialorder %v80, 0.0
  %vm97 = vcmp.gt.f32.partialorder %v81, 0.0
  %vm98 = vcmp.gt.f32.partialorder %v82, 0.0
  %vm99 = vcmp.gt.f32.partialorder %v83, 0.0
  %vm100 = vcmp.gt.f32.partialorder %v84, 0.0
  %vm101 = vcmp.gt.f32.partialorder %v85, 0.0
  %vm102 = vcmp.gt.f32.partialorder %v86, 0.0
  %vm103 = vcmp.gt.f32.partialorder %v87, 0.0
  %vm104 = vcmp.gt.f32.partialorder %v88, 0.0
  %vm105 = vcmp.gt.f32.partialorder %v89, 0.0
  %vm106 = vcmp.gt.f32.partialorder %v90, 0.0
  %vm107 = vcmp.gt.f32.partialorder %v91, 0.0
  %v108 = vmul.f32 %v76, 0.2
  %v109 = vmul.f32 %v77, 0.2
  %v110 = vmul.f32 %v78, 0.2
  %v111 = vmul.f32 %v79, 0.2
  %v112 = vmul.f32 %v80, 0.2
  %v113 = vmul.f32 %v81, 0.2
  %v114 = vmul.f32 %v82, 0.2
  %v115 = vmul.f32 %v83, 0.2
  %v116 = vmul.f32 %v84, 0.2
  %v117 = vmul.f32 %v85, 0.2
  %v118 = vmul.f32 %v86, 0.2
  %v119 = vmul.f32 %v87, 0.2
  %v120 = vmul.f32 %v88, 0.2
  %v121 = vmul.f32 %v89, 0.2
  %v122 = vmul.f32 %v90, 0.2
  %v123 = vmul.f32 %v91, 0.2
  %v124 = vsel %vm92, %v76, %v108
  %v125 = vsel %vm93, %v77, %v109
  %v126 = vsel %vm94, %v78, %v110
  %v127 = vsel %vm95, %v79, %v111
  %v128 = vsel %vm96, %v80, %v112
  %v129 = vsel %vm97, %v81, %v113
  %v130 = vsel %vm98, %v82, %v114
  %v131 = vsel %vm99, %v83, %v115
  %v132 = vsel %vm100, %v84, %v116
  %v133 = vsel %vm101, %v85, %v117
  %v134 = vsel %vm102, %v86, %v118
  %v135 = vsel %vm103, %v87, %v119
  %v136 = vsel %vm104, %v88, %v120
  %v137 = vsel %vm105, %v89, %v121
  %v138 = vsel %vm106, %v90, %v122
  %v139 = vsel %vm107, %v91, %v123
  %v140 = vpack.c.bf16 %v125, %v124
  %v141 = vpack.c.bf16 %v127, %v126
  %v142 = vpack.c.bf16 %v129, %v128
  %v143 = vpack.c.bf16 %v131, %v130
  %v144 = vpack.c.bf16 %v133, %v132
  %v145 = vpack.c.bf16 %v135, %v134
  %v146 = vpack.c.bf16 %v137, %v136
  %v147 = vpack.c.bf16 %v139, %v138
  %v156 = vunpack.c.l.b16 %v140
  %v157 = vunpack.c.h.b16 %v140
  %v158 = vunpack.c.l.b16 %v141
  %v159 = vunpack.c.h.b16 %v141
  %v160 = vunpack.c.l.b16 %v142
  %v161 = vunpack.c.h.b16 %v142
  %v162 = vunpack.c.l.b16 %v143
  %v163 = vunpack.c.h.b16 %v143
  %v164 = vunpack.c.l.b16 %v144
  %v165 = vunpack.c.h.b16 %v144
  %v166 = vunpack.c.l.b16 %v145
  %v167 = vunpack.c.h.b16 %v145
  %v168 = vunpack.c.l.b16 %v146
  %v169 = vunpack.c.h.b16 %v146
  %v170 = vunpack.c.l.b16 %v147
  %v171 = vunpack.c.h.b16 %v147
  %v172 = vpack.c.b16 %v156, %v156
  %v173 = vpack.c.b16 %v157, %v157
  %v174 = vpack.c.b16 %v158, %v158
  %v175 = vpack.c.b16 %v159, %v159
  %v176 = vpack.c.b16 %v160, %v160
  %v177 = vpack.c.b16 %v161, %v161
  %v178 = vpack.c.b16 %v162, %v162
  %v179 = vpack.c.b16 %v163, %v163
  %v180 = vpack.c.b16 %v164, %v164
  %v181 = vpack.c.b16 %v165, %v165
  %v182 = vpack.c.b16 %v166, %v166
  %v183 = vpack.c.b16 %v167, %v167
  %v184 = vpack.c.b16 %v168, %v168
  %v185 = vpack.c.b16 %v169, %v169
  %v186 = vpack.c.b16 %v170, %v170
  %v187 = vpack.c.b16 %v171, %v171
  %204 = vst [vmem:[%s3] sm:$0xf] %v172
  %205 = vst [vmem:[%s3 + $0x4] sm:$0xf] %v173
  %206 = vst [vmem:[%s3 + $0x8] sm:$0xf] %v174
  %207 = vst [vmem:[%s3 + $0xc] sm:$0xf] %v175
  %208 = vst [vmem:[%s3 + $0x10] sm:$0xf] %v176
  %209 = vst [vmem:[%s3 + $0x14] sm:$0xf] %v177
  %210 = vst [vmem:[%s3 + $0x18] sm:$0xf] %v178
  %211 = vst [vmem:[%s3 + $0x1c] sm:$0xf] %v179
  %212 = vst [vmem:[%s3 + $0x20] sm:$0xf] %v180
  %213 = vst [vmem:[%s3 + $0x24] sm:$0xf] %v181
  %214 = vst [vmem:[%s3 + $0x28] sm:$0xf] %v182
  %215 = vst [vmem:[%s3 + $0x2c] sm:$0xf] %v183
  %216 = vst [vmem:[%s3 + $0x30] sm:$0xf] %v184
  %217 = vst [vmem:[%s3 + $0x34] sm:$0xf] %v185
  %218 = vst [vmem:[%s3 + $0x38] sm:$0xf] %v186
  %219 = vst [vmem:[%s3 + $0x3c] sm:$0xf] %v187
  // Predicated region
  $region14: #{domain_classifier_forward.12} parent=0 // pred_check
    _
  $region15: #{domain_classifier_forward.12} parent=0 // pred_check_branch
    %221 = sbr.rel (0) target = $region17
  $region16: #{domain_classifier_forward.12} parent=0 // pred_region
    _
  $region17: #{domain_classifier_forward.12} parent=0 // pred_fallthru
    _
  // Predicated region
  $region18: #{domain_classifier_forward.12} parent=0 // pred_check
    _
  $region19: #{domain_classifier_forward.12} parent=0 // pred_check_branch
    %223 = sbr.rel (0) target = $region21
  $region20: #{domain_classifier_forward.12} parent=0 // pred_region
    _
  $region21: #{domain_classifier_forward.12} parent=0 // pred_fallthru
    _

// kernel: domain_classifier_forward.11
$region0: #{domain_classifier_forward.11}
  #allocation0 [shape = 'u32[]', space=smem, size = 0x4, offset = 0x4, fixed_abs, tag = 'smem constant byte address 0x4 - core index']
  #allocation1 [shape = 'u32[144,128]{1,0:T(1,128)}', space=vmem, size = 0x12000, scoped, tag = 'internal scratch']
  %s0 = inlined_call_operand.vmem [shape: bf16[128,256], index: 0, kind: input, shape index: {}]
  %s1 = inlined_call_operand.vmem [shape: bf16[256,128], index: 1, kind: input, shape index: {}]
  %s2 = inlined_call_operand.vmem [shape: bf16[128,128], index: 2, kind: output, shape index: {0}]
  %s3 = inlined_call_operand.vmem [shape: f32[1,1,128], index: 3, kind: output, shape index: {1}]
  %s4 = inlined_call_operand.vmem [shape: f32[1,1,128], index: 4, kind: output, shape index: {2}]
  %5 = xla_tuple %s2, %s3, %s4
  %s6 = sld [smem:[#allocation0]]
  $region34: #{domain_classifier_forward.11} parent=0
    _
  %s8 = ssub.s32 1, %s6
  %s9 = scalar_select 0, %s8, %s6
  // Predicated region
  $region2: #{domain_classifier_forward.11} parent=0 // pred_check
    _
  $region3: #{domain_classifier_forward.11} parent=0 // pred_check_branch
    %11 = sbr.rel (0) target = $region5
  $region4: #{domain_classifier_forward.11} parent=0 // pred_region
    _
  $region5: #{domain_classifier_forward.11} parent=0 // pred_fallthru
    _
  // Predicated region
  $region6: #{domain_classifier_forward.11} parent=0 // pred_check
    _
  $region7: #{domain_classifier_forward.11} parent=0 // pred_check_branch
    %13 = sbr.rel (0) target = $region9
  $region8: #{domain_classifier_forward.11} parent=0 // pred_region
    _
  $region9: #{domain_classifier_forward.11} parent=0 // pred_fallthru
    _
  %v15 = vld [vmem:[%s0] sm:$0xff]
  %v16 = vld [vmem:[%s0 + $0x8] sm:$0xff]
  %v17 = vld [vmem:[%s0 + $0x10] sm:$0xff]
  %v18 = vld [vmem:[%s0 + $0x18] sm:$0xff]
  %v19 = vld [vmem:[%s0 + $0x20] sm:$0xff]
  %v20 = vld [vmem:[%s0 + $0x28] sm:$0xff]
  %v21 = vld [vmem:[%s0 + $0x30] sm:$0xff]
  %v22 = vld [vmem:[%s0 + $0x38] sm:$0xff]
  %v23 = vld [vmem:[%s0 + $0x40] sm:$0xff]
  %v24 = vld [vmem:[%s0 + $0x48] sm:$0xff]
  %v25 = vld [vmem:[%s0 + $0x50] sm:$0xff]
  %v26 = vld [vmem:[%s0 + $0x58] sm:$0xff]
  %v27 = vld [vmem:[%s0 + $0x60] sm:$0xff]
  %v28 = vld [vmem:[%s0 + $0x68] sm:$0xff]
  %v29 = vld [vmem:[%s0 + $0x70] sm:$0xff]
  %v30 = vld [vmem:[%s0 + $0x78] sm:$0xff]
  %v31 = vld [vmem:[%s1] sm:$0xf]
  %v32 = vld [vmem:[%s1 + $0x4] sm:$0xf]
  %v33 = vld [vmem:[%s1 + $0x8] sm:$0xf]
  %v34 = vld [vmem:[%s1 + $0xc] sm:$0xf]
  %v35 = vld [vmem:[%s1 + $0x10] sm:$0xf]
  %v36 = vld [vmem:[%s1 + $0x14] sm:$0xf]
  %v37 = vld [vmem:[%s1 + $0x18] sm:$0xf]
  %v38 = vld [vmem:[%s1 + $0x1c] sm:$0xf]
  %v39 = vld [vmem:[%s1 + $0x20] sm:$0xf]
  %v40 = vld [vmem:[%s1 + $0x24] sm:$0xf]
  %v41 = vld [vmem:[%s1 + $0x28] sm:$0xf]
  %v42 = vld [vmem:[%s1 + $0x2c] sm:$0xf]
  %v43 = vld [vmem:[%s1 + $0x30] sm:$0xf]
  %v44 = vld [vmem:[%s1 + $0x34] sm:$0xf]
  %v45 = vld [vmem:[%s1 + $0x38] sm:$0xf]
  %v46 = vld [vmem:[%s1 + $0x3c] sm:$0xf]
  %v47 = vld [vmem:[%s1 + $0x40] sm:$0xf]
  %v48 = vld [vmem:[%s1 + $0x44] sm:$0xf]
  %v49 = vld [vmem:[%s1 + $0x48] sm:$0xf]
  %v50 = vld [vmem:[%s1 + $0x4c] sm:$0xf]
  %v51 = vld [vmem:[%s1 + $0x50] sm:$0xf]
  %v52 = vld [vmem:[%s1 + $0x54] sm:$0xf]
  %v53 = vld [vmem:[%s1 + $0x58] sm:$0xf]
  %v54 = vld [vmem:[%s1 + $0x5c] sm:$0xf]
  %v55 = vld [vmem:[%s1 + $0x60] sm:$0xf]
  %v56 = vld [vmem:[%s1 + $0x64] sm:$0xf]
  %v57 = vld [vmem:[%s1 + $0x68] sm:$0xf]
  %v58 = vld [vmem:[%s1 + $0x6c] sm:$0xf]
  %v59 = vld [vmem:[%s1 + $0x70] sm:$0xf]
  %v60 = vld [vmem:[%s1 + $0x74] sm:$0xf]
  %v61 = vld [vmem:[%s1 + $0x78] sm:$0xf]
  %v62 = vld [vmem:[%s1 + $0x7c] sm:$0xf]
  %v79 = vunpack.c.l.b16 %v15
  %v80 = vunpack.c.h.b16 %v15
  %v81 = vunpack.c.l.b16 %v16
  %v82 = vunpack.c.h.b16 %v16
  %v83 = vunpack.c.l.b16 %v17
  %v84 = vunpack.c.h.b16 %v17
  %v85 = vunpack.c.l.b16 %v18
  %v86 = vunpack.c.h.b16 %v18
  %v87 = vunpack.c.l.b16 %v19
  %v88 = vunpack.c.h.b16 %v19
  %v89 = vunpack.c.l.b16 %v20
  %v90 = vunpack.c.h.b16 %v20
  %v91 = vunpack.c.l.b16 %v21
  %v92 = vunpack.c.h.b16 %v21
  %v93 = vunpack.c.l.b16 %v22
  %v94 = vunpack.c.h.b16 %v22
  %v95 = vunpack.c.l.b16 %v23
  %v96 = vunpack.c.h.b16 %v23
  %v97 = vunpack.c.l.b16 %v24
  %v98 = vunpack.c.h.b16 %v24
  %v99 = vunpack.c.l.b16 %v25
  %v100 = vunpack.c.h.b16 %v25
  %v101 = vunpack.c.l.b16 %v26
  %v102 = vunpack.c.h.b16 %v26
  %v103 = vunpack.c.l.b16 %v27
  %v104 = vunpack.c.h.b16 %v27
  %v105 = vunpack.c.l.b16 %v28
  %v106 = vunpack.c.h.b16 %v28
  %v107 = vunpack.c.l.b16 %v29
  %v108 = vunpack.c.h.b16 %v29
  %v109 = vunpack.c.l.b16 %v30
  %v110 = vunpack.c.h.b16 %v30
  %v111 = vpack.c.b16 %v81, %v79
  %v112 = vpack.c.b16 %v82, %v80
  %v113 = vpack.c.b16 %v85, %v83
  %v114 = vpack.c.b16 %v86, %v84
  %v115 = vpack.c.b16 %v89, %v87
  %v116 = vpack.c.b16 %v90, %v88
  %v117 = vpack.c.b16 %v93, %v91
  %v118 = vpack.c.b16 %v94, %v92
  %v119 = vpack.c.b16 %v97, %v95
  %v120 = vpack.c.b16 %v98, %v96
  %v121 = vpack.c.b16 %v101, %v99
  %v122 = vpack.c.b16 %v102, %v100
  %v123 = vpack.c.b16 %v105, %v103
  %v124 = vpack.c.b16 %v106, %v104
  %v125 = vpack.c.b16 %v109, %v107
  %v126 = vpack.c.b16 %v110, %v108
  %v175 = vunpack.c.l.b16 %v31
  %v176 = vunpack.c.l.b16 %v32
  %v177 = vunpack.c.l.b16 %v33
  %v178 = vunpack.c.l.b16 %v34
  %v179 = vunpack.c.l.b16 %v35
  %v180 = vunpack.c.l.b16 %v36
  %v181 = vunpack.c.l.b16 %v37
  %v182 = vunpack.c.l.b16 %v38
  %v183 = vunpack.c.l.b16 %v39
  %v184 = vunpack.c.l.b16 %v40
  %v185 = vunpack.c.l.b16 %v41
  %v186 = vunpack.c.l.b16 %v42
  %v187 = vunpack.c.l.b16 %v43
  %v188 = vunpack.c.l.b16 %v44
  %v189 = vunpack.c.l.b16 %v45
  %v190 = vunpack.c.l.b16 %v46
  %v191 = vunpack.c.l.b16 %v47
  %v192 = vunpack.c.l.b16 %v48
  %v193 = vunpack.c.l.b16 %v49
  %v194 = vunpack.c.l.b16 %v50
  %v195 = vunpack.c.l.b16 %v51
  %v196 = vunpack.c.l.b16 %v52
  %v197 = vunpack.c.l.b16 %v53
  %v198 = vunpack.c.l.b16 %v54
  %v199 = vunpack.c.l.b16 %v55
  %v200 = vunpack.c.l.b16 %v56
  %v201 = vunpack.c.l.b16 %v57
  %v202 = vunpack.c.l.b16 %v58
  %v203 = vunpack.c.l.b16 %v59
  %v204 = vunpack.c.l.b16 %v60
  %v205 = vunpack.c.l.b16 %v61
  %v206 = vunpack.c.l.b16 %v62
  %v207 = vpack.c.b16 %v176, %v175
  %v208 = vpack.c.b16 %v178, %v177
  %v209 = vpack.c.b16 %v180, %v179
  %v210 = vpack.c.b16 %v182, %v181
  %v211 = vpack.c.b16 %v184, %v183
  %v212 = vpack.c.b16 %v186, %v185
  %v213 = vpack.c.b16 %v188, %v187
  %v214 = vpack.c.b16 %v190, %v189
  %v215 = vpack.c.b16 %v192, %v191
  %v216 = vpack.c.b16 %v194, %v193
  %v217 = vpack.c.b16 %v196, %v195
  %v218 = vpack.c.b16 %v198, %v197
  %v219 = vpack.c.b16 %v200, %v199
  %v220 = vpack.c.b16 %v202, %v201
  %v221 = vpack.c.b16 %v204, %v203
  %v222 = vpack.c.b16 %v206, %v205
  %239 = vmatprep.subr.bf16.mxu0 0
  %240 = vmatpush1.bf16.msra.mxu0 %v207
  %241 = vmatprep.subr.bf16.mxu0 0
  %242 = vmatpush1.bf16.msra.mxu0 %v208
  %243 = vmatprep.subr.bf16.mxu0 0
  %244 = vmatpush1.bf16.msra.mxu0 %v209
  %245 = vmatprep.subr.bf16.mxu0 0
  %246 = vmatpush1.bf16.msra.mxu0 %v210
  %247 = vmatprep.subr.bf16.mxu0 0
  %248 = vmatpush1.bf16.msra.mxu0 %v211
  %249 = vmatprep.subr.bf16.mxu0 0
  %250 = vmatpush1.bf16.msra.mxu0 %v212
  %251 = vmatprep.subr.bf16.mxu0 0
  %252 = vmatpush1.bf16.msra.mxu0 %v213
  %253 = vmatprep.subr.bf16.mxu0 0
  %254 = vmatpush1.bf16.msra.mxu0 %v214
  %255 = vmatprep.subr.bf16.mxu0 0
  %256 = vmatpush1.bf16.msra.mxu0 %v215
  %257 = vmatprep.subr.bf16.mxu0 0
  %258 = vmatpush1.bf16.msra.mxu0 %v216
  %259 = vmatprep.subr.bf16.mxu0 0
  %260 = vmatpush1.bf16.msra.mxu0 %v217
  %261 = vmatprep.subr.bf16.mxu0 0
  %262 = vmatpush1.bf16.msra.mxu0 %v218
  %263 = vmatprep.subr.bf16.mxu0 0
  %264 = vmatpush1.bf16.msra.mxu0 %v219
  %265 = vmatprep.subr.bf16.mxu0 0
  %266 = vmatpush1.bf16.msra.mxu0 %v220
  %267 = vmatprep.subr.bf16.mxu0 0
  %268 = vmatpush1.bf16.msra.mxu0 %v221
  %269 = vmatprep.subr.bf16.mxu0 0
  %270 = vmatpush1.bf16.msra.mxu0 %v222
  %271 = vmatprep.mubr.bf16.mxu0 %v112
  %272 = vmatmul.mubr.bf16.gmra.mrb[0].mxu0 %v111
  %v273 = vpop.f32.mrb[0].mxu0
  %v274 = vadd.f32 0.0, %v273
  %v275 = vpop.f32.mrb[0].mxu0
  %v276 = vpop.f32.mrb[0].mxu0
  %v277 = vadd.f32 0.0, %v276
  %v278 = vpop.f32.mrb[0].mxu0
  %279 = vmatprep.mubr.bf16.mxu0 %v114
  %280 = vmatmul.mubr.bf16.gmra.mrb[0].mxu0 %v113
  %v281 = vpop.f32.mrb[0].mxu0
  %v282 = vadd.f32 0.0, %v281
  %v283 = vpop.f32.mrb[0].mxu0
  %v284 = vpop.f32.mrb[0].mxu0
  %v285 = vadd.f32 0.0, %v284
  %v286 = vpop.f32.mrb[0].mxu0
  %287 = vmatprep.mubr.bf16.mxu0 %v116
  %288 = vmatmul.mubr.bf16.gmra.mrb[0].mxu0 %v115
  %v289 = vpop.f32.mrb[0].mxu0
  %v290 = vadd.f32 0.0, %v289
  %v291 = vpop.f32.mrb[0].mxu0
  %v292 = vpop.f32.mrb[0].mxu0
  %v293 = vadd.f32 0.0, %v292
  %v294 = vpop.f32.mrb[0].mxu0
  %295 = vmatprep.mubr.bf16.mxu0 %v118
  %296 = vmatmul.mubr.bf16.gmra.mrb[0].mxu0 %v117
  %v297 = vpop.f32.mrb[0].mxu0
  %v298 = vadd.f32 0.0, %v297
  %v299 = vpop.f32.mrb[0].mxu0
  %v300 = vpop.f32.mrb[0].mxu0
  %v301 = vadd.f32 0.0, %v300
  %v302 = vpop.f32.mrb[0].mxu0
  %303 = vmatprep.mubr.bf16.mxu0 %v120
  %304 = vmatmul.mubr.bf16.gmra.mrb[0].mxu0 %v119
  %v305 = vpop.f32.mrb[0].mxu0
  %v306 = vadd.f32 0.0, %v305
  %v307 = vpop.f32.mrb[0].mxu0
  %v308 = vpop.f32.mrb[0].mxu0
  %v309 = vadd.f32 0.0, %v308
  %v310 = vpop.f32.mrb[0].mxu0
  %311 = vmatprep.mubr.bf16.mxu0 %v122
  %312 = vmatmul.mubr.bf16.gmra.mrb[0].mxu0 %v121
  %v313 = vpop.f32.mrb[0].mxu0
  %v314 = vadd.f32 0.0, %v313
  %v315 = vpop.f32.mrb[0].mxu0
  %v316 = vpop.f32.mrb[0].mxu0
  %v317 = vadd.f32 0.0, %v316
  %v318 = vpop.f32.mrb[0].mxu0
  %319 = vmatprep.mubr.bf16.mxu0 %v124
  %320 = vmatmul.mubr.bf16.gmra.mrb[0].mxu0 %v123
  %v321 = vpop.f32.mrb[0].mxu0
  %v322 = vadd.f32 0.0, %v321
  %v323 = vpop.f32.mrb[0].mxu0
  %v324 = vpop.f32.mrb[0].mxu0
  %v325 = vadd.f32 0.0, %v324
  %v326 = vpop.f32.mrb[0].mxu0
  %327 = vmatprep.mubr.bf16.mxu0 %v126
  %328 = vmatmul.mubr.bf16.gmra.mrb[0].mxu0 %v125
  %v329 = vpop.f32.mrb[0].mxu0
  %v330 = vadd.f32 0.0, %v329
  %v331 = vpop.f32.mrb[0].mxu0
  %v332 = vpop.f32.mrb[0].mxu0
  %v333 = vadd.f32 0.0, %v332
  %v334 = vpop.f32.mrb[0].mxu0
  %335 = vdwg.mxu0
  %v336 = vpack.c.bf16 %v277, %v274
  %v337 = vpack.c.bf16 %v285, %v282
  %v338 = vpack.c.bf16 %v293, %v290
  %v339 = vpack.c.bf16 %v301, %v298
  %v340 = vpack.c.bf16 %v309, %v306
  %v341 = vpack.c.bf16 %v317, %v314
  %v342 = vpack.c.bf16 %v325, %v322
  %v343 = vpack.c.bf16 %v333, %v330
  %v352 = vunpack.c.l.b16 %v336
  %v353 = vunpack.c.h.b16 %v336
  %v354 = vunpack.c.l.b16 %v337
  %v355 = vunpack.c.h.b16 %v337
  %v356 = vunpack.c.l.b16 %v338
  %v357 = vunpack.c.h.b16 %v338
  %v358 = vunpack.c.l.b16 %v339
  %v359 = vunpack.c.h.b16 %v339
  %v360 = vunpack.c.l.b16 %v340
  %v361 = vunpack.c.h.b16 %v340
  %v362 = vunpack.c.l.b16 %v341
  %v363 = vunpack.c.h.b16 %v341
  %v364 = vunpack.c.l.b16 %v342
  %v365 = vunpack.c.h.b16 %v342
  %v366 = vunpack.c.l.b16 %v343
  %v367 = vunpack.c.h.b16 %v343
  %v368 = vpack.c.b16 %v352, %v352
  %v369 = vpack.c.b16 %v353, %v353
  %v370 = vpack.c.b16 %v354, %v354
  %v371 = vpack.c.b16 %v355, %v355
  %v372 = vpack.c.b16 %v356, %v356
  %v373 = vpack.c.b16 %v357, %v357
  %v374 = vpack.c.b16 %v358, %v358
  %v375 = vpack.c.b16 %v359, %v359
  %v376 = vpack.c.b16 %v360, %v360
  %v377 = vpack.c.b16 %v361, %v361
  %v378 = vpack.c.b16 %v362, %v362
  %v379 = vpack.c.b16 %v363, %v363
  %v380 = vpack.c.b16 %v364, %v364
  %v381 = vpack.c.b16 %v365, %v365
  %v382 = vpack.c.b16 %v366, %v366
  %v383 = vpack.c.b16 %v367, %v367
  %400 = vst [vmem:[%s2] sm:$0xf] %v368
  %401 = vst [vmem:[%s2 + $0x4] sm:$0xf] %v369
  %402 = vst [vmem:[%s2 + $0x8] sm:$0xf] %v370
  %403 = vst [vmem:[%s2 + $0xc] sm:$0xf] %v371
  %404 = vst [vmem:[%s2 + $0x10] sm:$0xf] %v372
  %405 = vst [vmem:[%s2 + $0x14] sm:$0xf] %v373
  %406 = vst [vmem:[%s2 + $0x18] sm:$0xf] %v374
  %407 = vst [vmem:[%s2 + $0x1c] sm:$0xf] %v375
  %408 = vst [vmem:[%s2 + $0x20] sm:$0xf] %v376
  %409 = vst [vmem:[%s2 + $0x24] sm:$0xf] %v377
  %410 = vst [vmem:[%s2 + $0x28] sm:$0xf] %v378
  %411 = vst [vmem:[%s2 + $0x2c] sm:$0xf] %v379
  %412 = vst [vmem:[%s2 + $0x30] sm:$0xf] %v380
  %413 = vst [vmem:[%s2 + $0x34] sm:$0xf] %v381
  %414 = vst [vmem:[%s2 + $0x38] sm:$0xf] %v382
  %415 = vst [vmem:[%s2 + $0x3c] sm:$0xf] %v383
  %v416 = vunpack.c.l.bf16 %v336
  %v417 = vunpack.c.h.bf16 %v336
  %v418 = vunpack.c.l.bf16 %v337
  %v419 = vunpack.c.h.bf16 %v337
  %v420 = vunpack.c.l.bf16 %v338
  %v421 = vunpack.c.h.bf16 %v338
  %v422 = vunpack.c.l.bf16 %v339
  %v423 = vunpack.c.h.bf16 %v339
  %v424 = vunpack.c.l.bf16 %v340
  %v425 = vunpack.c.h.bf16 %v340
  %v426 = vunpack.c.l.bf16 %v341
  %v427 = vunpack.c.h.bf16 %v341
  %v428 = vunpack.c.l.bf16 %v342
  %v429 = vunpack.c.h.bf16 %v342
  %v430 = vunpack.c.l.bf16 %v343
  %v431 = vunpack.c.h.bf16 %v343
  %v432 = vadd.f32 %v416, %v417
  %v433 = vadd.f32 %v432, %v418
  %v434 = vadd.f32 %v433, %v419
  %v435 = vadd.f32 %v434, %v420
  %v436 = vadd.f32 %v435, %v421
  %v437 = vadd.f32 %v436, %v422
  %v438 = vadd.f32 %v437, %v423
  %v439 = vadd.f32 %v438, %v424
  %v440 = vadd.f32 %v439, %v425
  %v441 = vadd.f32 %v440, %v426
  %v442 = vadd.f32 %v441, %v427
  %v443 = vadd.f32 %v442, %v428
  %v444 = vadd.f32 %v443, %v429
  %v445 = vadd.f32 %v444, %v430
  %v446 = vadd.f32 %v445, %v431
  %v447 = vrot.slane %v446, 4
  %v448 = vadd.f32 %v446, %v447
  %v449 = vrot.slane %v448, 2
  %v450 = vadd.f32 %v448, %v449
  %v451 = vrot.slane %v450, 1
  %v452 = vadd.f32 %v450, %v451
  %453 = vst [vmem:[%s3] sm:$0x1] %v452
  %v454 = vmul.f32 %v416, %v416
  %v455 = vmul.f32 %v417, %v417
  %v456 = vmul.f32 %v418, %v418
  %v457 = vmul.f32 %v419, %v419
  %v458 = vmul.f32 %v420, %v420
  %v459 = vmul.f32 %v421, %v421
  %v460 = vmul.f32 %v422, %v422
  %v461 = vmul.f32 %v423, %v423
  %v462 = vmul.f32 %v424, %v424
  %v463 = vmul.f32 %v425, %v425
  %v464 = vmul.f32 %v426, %v426
  %v465 = vmul.f32 %v427, %v427
  %v466 = vmul.f32 %v428, %v428
  %v467 = vmul.f32 %v429, %v429
  %v468 = vmul.f32 %v430, %v430
  %v469 = vmul.f32 %v431, %v431
  %v470 = vadd.f32 %v454, %v455
  %v471 = vadd.f32 %v470, %v456
  %v472 = vadd.f32 %v471, %v457
  %v473 = vadd.f32 %v472, %v458
  %v474 = vadd.f32 %v473, %v459
  %v475 = vadd.f32 %v474, %v460
  %v476 = vadd.f32 %v475, %v461
  %v477 = vadd.f32 %v476, %v462
  %v478 = vadd.f32 %v477, %v463
  %v479 = vadd.f32 %v478, %v464
  %v480 = vadd.f32 %v479, %v465
  %v481 = vadd.f32 %v480, %v466
  %v482 = vadd.f32 %v481, %v467
  %v483 = vadd.f32 %v482, %v468
  %v484 = vadd.f32 %v483, %v469
  %v485 = vrot.slane %v484, 4
  %v486 = vadd.f32 %v484, %v485
  %v487 = vrot.slane %v486, 2
  %v488 = vadd.f32 %v486, %v487
  %v489 = vrot.slane %v488, 1
  %v490 = vadd.f32 %v488, %v489
  %491 = vst [vmem:[%s4] sm:$0x1] %v490
  // Predicated region
  $region10: #{domain_classifier_forward.11} parent=0 // pred_check
    _
  $region11: #{domain_classifier_forward.11} parent=0 // pred_check_branch
    %493 = sbr.rel (0) target = $region13
  $region12: #{domain_classifier_forward.11} parent=0 // pred_region
    _
  $region13: #{domain_classifier_forward.11} parent=0 // pred_fallthru
    _
  // Predicated region
  $region14: #{domain_classifier_forward.11} parent=0 // pred_check
    _
  $region15: #{domain_classifier_forward.11} parent=0 // pred_check_branch
    %495 = sbr.rel (0) target = $region17
  $region16: #{domain_classifier_forward.11} parent=0 // pred_region
    _
  $region17: #{domain_classifier_forward.11} parent=0 // pred_fallthru
    _
  // Predicated region
  $region18: #{domain_classifier_forward.11} parent=0 // pred_check
    _
  $region19: #{domain_classifier_forward.11} parent=0 // pred_check_branch
    %497 = sbr.rel (0) target = $region21
  $region20: #{domain_classifier_forward.11} parent=0 // pred_region
    _
  $region21: #{domain_classifier_forward.11} parent=0 // pred_fallthru
    _
  // Predicated region
  $region22: #{domain_classifier_forward.11} parent=0 // pred_check
    _
  $region23: #{domain_classifier_forward.11} parent=0 // pred_check_branch
    %499 = sbr.rel (0) target = $region25
  $region24: #{domain_classifier_forward.11} parent=0 // pred_region
    _
  $region25: #{domain_classifier_forward.11} parent=0 // pred_fallthru
    _
  // Predicated region
  $region26: #{domain_classifier_forward.11} parent=0 // pred_check
    _
  $region27: #{domain_classifier_forward.11} parent=0 // pred_check_branch
    %501 = sbr.rel (0) target = $region29
  $region28: #{domain_classifier_forward.11} parent=0 // pred_region
    _
  $region29: #{domain_classifier_forward.11} parent=0 // pred_fallthru
    _
  // Predicated region
  $region30: #{domain_classifier_forward.11} parent=0 // pred_check
    _
  $region31: #{domain_classifier_forward.11} parent=0 // pred_check_branch
    %503 = sbr.rel (0) target = $region33
  $region32: #{domain_classifier_forward.11} parent=0 // pred_region
    _
  $region33: #{domain_classifier_forward.11} parent=0 // pred_fallthru
    _

// kernel: domain_classifier_forward.14
$region0: #{domain_classifier_forward.14}
  #allocation0 [shape = 'u32[]', space=smem, size = 0x4, offset = 0x4, fixed_abs, tag = 'smem constant byte address 0x4 - core index']
  #allocation1 [shape = 'u32[144,128]{1,0:T(1,128)}', space=vmem, size = 0x12000, scoped, tag = 'internal scratch']
  %s0 = inlined_call_operand.vmem [shape: bf16[32,128], index: 0, kind: input, shape index: {}]
  %s1 = inlined_call_operand.vmem [shape: f32[1,128], index: 1, kind: input, shape index: {}]
  %s2 = inlined_call_operand.vmem [shape: f32[1,128], index: 2, kind: input, shape index: {}]
  %s3 = inlined_call_operand.vmem [shape: bf16[32,128], index: 3, kind: output, shape index: {}]
  %s4 = sld [smem:[#allocation0]]
  $region22: #{domain_classifier_forward.14} parent=0
    _
  %s6 = ssub.s32 1, %s4
  %s7 = scalar_select 0, %s6, %s4
  // Predicated region
  $region2: #{domain_classifier_forward.14} parent=0 // pred_check
    _
  $region3: #{domain_classifier_forward.14} parent=0 // pred_check_branch
    %9 = sbr.rel (0) target = $region5
  $region4: #{domain_classifier_forward.14} parent=0 // pred_region
    _
  $region5: #{domain_classifier_forward.14} parent=0 // pred_fallthru
    _
  // Predicated region
  $region6: #{domain_classifier_forward.14} parent=0 // pred_check
    _
  $region7: #{domain_classifier_forward.14} parent=0 // pred_check_branch
    %11 = sbr.rel (0) target = $region9
  $region8: #{domain_classifier_forward.14} parent=0 // pred_region
    _
  $region9: #{domain_classifier_forward.14} parent=0 // pred_fallthru
    _
  // Predicated region
  $region10: #{domain_classifier_forward.14} parent=0 // pred_check
    _
  $region11: #{domain_classifier_forward.14} parent=0 // pred_check_branch
    %13 = sbr.rel (0) target = $region13
  $region12: #{domain_classifier_forward.14} parent=0 // pred_region
    _
  $region13: #{domain_classifier_forward.14} parent=0 // pred_fallthru
    _
  %v14 = vld [vmem:[%s0] sm:$0xf]
  %v15 = vld [vmem:[%s0 + $0x4] sm:$0xf]
  %v16 = vld [vmem:[%s0 + $0x8] sm:$0xf]
  %v17 = vld [vmem:[%s0 + $0xc] sm:$0xf]
  %v18 = vunpack.c.l.bf16 %v14
  %v19 = vunpack.c.l.bf16 %v15
  %v20 = vunpack.c.l.bf16 %v16
  %v21 = vunpack.c.l.bf16 %v17
  %v22 = vld [vmem:[%s1] sm:$0x1]
  %v24 = vlaneseq
  %v25 = vshrl.u32 %v24, 7
  %v26 = vsub.s32 0, %v25
  %v27 = vrot.slane %v22, %v26
  %v29 = vmul.f32 %v18, %v27
  %v30 = vmul.f32 %v19, %v27
  %v31 = vmul.f32 %v20, %v27
  %v32 = vmul.f32 %v21, %v27
  %v33 = vld [vmem:[%s2] sm:$0x1]
  %v35 = vlaneseq
  %v36 = vshrl.u32 %v35, 7
  %v37 = vsub.s32 0, %v36
  %v38 = vrot.slane %v33, %v37
  %v40 = vadd.f32 %v29, %v38
  %v41 = vadd.f32 %v30, %v38
  %v42 = vadd.f32 %v31, %v38
  %v43 = vadd.f32 %v32, %v38
  %vm44 = vcmp.gt.f32.partialorder %v40, 0.0
  %vm45 = vcmp.gt.f32.partialorder %v41, 0.0
  %vm46 = vcmp.gt.f32.partialorder %v42, 0.0
  %vm47 = vcmp.gt.f32.partialorder %v43, 0.0
  %v48 = vmul.f32 %v40, 0.2
  %v49 = vmul.f32 %v41, 0.2
  %v50 = vmul.f32 %v42, 0.2
  %v51 = vmul.f32 %v43, 0.2
  %v52 = vsel %vm44, %v40, %v48
  %v53 = vsel %vm45, %v41, %v49
  %v54 = vsel %vm46, %v42, %v50
  %v55 = vsel %vm47, %v43, %v51
  %v56 = vpack.c.bf16 %v53, %v52
  %v57 = vpack.c.bf16 %v55, %v54
  %v60 = vunpack.c.l.b16 %v56
  %v61 = vunpack.c.h.b16 %v56
  %v62 = vunpack.c.l.b16 %v57
  %v63 = vunpack.c.h.b16 %v57
  %v64 = vpack.c.b16 %v60, %v60
  %v65 = vpack.c.b16 %v61, %v61
  %v66 = vpack.c.b16 %v62, %v62
  %v67 = vpack.c.b16 %v63, %v63
  %72 = vst [vmem:[%s3] sm:$0xf] %v64
  %73 = vst [vmem:[%s3 + $0x4] sm:$0xf] %v65
  %74 = vst [vmem:[%s3 + $0x8] sm:$0xf] %v66
  %75 = vst [vmem:[%s3 + $0xc] sm:$0xf] %v67
  // Predicated region
  $region14: #{domain_classifier_forward.14} parent=0 // pred_check
    _
  $region15: #{domain_classifier_forward.14} parent=0 // pred_check_branch
    %77 = sbr.rel (0) target = $region17
  $region16: #{domain_classifier_forward.14} parent=0 // pred_region
    _
  $region17: #{domain_classifier_forward.14} parent=0 // pred_fallthru
    _
  // Predicated region
  $region18: #{domain_classifier_forward.14} parent=0 // pred_check
    _
  $region19: #{domain_classifier_forward.14} parent=0 // pred_check_branch
    %79 = sbr.rel (0) target = $region21
  $region20: #{domain_classifier_forward.14} parent=0 // pred_region
    _
  $region21: #{domain_classifier_forward.14} parent=0 // pred_fallthru
    _

// kernel: domain_classifier_forward.13
$region0: #{domain_classifier_forward.13}
  #allocation0 [shape = 'u32[]', space=smem, size = 0x4, offset = 0x4, fixed_abs, tag = 'smem constant byte address 0x4 - core index']
  #allocation1 [shape = 'u32[144,128]{1,0:T(1,128)}', space=vmem, size = 0x12000, scoped, tag = 'internal scratch']
  %s0 = inlined_call_operand.vmem [shape: bf16[32,512], index: 0, kind: input, shape index: {}]
  %s1 = inlined_call_operand.vmem [shape: bf16[512,128], index: 1, kind: input, shape index: {}]
  %s2 = inlined_call_operand.vmem [shape: bf16[32,128], index: 2, kind: output, shape index: {0}]
  %s3 = inlined_call_operand.vmem [shape: f32[1,1,128], index: 3, kind: output, shape index: {1}]
  %s4 = inlined_call_operand.vmem [shape: f32[1,1,128], index: 4, kind: output, shape index: {2}]
  %5 = xla_tuple %s2, %s3, %s4
  %s6 = sld [smem:[#allocation0]]
  $region34: #{domain_classifier_forward.13} parent=0
    _
  %s8 = ssub.s32 1, %s6
  %s9 = scalar_select 0, %s8, %s6
  // Predicated region
  $region2: #{domain_classifier_forward.13} parent=0 // pred_check
    _
  $region3: #{domain_classifier_forward.13} parent=0 // pred_check_branch
    %11 = sbr.rel (0) target = $region5
  $region4: #{domain_classifier_forward.13} parent=0 // pred_region
    _
  $region5: #{domain_classifier_forward.13} parent=0 // pred_fallthru
    _
  // Predicated region
  $region6: #{domain_classifier_forward.13} parent=0 // pred_check
    _
  $region7: #{domain_classifier_forward.13} parent=0 // pred_check_branch
    %13 = sbr.rel (0) target = $region9
  $region8: #{domain_classifier_forward.13} parent=0 // pred_region
    _
  $region9: #{domain_classifier_forward.13} parent=0 // pred_fallthru
    _
  %v15 = vld [vmem:[%s0] sm:$0xff]
  %v16 = vld [vmem:[%s0 + $0x8] sm:$0xff]
  %v17 = vld [vmem:[%s0 + $0x10] sm:$0xff]
  %v18 = vld [vmem:[%s0 + $0x18] sm:$0xff]
  %v19 = vld [vmem:[%s0 + $0x20] sm:$0xff]
  %v20 = vld [vmem:[%s0 + $0x28] sm:$0xff]
  %v21 = vld [vmem:[%s0 + $0x30] sm:$0xff]
  %v22 = vld [vmem:[%s0 + $0x38] sm:$0xff]
  %v23 = vld [vmem:[%s1] sm:$0xf]
  %v24 = vld [vmem:[%s1 + $0x4] sm:$0xf]
  %v25 = vld [vmem:[%s1 + $0x8] sm:$0xf]
  %v26 = vld [vmem:[%s1 + $0xc] sm:$0xf]
  %v27 = vld [vmem:[%s1 + $0x10] sm:$0xf]
  %v28 = vld [vmem:[%s1 + $0x14] sm:$0xf]
  %v29 = vld [vmem:[%s1 + $0x18] sm:$0xf]
  %v30 = vld [vmem:[%s1 + $0x1c] sm:$0xf]
  %v31 = vld [vmem:[%s1 + $0x20] sm:$0xf]
  %v32 = vld [vmem:[%s1 + $0x24] sm:$0xf]
  %v33 = vld [vmem:[%s1 + $0x28] sm:$0xf]
  %v34 = vld [vmem:[%s1 + $0x2c] sm:$0xf]
  %v35 = vld [vmem:[%s1 + $0x30] sm:$0xf]
  %v36 = vld [vmem:[%s1 + $0x34] sm:$0xf]
  %v37 = vld [vmem:[%s1 + $0x38] sm:$0xf]
  %v38 = vld [vmem:[%s1 + $0x3c] sm:$0xf]
  %v39 = vld [vmem:[%s1 + $0x40] sm:$0xf]
  %v40 = vld [vmem:[%s1 + $0x44] sm:$0xf]
  %v41 = vld [vmem:[%s1 + $0x48] sm:$0xf]
  %v42 = vld [vmem:[%s1 + $0x4c] sm:$0xf]
  %v43 = vld [vmem:[%s1 + $0x50] sm:$0xf]
  %v44 = vld [vmem:[%s1 + $0x54] sm:$0xf]
  %v45 = vld [vmem:[%s1 + $0x58] sm:$0xf]
  %v46 = vld [vmem:[%s1 + $0x5c] sm:$0xf]
  %v47 = vld [vmem:[%s1 + $0x60] sm:$0xf]
  %v48 = vld [vmem:[%s1 + $0x64] sm:$0xf]
  %v49 = vld [vmem:[%s1 + $0x68] sm:$0xf]
  %v50 = vld [vmem:[%s1 + $0x6c] sm:$0xf]
  %v51 = vld [vmem:[%s1 + $0x70] sm:$0xf]
  %v52 = vld [vmem:[%s1 + $0x74] sm:$0xf]
  %v53 = vld [vmem:[%s1 + $0x78] sm:$0xf]
  %v54 = vld [vmem:[%s1 + $0x7c] sm:$0xf]
  %v55 = vld [vmem:[%s1 + $0x80] sm:$0xf]
  %v56 = vld [vmem:[%s1 + $0x84] sm:$0xf]
  %v57 = vld [vmem:[%s1 + $0x88] sm:$0xf]
  %v58 = vld [vmem:[%s1 + $0x8c] sm:$0xf]
  %v59 = vld [vmem:[%s1 + $0x90] sm:$0xf]
  %v60 = vld [vmem:[%s1 + $0x94] sm:$0xf]
  %v61 = vld [vmem:[%s1 + $0x98] sm:$0xf]
  %v62 = vld [vmem:[%s1 + $0x9c] sm:$0xf]
  %v63 = vld [vmem:[%s1 + $0xa0] sm:$0xf]
  %v64 = vld [vmem:[%s1 + $0xa4] sm:$0xf]
  %v65 = vld [vmem:[%s1 + $0xa8] sm:$0xf]
  %v66 = vld [vmem:[%s1 + $0xac] sm:$0xf]
  %v67 = vld [vmem:[%s1 + $0xb0] sm:$0xf]
  %v68 = vld [vmem:[%s1 + $0xb4] sm:$0xf]
  %v69 = vld [vmem:[%s1 + $0xb8] sm:$0xf]
  %v70 = vld [vmem:[%s1 + $0xbc] sm:$0xf]
  %v71 = vld [vmem:[%s1 + $0xc0] sm:$0xf]
  %v72 = vld [vmem:[%s1 + $0xc4] sm:$0xf]
  %v73 = vld [vmem:[%s1 + $0xc8] sm:$0xf]
  %v74 = vld [vmem:[%s1 + $0xcc] sm:$0xf]
  %v75 = vld [vmem:[%s1 + $0xd0] sm:$0xf]
  %v76 = vld [vmem:[%s1 + $0xd4] sm:$0xf]
  %v77 = vld [vmem:[%s1 + $0xd8] sm:$0xf]
  %v78 = vld [vmem:[%s1 + $0xdc] sm:$0xf]
  %v79 = vld [vmem:[%s1 + $0xe0] sm:$0xf]
  %v80 = vld [vmem:[%s1 + $0xe4] sm:$0xf]
  %v81 = vld [vmem:[%s1 + $0xe8] sm:$0xf]
  %v82 = vld [vmem:[%s1 + $0xec] sm:$0xf]
  %v83 = vld [vmem:[%s1 + $0xf0] sm:$0xf]
  %v84 = vld [vmem:[%s1 + $0xf4] sm:$0xf]
  %v85 = vld [vmem:[%s1 + $0xf8] sm:$0xf]
  %v86 = vld [vmem:[%s1 + $0xfc] sm:$0xf]
  %v95 = vunpack.c.l.b16 %v15
  %v96 = vunpack.c.h.b16 %v15
  %v97 = vunpack.c.l.b16 %v16
  %v98 = vunpack.c.h.b16 %v16
  %v99 = vunpack.c.l.b16 %v17
  %v100 = vunpack.c.h.b16 %v17
  %v101 = vunpack.c.l.b16 %v18
  %v102 = vunpack.c.h.b16 %v18
  %v103 = vunpack.c.l.b16 %v19
  %v104 = vunpack.c.h.b16 %v19
  %v105 = vunpack.c.l.b16 %v20
  %v106 = vunpack.c.h.b16 %v20
  %v107 = vunpack.c.l.b16 %v21
  %v108 = vunpack.c.h.b16 %v21
  %v109 = vunpack.c.l.b16 %v22
  %v110 = vunpack.c.h.b16 %v22
  %v111 = vpack.c.b16 %v99, %v95
  %v112 = vpack.c.b16 %v100, %v96
  %v113 = vpack.c.b16 %v101, %v97
  %v114 = vpack.c.b16 %v102, %v98
  %v115 = vpack.c.b16 %v107, %v103
  %v116 = vpack.c.b16 %v108, %v104
  %v117 = vpack.c.b16 %v109, %v105
  %v118 = vpack.c.b16 %v110, %v106
  %v191 = vunpack.c.l.b16 %v23
  %v192 = vunpack.c.l.b16 %v24
  %v193 = vunpack.c.l.b16 %v25
  %v194 = vunpack.c.l.b16 %v26
  %v195 = vunpack.c.l.b16 %v27
  %v196 = vunpack.c.l.b16 %v28
  %v197 = vunpack.c.l.b16 %v29
  %v198 = vunpack.c.l.b16 %v30
  %v199 = vunpack.c.l.b16 %v31
  %v200 = vunpack.c.l.b16 %v32
  %v201 = vunpack.c.l.b16 %v33
  %v202 = vunpack.c.l.b16 %v34
  %v203 = vunpack.c.l.b16 %v35
  %v204 = vunpack.c.l.b16 %v36
  %v205 = vunpack.c.l.b16 %v37
  %v206 = vunpack.c.l.b16 %v38
  %v207 = vunpack.c.l.b16 %v39
  %v208 = vunpack.c.l.b16 %v40
  %v209 = vunpack.c.l.b16 %v41
  %v210 = vunpack.c.l.b16 %v42
  %v211 = vunpack.c.l.b16 %v43
  %v212 = vunpack.c.l.b16 %v44
  %v213 = vunpack.c.l.b16 %v45
  %v214 = vunpack.c.l.b16 %v46
  %v215 = vunpack.c.l.b16 %v47
  %v216 = vunpack.c.l.b16 %v48
  %v217 = vunpack.c.l.b16 %v49
  %v218 = vunpack.c.l.b16 %v50
  %v219 = vunpack.c.l.b16 %v51
  %v220 = vunpack.c.l.b16 %v52
  %v221 = vunpack.c.l.b16 %v53
  %v222 = vunpack.c.l.b16 %v54
  %v223 = vunpack.c.l.b16 %v55
  %v224 = vunpack.c.l.b16 %v56
  %v225 = vunpack.c.l.b16 %v57
  %v226 = vunpack.c.l.b16 %v58
  %v227 = vunpack.c.l.b16 %v59
  %v228 = vunpack.c.l.b16 %v60
  %v229 = vunpack.c.l.b16 %v61
  %v230 = vunpack.c.l.b16 %v62
  %v231 = vunpack.c.l.b16 %v63
  %v232 = vunpack.c.l.b16 %v64
  %v233 = vunpack.c.l.b16 %v65
  %v234 = vunpack.c.l.b16 %v66
  %v235 = vunpack.c.l.b16 %v67
  %v236 = vunpack.c.l.b16 %v68
  %v237 = vunpack.c.l.b16 %v69
  %v238 = vunpack.c.l.b16 %v70
  %v239 = vunpack.c.l.b16 %v71
  %v240 = vunpack.c.l.b16 %v72
  %v241 = vunpack.c.l.b16 %v73
  %v242 = vunpack.c.l.b16 %v74
  %v243 = vunpack.c.l.b16 %v75
  %v244 = vunpack.c.l.b16 %v76
  %v245 = vunpack.c.l.b16 %v77
  %v246 = vunpack.c.l.b16 %v78
  %v247 = vunpack.c.l.b16 %v79
  %v248 = vunpack.c.l.b16 %v80
  %v249 = vunpack.c.l.b16 %v81
  %v250 = vunpack.c.l.b16 %v82
  %v251 = vunpack.c.l.b16 %v83
  %v252 = vunpack.c.l.b16 %v84
  %v253 = vunpack.c.l.b16 %v85
  %v254 = vunpack.c.l.b16 %v86
  %v255 = vpack.c.b16 %v192, %v191
  %v256 = vpack.c.b16 %v194, %v193
  %v257 = vpack.c.b16 %v196, %v195
  %v258 = vpack.c.b16 %v198, %v197
  %v259 = vpack.c.b16 %v200, %v199
  %v260 = vpack.c.b16 %v202, %v201
  %v261 = vpack.c.b16 %v204, %v203
  %v262 = vpack.c.b16 %v206, %v205
  %v263 = vpack.c.b16 %v208, %v207
  %v264 = vpack.c.b16 %v210, %v209
  %v265 = vpack.c.b16 %v212, %v211
  %v266 = vpack.c.b16 %v214, %v213
  %v267 = vpack.c.b16 %v216, %v215
  %v268 = vpack.c.b16 %v218, %v217
  %v269 = vpack.c.b16 %v220, %v219
  %v270 = vpack.c.b16 %v222, %v221
  %v271 = vpack.c.b16 %v224, %v223
  %v272 = vpack.c.b16 %v226, %v225
  %v273 = vpack.c.b16 %v228, %v227
  %v274 = vpack.c.b16 %v230, %v229
  %v275 = vpack.c.b16 %v232, %v231
  %v276 = vpack.c.b16 %v234, %v233
  %v277 = vpack.c.b16 %v236, %v235
  %v278 = vpack.c.b16 %v238, %v237
  %v279 = vpack.c.b16 %v240, %v239
  %v280 = vpack.c.b16 %v242, %v241
  %v281 = vpack.c.b16 %v244, %v243
  %v282 = vpack.c.b16 %v246, %v245
  %v283 = vpack.c.b16 %v248, %v247
  %v284 = vpack.c.b16 %v250, %v249
  %v285 = vpack.c.b16 %v252, %v251
  %v286 = vpack.c.b16 %v254, %v253
  %319 = vmatprep.subr.bf16.mxu0 0
  %320 = vmatpush1.bf16.msra.mxu0 %v255
  %321 = vmatprep.subr.bf16.mxu0 0
  %322 = vmatpush1.bf16.msra.mxu0 %v256
  %323 = vmatprep.subr.bf16.mxu0 0
  %324 = vmatpush1.bf16.msra.mxu0 %v257
  %325 = vmatprep.subr.bf16.mxu0 0
  %326 = vmatpush1.bf16.msra.mxu0 %v258
  %327 = vmatprep.subr.bf16.mxu0 0
  %328 = vmatpush1.bf16.msra.mxu0 %v259
  %329 = vmatprep.subr.bf16.mxu0 0
  %330 = vmatpush1.bf16.msra.mxu0 %v260
  %331 = vmatprep.subr.bf16.mxu0 0
  %332 = vmatpush1.bf16.msra.mxu0 %v261
  %333 = vmatprep.subr.bf16.mxu0 0
  %334 = vmatpush1.bf16.msra.mxu0 %v262
  %335 = vmatprep.subr.bf16.mxu0 0
  %336 = vmatpush1.bf16.msra.mxu0 %v263
  %337 = vmatprep.subr.bf16.mxu0 0
  %338 = vmatpush1.bf16.msra.mxu0 %v264
  %339 = vmatprep.subr.bf16.mxu0 0
  %340 = vmatpush1.bf16.msra.mxu0 %v265
  %341 = vmatprep.subr.bf16.mxu0 0
  %342 = vmatpush1.bf16.msra.mxu0 %v266
  %343 = vmatprep.subr.bf16.mxu0 0
  %344 = vmatpush1.bf16.msra.mxu0 %v267
  %345 = vmatprep.subr.bf16.mxu0 0
  %346 = vmatpush1.bf16.msra.mxu0 %v268
  %347 = vmatprep.subr.bf16.mxu0 0
  %348 = vmatpush1.bf16.msra.mxu0 %v269
  %349 = vmatprep.subr.bf16.mxu0 0
  %350 = vmatpush1.bf16.msra.mxu0 %v270
  %351 = vmatprep.mubr.bf16.mxu0 %v112
  %352 = vmatmul.mubr.bf16.gmra.mrb[0].mxu0 %v111
  %v353 = vpop.f32.mrb[0].mxu0
  %v354 = vadd.f32 0.0, %v353
  %v355 = vpop.f32.mrb[0].mxu0
  %v356 = vpop.f32.mrb[0].mxu0
  %v357 = vadd.f32 0.0, %v356
  %v358 = vpop.f32.mrb[0].mxu0
  %359 = vmatprep.mubr.bf16.mxu0 %v116
  %360 = vmatmul.mubr.bf16.gmra.mrb[0].mxu0 %v115
  %v361 = vpop.f32.mrb[0].mxu0
  %v362 = vadd.f32 0.0, %v361
  %v363 = vpop.f32.mrb[0].mxu0
  %v364 = vpop.f32.mrb[0].mxu0
  %v365 = vadd.f32 0.0, %v364
  %v366 = vpop.f32.mrb[0].mxu0
  %367 = vdwg.mxu0
  %368 = vmatprep.subr.bf16.mxu0 0
  %369 = vmatpush1.bf16.msra.mxu0 %v271
  %370 = vmatprep.subr.bf16.mxu0 0
  %371 = vmatpush1.bf16.msra.mxu0 %v272
  %372 = vmatprep.subr.bf16.mxu0 0
  %373 = vmatpush1.bf16.msra.mxu0 %v273
  %374 = vmatprep.subr.bf16.mxu0 0
  %375 = vmatpush1.bf16.msra.mxu0 %v274
  %376 = vmatprep.subr.bf16.mxu0 0
  %377 = vmatpush1.bf16.msra.mxu0 %v275
  %378 = vmatprep.subr.bf16.mxu0 0
  %379 = vmatpush1.bf16.msra.mxu0 %v276
  %380 = vmatprep.subr.bf16.mxu0 0
  %381 = vmatpush1.bf16.msra.mxu0 %v277
  %382 = vmatprep.subr.bf16.mxu0 0
  %383 = vmatpush1.bf16.msra.mxu0 %v278
  %384 = vmatprep.subr.bf16.mxu0 0
  %385 = vmatpush1.bf16.msra.mxu0 %v279
  %386 = vmatprep.subr.bf16.mxu0 0
  %387 = vmatpush1.bf16.msra.mxu0 %v280
  %388 = vmatprep.subr.bf16.mxu0 0
  %389 = vmatpush1.bf16.msra.mxu0 %v281
  %390 = vmatprep.subr.bf16.mxu0 0
  %391 = vmatpush1.bf16.msra.mxu0 %v282
  %392 = vmatprep.subr.bf16.mxu0 0
  %393 = vmatpush1.bf16.msra.mxu0 %v283
  %394 = vmatprep.subr.bf16.mxu0 0
  %395 = vmatpush1.bf16.msra.mxu0 %v284
  %396 = vmatprep.subr.bf16.mxu0 0
  %397 = vmatpush1.bf16.msra.mxu0 %v285
  %398 = vmatprep.subr.bf16.mxu0 0
  %399 = vmatpush1.bf16.msra.mxu0 %v286
  %400 = vmatprep.mubr.bf16.mxu0 %v114
  %401 = vmatmul.mubr.bf16.gmra.mrb[0].mxu0 %v113
  %v402 = vpop.f32.mrb[0].mxu0
  %v403 = vadd.f32 %v354, %v402
  %v404 = vpop.f32.mrb[0].mxu0
  %v405 = vpop.f32.mrb[0].mxu0
  %v406 = vadd.f32 %v357, %v405
  %v407 = vpop.f32.mrb[0].mxu0
  %408 = vmatprep.mubr.bf16.mxu0 %v118
  %409 = vmatmul.mubr.bf16.gmra.mrb[0].mxu0 %v117
  %v410 = vpop.f32.mrb[0].mxu0
  %v411 = vadd.f32 %v362, %v410
  %v412 = vpop.f32.mrb[0].mxu0
  %v413 = vpop.f32.mrb[0].mxu0
  %v414 = vadd.f32 %v365, %v413
  %v415 = vpop.f32.mrb[0].mxu0
  %416 = vdwg.mxu0
  %v417 = vpack.c.bf16 %v406, %v403
  %v418 = vpack.c.bf16 %v414, %v411
  %v421 = vunpack.c.l.b16 %v417
  %v422 = vunpack.c.h.b16 %v417
  %v423 = vunpack.c.l.b16 %v418
  %v424 = vunpack.c.h.b16 %v418
  %v425 = vpack.c.b16 %v421, %v421
  %v426 = vpack.c.b16 %v422, %v422
  %v427 = vpack.c.b16 %v423, %v423
  %v428 = vpack.c.b16 %v424, %v424
  %433 = vst [vmem:[%s2] sm:$0xf] %v425
  %434 = vst [vmem:[%s2 + $0x4] sm:$0xf] %v426
  %435 = vst [vmem:[%s2 + $0x8] sm:$0xf] %v427
  %436 = vst [vmem:[%s2 + $0xc] sm:$0xf] %v428
  %v437 = vunpack.c.l.bf16 %v417
  %v438 = vunpack.c.h.bf16 %v417
  %v439 = vunpack.c.l.bf16 %v418
  %v440 = vunpack.c.h.bf16 %v418
  %v441 = vadd.f32 %v437, %v438
  %v442 = vadd.f32 %v441, %v439
  %v443 = vadd.f32 %v442, %v440
  %v444 = vrot.slane %v443, 4
  %v445 = vadd.f32 %v443, %v444
  %v446 = vrot.slane %v445, 2
  %v447 = vadd.f32 %v445, %v446
  %v448 = vrot.slane %v447, 1
  %v449 = vadd.f32 %v447, %v448
  %450 = vst [vmem:[%s3] sm:$0x1] %v449
  %v451 = vmul.f32 %v437, %v437
  %v452 = vmul.f32 %v438, %v438
  %v453 = vmul.f32 %v439, %v439
  %v454 = vmul.f32 %v440, %v440
  %v455 = vadd.f32 %v451, %v452
  %v456 = vadd.f32 %v455, %v453
  %v457 = vadd.f32 %v456, %v454
  %v458 = vrot.slane %v457, 4
  %v459 = vadd.f32 %v457, %v458
  %v460 = vrot.slane %v459, 2
  %v461 = vadd.f32 %v459, %v460
  %v462 = vrot.slane %v461, 1
  %v463 = vadd.f32 %v461, %v462
  %464 = vst [vmem:[%s4] sm:$0x1] %v463
  // Predicated region
  $region10: #{domain_classifier_forward.13} parent=0 // pred_check
    _
  $region11: #{domain_classifier_forward.13} parent=0 // pred_check_branch
    %466 = sbr.rel (0) target = $region13
  $region12: #{domain_classifier_forward.13} parent=0 // pred_region
    _
  $region13: #{domain_classifier_forward.13} parent=0 // pred_fallthru
    _
  // Predicated region
  $region14: #{domain_classifier_forward.13} parent=0 // pred_check
    _
  $region15: #{domain_classifier_forward.13} parent=0 // pred_check_branch
    %468 = sbr.rel (0) target = $region17
  $region16: #{domain_classifier_forward.13} parent=0 // pred_region
    _
  $region17: #{domain_classifier_forward.13} parent=0 // pred_fallthru
    _
  // Predicated region
  $region18: #{domain_classifier_forward.13} parent=0 // pred_check
    _
  $region19: #{domain_classifier_forward.13} parent=0 // pred_check_branch
    %470 = sbr.rel (0) target = $region21
  $region20: #{domain_classifier_forward.13} parent=0 // pred_region
    _
  $region21: #{domain_classifier_forward.13} parent=0 // pred_fallthru
    _
  // Predicated region
  $region22: #{domain_classifier_forward.13} parent=0 // pred_check
    _
  $region23: #{domain_classifier_forward.13} parent=0 // pred_check_branch
    %472 = sbr.rel (0) target = $region25
  $region24: #{domain_classifier_forward.13} parent=0 // pred_region
    _
  $region25: #{domain_classifier_forward.13} parent=0 // pred_fallthru
    _
  // Predicated region
  $region26: #{domain_classifier_forward.13} parent=0 // pred_check
    _
  $region27: #{domain_classifier_forward.13} parent=0 // pred_check_branch
    %474 = sbr.rel (0) target = $region29
  $region28: #{domain_classifier_forward.13} parent=0 // pred_region
    _
  $region29: #{domain_classifier_forward.13} parent=0 // pred_fallthru
    _
  // Predicated region
  $region30: #{domain_classifier_forward.13} parent=0 // pred_check
    _
  $region31: #{domain_classifier_forward.13} parent=0 // pred_check_branch
    %476 = sbr.rel (0) target = $region33
  $region32: #{domain_classifier_forward.13} parent=0 // pred_region
    _
  $region33: #{domain_classifier_forward.13} parent=0 // pred_fallthru
    _

// kernel: domain_classifier_forward.15
$region0: #{domain_classifier_forward.15}
  #allocation0 [shape = 'u32[]', space=smem, size = 0x4, offset = 0x4, fixed_abs, tag = 'smem constant byte address 0x4 - core index']
  #allocation1 [shape = 'u32[144,128]{1,0:T(1,128)}', space=vmem, size = 0x12000, scoped, tag = 'internal scratch']
  %s0 = inlined_call_operand.vmem [shape: bf16[8,1024], index: 0, kind: input, shape index: {}]
  %s1 = inlined_call_operand.vmem [shape: bf16[1,1024], index: 1, kind: input, shape index: {}]
  %s2 = inlined_call_operand.vmem [shape: f32[8,1], index: 2, kind: output, shape index: {}]
  %s3 = sld [smem:[#allocation0]]
  $region18: #{domain_classifier_forward.15} parent=0
    _
  %s5 = ssub.s32 1, %s3
  %s6 = scalar_select 0, %s5, %s3
  // Predicated region
  $region2: #{domain_classifier_forward.15} parent=0 // pred_check
    _
  $region3: #{domain_classifier_forward.15} parent=0 // pred_check_branch
    %8 = sbr.rel (0) target = $region5
  $region4: #{domain_classifier_forward.15} parent=0 // pred_region
    _
  $region5: #{domain_classifier_forward.15} parent=0 // pred_fallthru
    _
  // Predicated region
  $region6: #{domain_classifier_forward.15} parent=0 // pred_check
    _
  $region7: #{domain_classifier_forward.15} parent=0 // pred_check_branch
    %10 = sbr.rel (0) target = $region9
  $region8: #{domain_classifier_forward.15} parent=0 // pred_region
    _
  $region9: #{domain_classifier_forward.15} parent=0 // pred_fallthru
    _
  %v11 = vld [vmem:[%s0] sm:$0xff]
  %v12 = vld [vmem:[%s0 + $0x8] sm:$0xff]
  %v13 = vld [vmem:[%s0 + $0x10] sm:$0xff]
  %v14 = vld [vmem:[%s0 + $0x18] sm:$0xff]
  %v15 = vunpack.c.l.bf16 %v11
  %v16 = vunpack.c.h.bf16 %v11
  %v17 = vunpack.c.l.bf16 %v12
  %v18 = vunpack.c.h.bf16 %v12
  %v19 = vunpack.c.l.bf16 %v13
  %v20 = vunpack.c.h.bf16 %v13
  %v21 = vunpack.c.l.bf16 %v14
  %v22 = vunpack.c.h.bf16 %v14
  %v23 = vld [vmem:[%s1] sm:$0xff]
  %v24 = vunpack.c.l.bf16 %v23
  %v25 = vunpack.c.h.bf16 %v23
  %v28 = vlaneseq
  %v29 = vshrl.u32 %v28, 7
  %v30 = vsub.s32 0, %v29
  %v31 = vrot.slane %v24, %v30
  %v32 = vlaneseq
  %v33 = vshrl.u32 %v32, 7
  %v34 = vsub.s32 2, %v33
  %v35 = vrot.slane %v24, %v34
  %v36 = vlaneseq
  %v37 = vshrl.u32 %v36, 7
  %v38 = vsub.s32 4, %v37
  %v39 = vrot.slane %v24, %v38
  %v40 = vlaneseq
  %v41 = vshrl.u32 %v40, 7
  %v42 = vsub.s32 6, %v41
  %v43 = vrot.slane %v24, %v42
  %v44 = vlaneseq
  %v45 = vshrl.u32 %v44, 7
  %v46 = vsub.s32 0, %v45
  %v47 = vrot.slane %v25, %v46
  %v48 = vlaneseq
  %v49 = vshrl.u32 %v48, 7
  %v50 = vsub.s32 2, %v49
  %v51 = vrot.slane %v25, %v50
  %v52 = vlaneseq
  %v53 = vshrl.u32 %v52, 7
  %v54 = vsub.s32 4, %v53
  %v55 = vrot.slane %v25, %v54
  %v56 = vlaneseq
  %v57 = vshrl.u32 %v56, 7
  %v58 = vsub.s32 6, %v57
  %v59 = vrot.slane %v25, %v58
  %v68 = vlaneseq
  %v69 = vshrl.u32 %v68, 7
  %v70 = vsub.s32 0, %v69
  %v71 = vrot.slane %v31, %v70
  %v72 = vlaneseq
  %v73 = vshrl.u32 %v72, 7
  %v74 = vsub.s32 0, %v73
  %v75 = vrot.slane %v35, %v74
  %v76 = vlaneseq
  %v77 = vshrl.u32 %v76, 7
  %v78 = vsub.s32 0, %v77
  %v79 = vrot.slane %v39, %v78
  %v80 = vlaneseq
  %v81 = vshrl.u32 %v80, 7
  %v82 = vsub.s32 0, %v81
  %v83 = vrot.slane %v43, %v82
  %v84 = vlaneseq
  %v85 = vshrl.u32 %v84, 7
  %v86 = vsub.s32 0, %v85
  %v87 = vrot.slane %v47, %v86
  %v88 = vlaneseq
  %v89 = vshrl.u32 %v88, 7
  %v90 = vsub.s32 0, %v89
  %v91 = vrot.slane %v51, %v90
  %v92 = vlaneseq
  %v93 = vshrl.u32 %v92, 7
  %v94 = vsub.s32 0, %v93
  %v95 = vrot.slane %v55, %v94
  %v96 = vlaneseq
  %v97 = vshrl.u32 %v96, 7
  %v98 = vsub.s32 0, %v97
  %v99 = vrot.slane %v59, %v98
  %v100 = vmul.f32 %v15, %v71
  %v101 = vmul.f32 %v16, %v75
  %v102 = vmul.f32 %v17, %v79
  %v103 = vmul.f32 %v18, %v83
  %v104 = vmul.f32 %v19, %v87
  %v105 = vmul.f32 %v20, %v91
  %v106 = vmul.f32 %v21, %v95
  %v107 = vmul.f32 %v22, %v99
  %v108 = vadd.f32 %v100, %v101
  %v109 = vadd.f32 %v108, %v102
  %v110 = vadd.f32 %v109, %v103
  %v111 = vadd.f32 %v110, %v104
  %v112 = vadd.f32 %v111, %v105
  %v113 = vadd.f32 %v112, %v106
  %v114 = vadd.f32 %v113, %v107
  %115 = vadd.xlane.f32.xlu0 %v114
  %v116 = vpop.xlane.xlu0 %115
  %v117 = vxor.u32 %v116, 2147483648
  %v118 = vmul.f32 %v117, 1.442695
  %v119 = vpow.pop %v118
  %v120 = vadd.f32 %v119, 1.0
  %v121 = vrcp.pop %v120
  %v122 = vmul.f32 1.0, %v121
  %vm123 = vcmask 7168
  %124 = vst.msk [vmem:[%s2] sm:$0xff] %vm123, %v122
  // Predicated region
  $region10: #{domain_classifier_forward.15} parent=0 // pred_check
    _
  $region11: #{domain_classifier_forward.15} parent=0 // pred_check_branch
    %126 = sbr.rel (0) target = $region13
  $region12: #{domain_classifier_forward.15} parent=0 // pred_region
    _
  $region13: #{domain_classifier_forward.15} parent=0 // pred_fallthru
    _
  // Predicated region
  $region14: #{domain_classifier_forward.15} parent=0 // pred_check
    _
  $region15: #{domain_classifier_forward.15} parent=0 // pred_check_branch
    %128 = sbr.rel (0) target = $region17
  $region16: #{domain_classifier_forward.15} parent=0 // pred_region
    _
  $region17: #{domain_classifier_forward.15} parent=0 // pred_fallthru
    _

</llo_original>
